<compile_context>
chip_gen: v6e
topology: v6e:2x2x1
jax: 0.10.0
libtpu: 0.0.40
codegen_flags: <defaults>
</compile_context>

<pallas_src>
import jax
import jax.numpy as jnp
from jax import lax
from jax.experimental import pallas as pl
from jax.experimental.pallas import tpu as pltpu

NEG_SLOPE = 0.01      # nn.LeakyReLU default
BN_EPS = 1e-5         # nn.BatchNorm2d default


def _leaky(x):
    return jnp.maximum(x, NEG_SLOPE * x)


def resconv2d_kernel(x_ref, w1_ref, ws_ref, w2_ref, b1_ref, bs_ref, b2_ref,
                     o_ref, h1pad_ref):
    # x_ref    : (H+2, W*Cin)          H-padded input slab, lane = w*Cin + ci
    # w1_ref   : (3, W*Cin, W*Cout)    banded conv1 weights (BN1 scale folded)
    # ws_ref   : (W*Cin, W*Cout)       banded 1x1 shortcut weights (BN scale folded)
    # w2_ref   : (3, W*Cout, W*Cout)   banded conv2 weights (BN2 scale folded)
    # b1_ref   : (1, W*Cout)           BN1-folded bias, W-tiled
    # bs_ref   : (1, W*Cout)           shortcut BN-folded bias, W-tiled
    # b2_ref   : (1, W*Cout)           BN2-folded bias, W-tiled
    # o_ref    : (H, W*Cout)           lane-dense output slab
    # h1pad_ref: VMEM (H+2, W*Cout)    H-padded staging buffer for conv2 side taps
    Hp, _ = x_ref.shape
    H = Hp - 2
    WCo = w2_ref.shape[-1]
    # TODO(synk): for bf16-tolerant deployments drop HIGHEST (multi-pass f32 emulation
    # on the bf16 MXU); kept here to hold the 1e-3 check against the f32 reference.
    prec = lax.Precision.HIGHEST

    # ---- conv1 -> BN1 -> LeakyReLU: 3 lane-dense MXU dots (one per ky row tap) ----
    acc = jnp.broadcast_to(b1_ref[...], (H, WCo))
    for ky in range(3):
        acc = acc + jnp.dot(x_ref[ky:ky + H, :], w1_ref[ky],
                            preferred_element_type=jnp.float32, precision=prec)
    h1 = _leaky(acc)

    # ---- shortcut: 1x1 conv -> BN, one dot against the (unshifted) center rows ----
    sc = jnp.broadcast_to(bs_ref[...], (H, WCo))
    sc = sc + jnp.dot(x_ref[1:1 + H, :], ws_ref[...],
                      preferred_element_type=jnp.float32, precision=prec)

    # ---- stage h1 with a 1-row zero border (only the 2 border rows are zeroed) ----
    h1pad_ref[0:1, :] = jnp.zeros((1, WCo), jnp.float32)
    h1pad_ref[H + 1:H + 2, :] = jnp.zeros((1, WCo), jnp.float32)
    h1pad_ref[1:H + 1, :] = h1

    # ---- conv2 -> BN2: center tap uses the live h1 value, side taps read the pad ----
    acc2 = jnp.broadcast_to(b2_ref[...], (H, WCo))
    acc2 = acc2 + jnp.dot(h1, w2_ref[1],
                          preferred_element_type=jnp.float32, precision=prec)
    acc2 = acc2 + jnp.dot(h1pad_ref[0:H, :], w2_ref[0],
                          preferred_element_type=jnp.float32, precision=prec)
    acc2 = acc2 + jnp.dot(h1pad_ref[2:H + 2, :], w2_ref[2],
                          preferred_element_type=jnp.float32, precision=prec)

    # residual add + gate2
    o_ref[...] = _leaky(acc2 + sc).astype(o_ref.dtype)


def _fold_bn(conv_bias, gamma, beta, mean, var, eps=BN_EPS):
    """Fold conv bias + eval-mode BatchNorm into per-channel (scale, bias)."""
    scale = gamma / jnp.sqrt(var + eps)
    bias = (conv_bias - mean) * scale + beta
    return scale, bias


def _banded(w_kkio, W):
    """(3, 3, Ci, Co) spatial taps -> (3, W*Ci, W*Co) block-Toeplitz band.

    band[ky][wp*Ci+ci, w*Co+co] = w_kkio[ky, kx, ci, co] with kx = wp - w + 1 in {0,1,2};
    the conv's zero padding along W is handled by the band truncation at the edges.
    """
    mats = []
    for ky in range(3):
        m = sum(jnp.kron(jnp.eye(W, k=1 - kx, dtype=w_kkio.dtype), w_kkio[ky, kx])
                for kx in range(3))
        mats.append(m)
    return jnp.stack(mats)


def resconv2d_pallas(x_nchw, p):
    N, Cin, H, W = x_nchw.shape
    Cout = p['w1'].shape[0]

    # ---- plain-JAX prep: layout, BN folding, banded weights (tiny, one-time) ----
    # NCHW -> (N, H+2, W*Cin): channels folded into the lane axis, 1-row H padding only.
    xr = jnp.transpose(x_nchw, (0, 2, 3, 1)).reshape(N, H, W * Cin)
    xp = jnp.pad(xr, ((0, 0), (1, 1), (0, 0)))

    s1, b1 = _fold_bn(p['b1'], p['g1'], p['be1'], p['m1'], p['v1'])
    s2, b2 = _fold_bn(p['b2'], p['g2'], p['be2'], p['m2'], p['v2'])
    ss, bs = _fold_bn(p['bs'], p['gs'], p['bes'], p['ms'], p['vs'])

    # OIHW -> (ky, kx, Ci, Co) with the BN scale folded into the output channels.
    w1_k = jnp.transpose(p['w1'], (2, 3, 1, 0)) * s1            # (3, 3, Cin,  Cout)
    w2_k = jnp.transpose(p['w2'], (2, 3, 1, 0)) * s2            # (3, 3, Cout, Cout)
    ws_k = jnp.transpose(p['ws'], (2, 3, 1, 0))[0, 0] * ss      # (Cin, Cout)

    a1 = _banded(w1_k, W)                                       # (3, W*Cin,  W*Cout)
    a2 = _banded(w2_k, W)                                       # (3, W*Cout, W*Cout)
    sc_band = jnp.kron(jnp.eye(W, dtype=ws_k.dtype), ws_k)      # (W*Cin, W*Cout)

    bias1 = jnp.tile(b1, W).reshape(1, W * Cout)
    bias_s = jnp.tile(bs, W).reshape(1, W * Cout)
    bias2 = jnp.tile(b2, W).reshape(1, W * Cout)

    out = pl.pallas_call(
        resconv2d_kernel,
        out_shape=jax.ShapeDtypeStruct((N, H, W * Cout), jnp.float32),
        grid=(N,),
        in_specs=[
            pl.BlockSpec((None, H + 2, W * Cin), lambda n: (n, 0, 0)),
            pl.BlockSpec((3, W * Cin, W * Cout), lambda n: (0, 0, 0)),
            pl.BlockSpec((W * Cin, W * Cout), lambda n: (0, 0)),
            pl.BlockSpec((3, W * Cout, W * Cout), lambda n: (0, 0, 0)),
            pl.BlockSpec((1, W * Cout), lambda n: (0, 0)),
            pl.BlockSpec((1, W * Cout), lambda n: (0, 0)),
            pl.BlockSpec((1, W * Cout), lambda n: (0, 0)),
        ],
        out_specs=pl.BlockSpec((None, H, W * Cout), lambda n: (n, 0, 0)),
        scratch_shapes=[pltpu.VMEM((H + 2, W * Cout), jnp.float32)],
        compiler_params=pltpu.CompilerParams(dimension_semantics=("parallel",)),
    )(xp, a1, sc_band, a2, bias1, bias_s, bias2)

    # (N, H, W*Cout) -> NCHW
    return jnp.transpose(out.reshape(N, H, W, Cout), (0, 3, 1, 2))


def resconv2d_ref(x, p, eps=BN_EPS):
    """Pure-JAX reference (NCHW, lax.conv), mirroring the PyTorch module in eval mode."""
    dn = ('NCHW', 'OIHW', 'NCHW')
    prec = lax.Precision.HIGHEST

    def bn(y, g, be, m, v):
        r = lambda a: a.reshape(1, -1, 1, 1)
        return (y - r(m)) / jnp.sqrt(r(v) + eps) * r(g) + r(be)

    y = lax.conv_general_dilated(x, p['w1'], (1, 1), ((1, 1), (1, 1)),
                                 dimension_numbers=dn, precision=prec)
    y = bn(y + p['b1'].reshape(1, -1, 1, 1), p['g1'], p['be1'], p['m1'], p['v1'])
    y = jnp.where(y >= 0, y, NEG_SLOPE * y)
    y = lax.conv_general_dilated(y, p['w2'], (1, 1), ((1, 1), (1, 1)),
                                 dimension_numbers=dn, precision=prec)
    y = bn(y + p['b2'].reshape(1, -1, 1, 1), p['g2'], p['be2'], p['m2'], p['v2'])

    s = lax.conv_general_dilated(x, p['ws'], (1, 1), ((0, 0), (0, 0)),
                                 dimension_numbers=dn, precision=prec)
    s = bn(s + p['bs'].reshape(1, -1, 1, 1), p['gs'], p['bes'], p['ms'], p['vs'])

    out = y + s
    return jnp.where(out >= 0, out, NEG_SLOPE * out)


if __name__ == "__main__":
    N, Cin, Cout, H, W = 2, 4, 8, 16, 16

    key = jax.random.PRNGKey(0)
    ks = jax.random.split(key, 20)

    def bn_params(k0, k1, k2, k3, c):
        return (1.0 + 0.1 * jax.random.normal(k0, (c,), jnp.float32),   # gamma
                0.1 * jax.random.normal(k1, (c,), jnp.float32),         # beta
                0.1 * jax.random.normal(k2, (c,), jnp.float32),         # running_mean
                1.0 + 0.1 * jnp.abs(jax.random.normal(k3, (c,), jnp.float32)))  # running_var

    p = {}
    p['w1'] = 0.1 * jax.random.normal(ks[0], (Cout, Cin, 3, 3), jnp.float32)
    p['b1'] = 0.1 * jax.random.normal(ks[1], (Cout,), jnp.float32)
    p['g1'], p['be1'], p['m1'], p['v1'] = bn_params(ks[2], ks[3], ks[4], ks[5], Cout)
    p['w2'] = 0.1 * jax.random.normal(ks[6], (Cout, Cout, 3, 3), jnp.float32)
    p['b2'] = 0.1 * jax.random.normal(ks[7], (Cout,), jnp.float32)
    p['g2'], p['be2'], p['m2'], p['v2'] = bn_params(ks[8], ks[9], ks[10], ks[11], Cout)
    p['ws'] = 0.1 * jax.random.normal(ks[12], (Cout, Cin, 1, 1), jnp.float32)
    p['bs'] = 0.1 * jax.random.normal(ks[13], (Cout,), jnp.float32)
    p['gs'], p['bes'], p['ms'], p['vs'] = bn_params(ks[14], ks[15], ks[16], ks[17], Cout)

    x = jax.random.normal(ks[18], (N, Cin, H, W), jnp.float32)

    out = jax.block_until_ready(resconv2d_pallas(x, p))
    ref = jax.block_until_ready(resconv2d_ref(x, p))

    assert out.shape == (N, Cout, H, W), out.shape
    assert jnp.allclose(out, ref, atol=1e-3, rtol=1e-3), float(jnp.max(jnp.abs(out - ref)))
    print("KERNEL_OK")
</pallas_src>

<mosaic_0001>
module attributes {stable_mosaic.version = 11 : i64} {
  func.func @resconv2d_kernel(%arg0: i32, %arg1: memref<1x18x64xf32, #tpu.memory_space<vmem>>, %arg2: memref<3x64x128xf32, #tpu.memory_space<vmem>>, %arg3: memref<64x128xf32, #tpu.memory_space<vmem>>, %arg4: memref<3x128x128xf32, #tpu.memory_space<vmem>>, %arg5: memref<1x128xf32, #tpu.memory_space<vmem>>, %arg6: memref<1x128xf32, #tpu.memory_space<vmem>>, %arg7: memref<1x128xf32, #tpu.memory_space<vmem>>, %arg8: memref<1x16x128xf32, #tpu.memory_space<vmem>>, %arg9: memref<18x128xf32, #tpu.memory_space<vmem>>) attributes {dimension_semantics = [#tpu.dimension_semantics<parallel>], iteration_bounds = array<i64: 2>, scalar_prefetch = 0 : i64, scratch_operands = 1 : i64, tpu.core_type = #tpu.core_type<tc>, window_params = [{transform_indices = @transform_0, window_bounds = array<i64: 1, 18, 64>}, {pipeline_mode = #tpu.pipeline_mode<synchronous>, transform_indices = @transform_1, window_bounds = array<i64: 3, 64, 128>}, {pipeline_mode = #tpu.pipeline_mode<synchronous>, transform_indices = @transform_2, window_bounds = array<i64: 64, 128>}, {pipeline_mode = #tpu.pipeline_mode<synchronous>, transform_indices = @transform_3, window_bounds = array<i64: 3, 128, 128>}, {pipeline_mode = #tpu.pipeline_mode<synchronous>, transform_indices = @transform_4, window_bounds = array<i64: 1, 128>}, {pipeline_mode = #tpu.pipeline_mode<synchronous>, transform_indices = @transform_5, window_bounds = array<i64: 1, 128>}, {pipeline_mode = #tpu.pipeline_mode<synchronous>, transform_indices = @transform_6, window_bounds = array<i64: 1, 128>}, {transform_indices = @transform_7, window_bounds = array<i64: 1, 16, 128>}]} {
    %c0 = arith.constant 0 : index
    %c0_0 = arith.constant 0 : index
    %0 = vector.load %arg5[%c0, %c0_0] : memref<1x128xf32, #tpu.memory_space<vmem>>, vector<1x128xf32>
    %1 = vector.shape_cast %0 : vector<1x128xf32> to vector<1x128xf32>
    %2 = vector.broadcast %1 : vector<1x128xf32> to vector<16x128xf32>
    %c0_1 = arith.constant 0 : index
    %c0_2 = arith.constant 0 : index
    %c0_3 = arith.constant 0 : index
    %3 = vector.load %arg1[%c0_1, %c0_2, %c0_3] : memref<1x18x64xf32, #tpu.memory_space<vmem>>, vector<1x16x64xf32>
    %4 = vector.shape_cast %3 : vector<1x16x64xf32> to vector<16x64xf32>
    %c0_4 = arith.constant 0 : index
    %c0_5 = arith.constant 0 : index
    %c0_6 = arith.constant 0 : index
    %5 = vector.load %arg2[%c0_4, %c0_5, %c0_6] : memref<3x64x128xf32, #tpu.memory_space<vmem>>, vector<1x64x128xf32>
    %6 = vector.shape_cast %5 : vector<1x64x128xf32> to vector<64x128xf32>
    %cst = arith.constant dense<0.000000e+00> : vector<16x128xf32>
    %7 = tpu.matmul %4, %6, %cst {dimension_numbers = #tpu.dot_dimension_numbers<[1], [0], [0], [1], [0, 0, 1, 1], [], []>, precision = #tpu.contract_precision<fp32>} : vector<16x64xf32>, vector<64x128xf32>, vector<16x128xf32> -> vector<16x128xf32>
    %8 = arith.addf %2, %7 : vector<16x128xf32>
    %c0_7 = arith.constant 0 : index
    %c1 = arith.constant 1 : index
    %c0_8 = arith.constant 0 : index
    %9 = vector.load %arg1[%c0_7, %c1, %c0_8] : memref<1x18x64xf32, #tpu.memory_space<vmem>>, vector<1x16x64xf32>
    %10 = vector.shape_cast %9 : vector<1x16x64xf32> to vector<16x64xf32>
    %c1_9 = arith.constant 1 : index
    %c0_10 = arith.constant 0 : index
    %c0_11 = arith.constant 0 : index
    %11 = vector.load %arg2[%c1_9, %c0_10, %c0_11] : memref<3x64x128xf32, #tpu.memory_space<vmem>>, vector<1x64x128xf32>
    %12 = vector.shape_cast %11 : vector<1x64x128xf32> to vector<64x128xf32>
    %cst_12 = arith.constant dense<0.000000e+00> : vector<16x128xf32>
    %13 = tpu.matmul %10, %12, %cst_12 {dimension_numbers = #tpu.dot_dimension_numbers<[1], [0], [0], [1], [0, 0, 1, 1], [], []>, precision = #tpu.contract_precision<fp32>} : vector<16x64xf32>, vector<64x128xf32>, vector<16x128xf32> -> vector<16x128xf32>
    %14 = arith.addf %8, %13 : vector<16x128xf32>
    %c0_13 = arith.constant 0 : index
    %c2 = arith.constant 2 : index
    %c0_14 = arith.constant 0 : index
    %15 = vector.load %arg1[%c0_13, %c2, %c0_14] : memref<1x18x64xf32, #tpu.memory_space<vmem>>, vector<1x16x64xf32>
    %16 = vector.shape_cast %15 : vector<1x16x64xf32> to vector<16x64xf32>
    %c2_15 = arith.constant 2 : index
    %c0_16 = arith.constant 0 : index
    %c0_17 = arith.constant 0 : index
    %17 = vector.load %arg2[%c2_15, %c0_16, %c0_17] : memref<3x64x128xf32, #tpu.memory_space<vmem>>, vector<1x64x128xf32>
    %18 = vector.shape_cast %17 : vector<1x64x128xf32> to vector<64x128xf32>
    %cst_18 = arith.constant dense<0.000000e+00> : vector<16x128xf32>
    %19 = tpu.matmul %16, %18, %cst_18 {dimension_numbers = #tpu.dot_dimension_numbers<[1], [0], [0], [1], [0, 0, 1, 1], [], []>, precision = #tpu.contract_precision<fp32>} : vector<16x64xf32>, vector<64x128xf32>, vector<16x128xf32> -> vector<16x128xf32>
    %20 = arith.addf %14, %19 : vector<16x128xf32>
    %cst_19 = arith.constant 0.00999999977 : f32
    %21 = vector.broadcast %cst_19 : f32 to vector<16x128xf32>
    %22 = arith.mulf %21, %20 : vector<16x128xf32>
    %23 = arith.maximumf %20, %22 : vector<16x128xf32>
    %c0_20 = arith.constant 0 : index
    %c0_21 = arith.constant 0 : index
    %24 = vector.load %arg6[%c0_20, %c0_21] : memref<1x128xf32, #tpu.memory_space<vmem>>, vector<1x128xf32>
    %25 = vector.shape_cast %24 : vector<1x128xf32> to vector<1x128xf32>
    %26 = vector.broadcast %25 : vector<1x128xf32> to vector<16x128xf32>
    %c0_22 = arith.constant 0 : index
    %c1_23 = arith.constant 1 : index
    %c0_24 = arith.constant 0 : index
    %27 = vector.load %arg1[%c0_22, %c1_23, %c0_24] : memref<1x18x64xf32, #tpu.memory_space<vmem>>, vector<1x16x64xf32>
    %28 = vector.shape_cast %27 : vector<1x16x64xf32> to vector<16x64xf32>
    %c0_25 = arith.constant 0 : index
    %c0_26 = arith.constant 0 : index
    %29 = vector.load %arg3[%c0_25, %c0_26] : memref<64x128xf32, #tpu.memory_space<vmem>>, vector<64x128xf32>
    %cst_27 = arith.constant dense<0.000000e+00> : vector<16x128xf32>
    %30 = tpu.matmul %28, %29, %cst_27 {dimension_numbers = #tpu.dot_dimension_numbers<[1], [0], [0], [1], [0, 0, 1, 1], [], []>, precision = #tpu.contract_precision<fp32>} : vector<16x64xf32>, vector<64x128xf32>, vector<16x128xf32> -> vector<16x128xf32>
    %31 = arith.addf %26, %30 : vector<16x128xf32>
    %cst_28 = arith.constant 0.000000e+00 : f32
    %32 = vector.broadcast %cst_28 : f32 to vector<1x128xf32>
    %c0_29 = arith.constant 0 : index
    %c0_30 = arith.constant 0 : index
    %33 = vector.load %arg9[%c0_29, %c0_30] : memref<18x128xf32, #tpu.memory_space<vmem>>, vector<1x128xf32>
    tpu.vector_store %arg9[%c0_29, %c0_30], %32 {strides = array<i32>} : memref<18x128xf32, #tpu.memory_space<vmem>>, vector<1x128xf32>,
    %cst_31 = arith.constant 0.000000e+00 : f32
    %34 = vector.broadcast %cst_31 : f32 to vector<1x128xf32>
    %c17 = arith.constant 17 : index
    %c0_32 = arith.constant 0 : index
    %35 = vector.load %arg9[%c17, %c0_32] : memref<18x128xf32, #tpu.memory_space<vmem>>, vector<1x128xf32>
    tpu.vector_store %arg9[%c17, %c0_32], %34 {strides = array<i32>} : memref<18x128xf32, #tpu.memory_space<vmem>>, vector<1x128xf32>,
    %c1_33 = arith.constant 1 : index
    %c0_34 = arith.constant 0 : index
    %36 = vector.load %arg9[%c1_33, %c0_34] : memref<18x128xf32, #tpu.memory_space<vmem>>, vector<16x128xf32>
    tpu.vector_store %arg9[%c1_33, %c0_34], %23 {strides = array<i32>} : memref<18x128xf32, #tpu.memory_space<vmem>>, vector<16x128xf32>,
    %c0_35 = arith.constant 0 : index
    %c0_36 = arith.constant 0 : index
    %37 = vector.load %arg7[%c0_35, %c0_36] : memref<1x128xf32, #tpu.memory_space<vmem>>, vector<1x128xf32>
    %38 = vector.shape_cast %37 : vector<1x128xf32> to vector<1x128xf32>
    %39 = vector.broadcast %38 : vector<1x128xf32> to vector<16x128xf32>
    %c1_37 = arith.constant 1 : index
    %c0_38 = arith.constant 0 : index
    %c0_39 = arith.constant 0 : index
    %40 = vector.load %arg4[%c1_37, %c0_38, %c0_39] : memref<3x128x128xf32, #tpu.memory_space<vmem>>, vector<1x128x128xf32>
    %41 = vector.shape_cast %40 : vector<1x128x128xf32> to vector<128x128xf32>
    %cst_40 = arith.constant dense<0.000000e+00> : vector<16x128xf32>
    %42 = tpu.matmul %23, %41, %cst_40 {dimension_numbers = #tpu.dot_dimension_numbers<[1], [0], [0], [1], [0, 0, 1, 1], [], []>, precision = #tpu.contract_precision<fp32>} : vector<16x128xf32>, vector<128x128xf32>, vector<16x128xf32> -> vector<16x128xf32>
    %43 = arith.addf %39, %42 : vector<16x128xf32>
    %c0_41 = arith.constant 0 : index
    %c0_42 = arith.constant 0 : index
    %44 = vector.load %arg9[%c0_41, %c0_42] : memref<18x128xf32, #tpu.memory_space<vmem>>, vector<16x128xf32>
    %c0_43 = arith.constant 0 : index
    %c0_44 = arith.constant 0 : index
    %c0_45 = arith.constant 0 : index
    %45 = vector.load %arg4[%c0_43, %c0_44, %c0_45] : memref<3x128x128xf32, #tpu.memory_space<vmem>>, vector<1x128x128xf32>
    %46 = vector.shape_cast %45 : vector<1x128x128xf32> to vector<128x128xf32>
    %cst_46 = arith.constant dense<0.000000e+00> : vector<16x128xf32>
    %47 = tpu.matmul %44, %46, %cst_46 {dimension_numbers = #tpu.dot_dimension_numbers<[1], [0], [0], [1], [0, 0, 1, 1], [], []>, precision = #tpu.contract_precision<fp32>} : vector<16x128xf32>, vector<128x128xf32>, vector<16x128xf32> -> vector<16x128xf32>
    %48 = arith.addf %43, %47 : vector<16x128xf32>
    %c2_47 = arith.constant 2 : index
    %c0_48 = arith.constant 0 : index
    %49 = vector.load %arg9[%c2_47, %c0_48] : memref<18x128xf32, #tpu.memory_space<vmem>>, vector<16x128xf32>
    %c2_49 = arith.constant 2 : index
    %c0_50 = arith.constant 0 : index
    %c0_51 = arith.constant 0 : index
    %50 = vector.load %arg4[%c2_49, %c0_50, %c0_51] : memref<3x128x128xf32, #tpu.memory_space<vmem>>, vector<1x128x128xf32>
    %51 = vector.shape_cast %50 : vector<1x128x128xf32> to vector<128x128xf32>
    %cst_52 = arith.constant dense<0.000000e+00> : vector<16x128xf32>
    %52 = tpu.matmul %49, %51, %cst_52 {dimension_numbers = #tpu.dot_dimension_numbers<[1], [0], [0], [1], [0, 0, 1, 1], [], []>, precision = #tpu.contract_precision<fp32>} : vector<16x128xf32>, vector<128x128xf32>, vector<16x128xf32> -> vector<16x128xf32>
    %53 = arith.addf %48, %52 : vector<16x128xf32>
    %54 = arith.addf %53, %31 : vector<16x128xf32>
    %cst_53 = arith.constant 0.00999999977 : f32
    %55 = vector.broadcast %cst_53 : f32 to vector<16x128xf32>
    %56 = arith.mulf %55, %54 : vector<16x128xf32>
    %57 = arith.maximumf %54, %56 : vector<16x128xf32>
    %c0_54 = arith.constant 0 : index
    %c0_55 = arith.constant 0 : index
    %c0_56 = arith.constant 0 : index
    %58 = vector.load %arg8[%c0_54, %c0_55, %c0_56] : memref<1x16x128xf32, #tpu.memory_space<vmem>>, vector<1x16x128xf32>
    %59 = vector.shape_cast %58 : vector<1x16x128xf32> to vector<16x128xf32>
    %60 = vector.shape_cast %57 : vector<16x128xf32> to vector<1x16x128xf32>
    tpu.vector_store %arg8[%c0_54, %c0_55, %c0_56], %60 {strides = array<i32>} : memref<1x16x128xf32, #tpu.memory_space<vmem>>, vector<1x16x128xf32>,
    return
  }
  func.func @transform_0(%arg0: i32) -> (i32, i32, i32) {
    %c0_i32 = arith.constant 0 : i32
    %c0_i32_0 = arith.constant 0 : i32
    %c0_i32_1 = arith.constant 0 : i32
    return %arg0, %c0_i32, %c0_i32_0 : i32, i32, i32
  }
  func.func @transform_1(%arg0: i32) -> (i32, i32, i32) {
    %c0_i32 = arith.constant 0 : i32
    %c0_i32_0 = arith.constant 0 : i32
    %c0_i32_1 = arith.constant 0 : i32
    %c0_i32_2 = arith.constant 0 : i32
    return %c0_i32, %c0_i32_0, %c0_i32_1 : i32, i32, i32
  }
  func.func @transform_2(%arg0: i32) -> (i32, i32) {
    %c0_i32 = arith.constant 0 : i32
    %c0_i32_0 = arith.constant 0 : i32
    %c0_i32_1 = arith.constant 0 : i32
    return %c0_i32, %c0_i32_0 : i32, i32
  }
  func.func @transform_3(%arg0: i32) -> (i32, i32, i32) {
    %c0_i32 = arith.constant 0 : i32
    %c0_i32_0 = arith.constant 0 : i32
    %c0_i32_1 = arith.constant 0 : i32
    %c0_i32_2 = arith.constant 0 : i32
    return %c0_i32, %c0_i32_0, %c0_i32_1 : i32, i32, i32
  }
  func.func @transform_4(%arg0: i32) -> (i32, i32) {
    %c0_i32 = arith.constant 0 : i32
    %c0_i32_0 = arith.constant 0 : i32
    %c0_i32_1 = arith.constant 0 : i32
    return %c0_i32, %c0_i32_0 : i32, i32
  }
  func.func @transform_5(%arg0: i32) -> (i32, i32) {
    %c0_i32 = arith.constant 0 : i32
    %c0_i32_0 = arith.constant 0 : i32
    %c0_i32_1 = arith.constant 0 : i32
    return %c0_i32, %c0_i32_0 : i32, i32
  }
  func.func @transform_6(%arg0: i32) -> (i32, i32) {
    %c0_i32 = arith.constant 0 : i32
    %c0_i32_0 = arith.constant 0 : i32
    %c0_i32_1 = arith.constant 0 : i32
    return %c0_i32, %c0_i32_0 : i32, i32
  }
  func.func @transform_7(%arg0: i32) -> (i32, i32, i32) {
    %c0_i32 = arith.constant 0 : i32
    %c0_i32_0 = arith.constant 0 : i32
    %c0_i32_1 = arith.constant 0 : i32
    return %arg0, %c0_i32, %c0_i32_0 : i32, i32, i32
  }
}

</mosaic_0001>

<llo_original>
// kernel: tpu_custom_call.1
$region0: #{tpu_custom_call.1}
  #allocation0 [shape = 'u32[]', space=smem, size = 0x4, offset = 0x4, fixed_abs, tag = 'smem constant byte address 0x4 - core index']
  #allocation1 [shape = 'u32[144,128]{1,0:T(1,128)}', space=vmem, size = 0x12000, scoped, tag = 'internal scratch']
  #allocation2 [shape = 'f32[18,128]{1,0:T(8,128)}', space=vmem, size = 0x3000, scoped, tag = 'scratch operand']
  %s0 = inlined_call_operand.vmem [shape: f32[2,18,64], index: 0, kind: input, shape index: {}]
  %s1 = inlined_call_operand.hbm [shape: f32[3,64,128], index: 1, kind: input, shape index: {}]
  %s2 = inlined_call_operand.vmem [shape: f32[64,128], index: 2, kind: input, shape index: {}]
  %s3 = inlined_call_operand.hbm [shape: f32[3,128,128], index: 3, kind: input, shape index: {}]
  %s4 = inlined_call_operand.vmem [shape: f32[1,128], index: 4, kind: input, shape index: {}]
  %s5 = inlined_call_operand.vmem [shape: f32[1,128], index: 5, kind: input, shape index: {}]
  %s6 = inlined_call_operand.vmem [shape: f32[1,128], index: 6, kind: input, shape index: {}]
  %s7 = inlined_call_operand.hbm [shape: f32[2,16,128], index: 7, kind: output, shape index: {}]
  %s8 = sld [smem:[#allocation0]]
  $region69: #{tpu_custom_call.1} parent=0
    _
  %s10 = ssub.s32 1, %s8
  %s11 = scalar_select 0, %s10, %s8
  $region1: #{tpu_custom_call.1} parent=0
    #allocation3 [shape = 'u8[98304]{0}', space=vmem, size = 0x18000, scoped, tag = 'input window, operand 1, single buffered']
    #allocation4 [shape = 's32[2]{0}', space=sflag, size = 0x8, scoped, tag = 'scoped memory for tpu_custom_call.1']
    #allocation5 [shape = 's32[2]{0}', space=sflag, size = 0x8, scoped, tag = 'scoped memory for tpu_custom_call.1']
    #allocation6 [shape = 'u8[196608]{0}', space=vmem, size = 0x30000, scoped, tag = 'input window, operand 3, single buffered']
    #allocation7 [shape = 's32[1]{0}', space=sflag, size = 0x4, scoped, tag = 'scoped memory for tpu_custom_call.1']
    #allocation8 [shape = 'u8[16384]{0}', space=vmem, size = 0x4000, scoped, tag = 'output window, operand 0']
    %12 = vsyncpa [#allocation4], 0
    %13 = vsyncpa [#allocation7], 0
    %14 = vsyncpa [#allocation5], 0
    %s15 = scalar_lea.sflag [#allocation5], 1
    %16 = vsyncpa %s15, 0
    loop: start=0, step=1, limit=4
    $region2: #{tpu_custom_call.1} parent=1 // loop_pre_header
      _
    $region3: #{tpu_custom_call.1} parent=1 // loop_header
      %s18 = sphi 0, %s22
      %p19 = scmp.ge.s32.totalorder %s18, 4
      %s28 = sphi 0, %s30
      %s31 = sphi 0, %s28
      %s32 = sphi 0, %s31
      %s48 = sphi 0, %s32
      %s52 = sphi 0, %s52
      %s54 = sphi 0, %s52
      %s55 = sphi 0, %s54
      %s69 = sphi 0, %s55
      %s73 = sphi 0, %s73
      %s75 = sphi 0, %s73
      %s76 = sphi 0, %s75
      %s90 = sphi 0, %s76
      %s94 = sphi 0, %s94
      %s96 = sphi 0, %s94
      %s97 = sphi 0, %s96
      %s111 = sphi 0, %s97
      %s115 = sphi 0, %s115
      %s117 = sphi 0, %s115
      %s118 = sphi 0, %s117
      %s132 = sphi 0, %s118
      %s136 = sphi 0, %s136
      %s138 = sphi 0, %s136
      %s139 = sphi 0, %s138
      %s153 = sphi 0, %s139
      %s157 = sphi 0, %s157
      %s159 = sphi 0, %s157
      %s160 = sphi 0, %s159
      %s174 = sphi 0, %s160
      %s180 = sphi 0, %s182
      %s183 = sphi 0, %s180
      %s184 = sphi 0, %s183
      %s200 = sphi 0, %s184
    $region4: #{tpu_custom_call.1} parent=1 // loop_header_branch
      %21 = sbr.rel (%p19) target = $region8
    $region5: #{tpu_custom_call.1} parent=1 // loop_body
      %s23 = ssub.s32 %s18, 1
      %s24 = ssub.s32 %s18, 2
      %s25 = sadd.s32 %s18, 1
      %s26 = ssub.s32 %s18, %s25
      %p27 = scmp.eq.s32.totalorder %s26, 0
      %s29 = sadd.s32 %s28, 1
      %s30 = scalar_select %p27, %s28, %s29
      %p33 = pneg %p27
      %p34 = scmp.eq.s32.totalorder %s18, 1
      %p35 = por %p33, %p34
      %p36 = scmp.ne.s32.totalorder %s28, %s31
      %p37 = scmp.eq.s32.totalorder %s18, 0
      %p38 = por %p36, %p37
      %p39 = scmp.ne.s32.totalorder %s28, %s31
      %p40 = scmp.eq.s32.totalorder %s23, 1
      %p41 = por %p39, %p40
      %p42 = scmp.ne.s32.totalorder %s31, %s32
      %p43 = scmp.eq.s32.totalorder %s23, 0
      %p44 = por %p42, %p43
      %p45 = scmp.ne.s32.totalorder %s31, %s32
      %p46 = scmp.eq.s32.totalorder %s24, 1
      %p47 = por %p45, %p46
      %p49 = scmp.ne.s32.totalorder %s32, %s48
      %p50 = scmp.eq.s32.totalorder %s24, 0
      %p51 = por %p49, %p50
      %s53 = sadd.s32 %s52, 1
      %p56 = scmp.eq.s32.totalorder %s18, 1
      %p57 = scmp.ne.s32.totalorder %s52, %s54
      %p58 = scmp.eq.s32.totalorder %s18, 0
      %p59 = por %p57, %p58
      %p60 = scmp.ne.s32.totalorder %s52, %s54
      %p61 = scmp.eq.s32.totalorder %s23, 1
      %p62 = por %p60, %p61
      %p63 = scmp.ne.s32.totalorder %s54, %s55
      %p64 = scmp.eq.s32.totalorder %s23, 0
      %p65 = por %p63, %p64
      %p66 = scmp.ne.s32.totalorder %s54, %s55
      %p67 = scmp.eq.s32.totalorder %s24, 1
      %p68 = por %p66, %p67
      %p70 = scmp.ne.s32.totalorder %s55, %s69
      %p71 = scmp.eq.s32.totalorder %s24, 0
      %p72 = por %p70, %p71
      %s74 = sadd.s32 %s73, 1
      %p77 = scmp.eq.s32.totalorder %s18, 1
      %p78 = scmp.ne.s32.totalorder %s73, %s75
      %p79 = scmp.eq.s32.totalorder %s18, 0
      %p80 = por %p78, %p79
      %p81 = scmp.ne.s32.totalorder %s73, %s75
      %p82 = scmp.eq.s32.totalorder %s23, 1
      %p83 = por %p81, %p82
      %p84 = scmp.ne.s32.totalorder %s75, %s76
      %p85 = scmp.eq.s32.totalorder %s23, 0
      %p86 = por %p84, %p85
      %p87 = scmp.ne.s32.totalorder %s75, %s76
      %p88 = scmp.eq.s32.totalorder %s24, 1
      %p89 = por %p87, %p88
      %p91 = scmp.ne.s32.totalorder %s76, %s90
      %p92 = scmp.eq.s32.totalorder %s24, 0
      %p93 = por %p91, %p92
      %s95 = sadd.s32 %s94, 1
      %p98 = scmp.eq.s32.totalorder %s18, 1
      %p99 = scmp.ne.s32.totalorder %s94, %s96
      %p100 = scmp.eq.s32.totalorder %s18, 0
      %p101 = por %p99, %p100
      %p102 = scmp.ne.s32.totalorder %s94, %s96
      %p103 = scmp.eq.s32.totalorder %s23, 1
      %p104 = por %p102, %p103
      %p105 = scmp.ne.s32.totalorder %s96, %s97
      %p106 = scmp.eq.s32.totalorder %s23, 0
      %p107 = por %p105, %p106
      %p108 = scmp.ne.s32.totalorder %s96, %s97
      %p109 = scmp.eq.s32.totalorder %s24, 1
      %p110 = por %p108, %p109
      %p112 = scmp.ne.s32.totalorder %s97, %s111
      %p113 = scmp.eq.s32.totalorder %s24, 0
      %p114 = por %p112, %p113
      %s116 = sadd.s32 %s115, 1
      %p119 = scmp.eq.s32.totalorder %s18, 1
      %p120 = scmp.ne.s32.totalorder %s115, %s117
      %p121 = scmp.eq.s32.totalorder %s18, 0
      %p122 = por %p120, %p121
      %p123 = scmp.ne.s32.totalorder %s115, %s117
      %p124 = scmp.eq.s32.totalorder %s23, 1
      %p125 = por %p123, %p124
      %p126 = scmp.ne.s32.totalorder %s117, %s118
      %p127 = scmp.eq.s32.totalorder %s23, 0
      %p128 = por %p126, %p127
      %p129 = scmp.ne.s32.totalorder %s117, %s118
      %p130 = scmp.eq.s32.totalorder %s24, 1
      %p131 = por %p129, %p130
      %p133 = scmp.ne.s32.totalorder %s118, %s132
      %p134 = scmp.eq.s32.totalorder %s24, 0
      %p135 = por %p133, %p134
      %s137 = sadd.s32 %s136, 1
      %p140 = scmp.eq.s32.totalorder %s18, 1
      %p141 = scmp.ne.s32.totalorder %s136, %s138
      %p142 = scmp.eq.s32.totalorder %s18, 0
      %p143 = por %p141, %p142
      %p144 = scmp.ne.s32.totalorder %s136, %s138
      %p145 = scmp.eq.s32.totalorder %s23, 1
      %p146 = por %p144, %p145
      %p147 = scmp.ne.s32.totalorder %s138, %s139
      %p148 = scmp.eq.s32.totalorder %s23, 0
      %p149 = por %p147, %p148
      %p150 = scmp.ne.s32.totalorder %s138, %s139
      %p151 = scmp.eq.s32.totalorder %s24, 1
      %p152 = por %p150, %p151
      %p154 = scmp.ne.s32.totalorder %s139, %s153
      %p155 = scmp.eq.s32.totalorder %s24, 0
      %p156 = por %p154, %p155
      %s158 = sadd.s32 %s157, 1
      %p161 = scmp.eq.s32.totalorder %s18, 1
      %p162 = scmp.ne.s32.totalorder %s157, %s159
      %p163 = scmp.eq.s32.totalorder %s18, 0
      %p164 = por %p162, %p163
      %p165 = scmp.ne.s32.totalorder %s157, %s159
      %p166 = scmp.eq.s32.totalorder %s23, 1
      %p167 = por %p165, %p166
      %p168 = scmp.ne.s32.totalorder %s159, %s160
      %p169 = scmp.eq.s32.totalorder %s23, 0
      %p170 = por %p168, %p169
      %p171 = scmp.ne.s32.totalorder %s159, %s160
      %p172 = scmp.eq.s32.totalorder %s24, 1
      %p173 = por %p171, %p172
      %p175 = scmp.ne.s32.totalorder %s160, %s174
      %p176 = scmp.eq.s32.totalorder %s24, 0
      %p177 = por %p175, %p176
      %s178 = ssub.s32 %s18, %s25
      %p179 = scmp.eq.s32.totalorder %s178, 0
      %s181 = sadd.s32 %s180, 1
      %s182 = scalar_select %p179, %s180, %s181
      %p185 = pneg %p179
      %p186 = scmp.eq.s32.totalorder %s18, 1
      %p187 = por %p185, %p186
      %p188 = scmp.ne.s32.totalorder %s180, %s183
      %p189 = scmp.eq.s32.totalorder %s18, 0
      %p190 = por %p188, %p189
      %p191 = scmp.ne.s32.totalorder %s180, %s183
      %p192 = scmp.eq.s32.totalorder %s23, 1
      %p193 = por %p191, %p192
      %p194 = scmp.ne.s32.totalorder %s183, %s184
      %p195 = scmp.eq.s32.totalorder %s23, 0
      %p196 = por %p194, %p195
      %p197 = scmp.ne.s32.totalorder %s183, %s184
      %p198 = scmp.eq.s32.totalorder %s24, 1
      %p199 = por %p197, %p198
      %p201 = scmp.ne.s32.totalorder %s184, %s200
      %p202 = scmp.eq.s32.totalorder %s24, 0
      %p203 = por %p201, %p202
      %p204 = scmp.le.s32.totalorder 1, %s18
      %p205 = scmp.lt.s32.totalorder %s18, 3
      %p206 = pnand %p204, %p205
      %p207 = pneg %p206
      // Predicated region
      $region9: #{tpu_custom_call.1} parent=5 // pred_check
        _
      $region10: #{tpu_custom_call.1} parent=5 // pred_check_branch
        %209 = sbr.rel (%p206) target = $region12
      $region11: #{tpu_custom_call.1} parent=5 // pred_region
        %s210 = ssub.s32 %s18, 1
        // Predicated region
        $region13: #{tpu_custom_call.1} parent=11 // pred_check
          %p211 = pneg %p65
        $region14: #{tpu_custom_call.1} parent=11 // pred_check_branch
          %213 = sbr.rel (%p211) target = $region16
        $region15: #{tpu_custom_call.1} parent=11 // pred_region
          %s215 = ssub.s32 3072, 3072
          %216 = vsyncadd [#allocation4], %s215
          %s217 = sshll.u32 [#allocation3], 4
          %s218 = int_to_ptr.vmem [resolvable:$true] %s217
          %223 = dma.hbm_to_vmem [thread:$0]  %s1, 3072, %s218, [#allocation4], 128, 128, 8
        $region16: #{tpu_custom_call.1} parent=11 // pred_fallthru
          _
        // Predicated region
        $region17: #{tpu_custom_call.1} parent=11 // pred_check
          %p224 = pneg %p86
        $region18: #{tpu_custom_call.1} parent=11 // pred_check_branch
          %226 = sbr.rel (%p224) target = $region20
        $region19: #{tpu_custom_call.1} parent=11 // pred_region
          _
        $region20: #{tpu_custom_call.1} parent=11 // pred_fallthru
          _
        // Predicated region
        $region21: #{tpu_custom_call.1} parent=11 // pred_check
          %p227 = pneg %p107
        $region22: #{tpu_custom_call.1} parent=11 // pred_check_branch
          %229 = sbr.rel (%p227) target = $region24
        $region23: #{tpu_custom_call.1} parent=11 // pred_region
          %s231 = ssub.s32 6144, 6144
          %232 = vsyncadd [#allocation7], %s231
          %s233 = sshll.u32 [#allocation6], 4
          %s234 = int_to_ptr.vmem [resolvable:$true] %s233
          %239 = dma.hbm_to_vmem [thread:$0]  %s3, 6144, %s234, [#allocation7], 128, 128, 8
        $region24: #{tpu_custom_call.1} parent=11 // pred_fallthru
          _
        // Predicated region
        $region25: #{tpu_custom_call.1} parent=11 // pred_check
          %p240 = pneg %p128
        $region26: #{tpu_custom_call.1} parent=11 // pred_check_branch
          %242 = sbr.rel (%p240) target = $region28
        $region27: #{tpu_custom_call.1} parent=11 // pred_region
          _
        $region28: #{tpu_custom_call.1} parent=11 // pred_fallthru
          _
        // Predicated region
        $region29: #{tpu_custom_call.1} parent=11 // pred_check
          %p243 = pneg %p149
        $region30: #{tpu_custom_call.1} parent=11 // pred_check_branch
          %245 = sbr.rel (%p243) target = $region32
        $region31: #{tpu_custom_call.1} parent=11 // pred_region
          _
        $region32: #{tpu_custom_call.1} parent=11 // pred_fallthru
          _
        // Predicated region
        $region33: #{tpu_custom_call.1} parent=11 // pred_check
          %p246 = pneg %p170
        $region34: #{tpu_custom_call.1} parent=11 // pred_check_branch
          %248 = sbr.rel (%p246) target = $region36
        $region35: #{tpu_custom_call.1} parent=11 // pred_region
          _
        $region36: #{tpu_custom_call.1} parent=11 // pred_fallthru
          _
      $region12: #{tpu_custom_call.1} parent=5 // pred_fallthru
        _
      %p249 = scmp.lt.s32.totalorder %s18, 2
      // Predicated region
      $region37: #{tpu_custom_call.1} parent=5 // pred_check
        %p250 = pneg %p249
      $region38: #{tpu_custom_call.1} parent=5 // pred_check_branch
        %252 = sbr.rel (%p250) target = $region40
      $region39: #{tpu_custom_call.1} parent=5 // pred_region
        // Predicated region
        $region41: #{tpu_custom_call.1} parent=39 // pred_check
          %p253 = pneg %p38
        $region42: #{tpu_custom_call.1} parent=39 // pred_check_branch
          %255 = sbr.rel (%p253) target = $region44
        $region43: #{tpu_custom_call.1} parent=39 // pred_region
          %p256 = scmp.lt.s32.totalorder %s18, 1
          %s257 = scalar_select %p256, %s18, 1
          %s258 = smul.addr %s257, 3
          %s259 = smul.addr %s258, 8
          %s260 = scalar_lea.vmem %s0, %s259
        $region44: #{tpu_custom_call.1} parent=39 // pred_fallthru
          _
      $region40: #{tpu_custom_call.1} parent=5 // pred_fallthru
        _
      %p261 = scmp.le.s32.totalorder 1, %s18
      %p262 = scmp.lt.s32.totalorder %s18, 3
      %p263 = pnand %p261, %p262
      %p264 = pneg %p263
      // Predicated region
      $region45: #{tpu_custom_call.1} parent=5 // pred_check
        _
      $region46: #{tpu_custom_call.1} parent=5 // pred_check_branch
        %266 = sbr.rel (%p263) target = $region48
      $region47: #{tpu_custom_call.1} parent=5 // pred_region
        %s267 = ssub.s32 %s18, 1
        // Predicated region
        $region49: #{tpu_custom_call.1} parent=47 // pred_check
          %p268 = pneg %p65
        $region50: #{tpu_custom_call.1} parent=47 // pred_check_branch
          %270 = sbr.rel (%p268) target = $region52
        $region51: #{tpu_custom_call.1} parent=47 // pred_region
          %271 = dma.done [#allocation4], 3072
        $region52: #{tpu_custom_call.1} parent=47 // pred_fallthru
          _
        // Predicated region
        $region53: #{tpu_custom_call.1} parent=47 // pred_check
          %p272 = pneg %p107
        $region54: #{tpu_custom_call.1} parent=47 // pred_check_branch
          %274 = sbr.rel (%p272) target = $region56
        $region55: #{tpu_custom_call.1} parent=47 // pred_region
          %275 = dma.done [#allocation7], 6144
        $region56: #{tpu_custom_call.1} parent=47 // pred_fallthru
          _
        %p276 = scmp.lt.s32.totalorder %s23, 1
        %s277 = scalar_select %p276, %s23, 1
        %s278 = smul.addr %s277, 3
        %s279 = smul.addr %s278, 8
        %s280 = scalar_lea.vmem %s0, %s279
        %p281 = pneg %p44
        %p282 = pneg %p41
        %p283 = pneg %p65
        %p284 = pneg %p62
        %p285 = pneg %p86
        %p286 = pneg %p83
        %p287 = pneg %p107
        %p288 = pneg %p104
        %p289 = pneg %p128
        %p290 = pneg %p125
        %p291 = pneg %p149
        %p292 = pneg %p146
        %p293 = pneg %p170
        %p294 = pneg %p167
        %p295 = pneg %p196
        %p296 = pneg %p193
        %s297 = sand.u32 %s183, 1
        %s298 = scalar_lea.sflag [#allocation5], %s297
        %s299 = sand.u32 %s183, 1
        %s300 = smul.addr %s299, 16
        %s301 = scalar_lea.vmem [#allocation8], %s300
        %p302 = scmp.lt.s32.totalorder %s23, 1
        %s303 = scalar_select %p302, %s23, 1
        %s304 = smul.addr %s303, 3
        %s305 = smul.addr %s304, 8
        %s306 = scalar_lea.vmem %s0, %s305
        %v307 = vld [vmem:[%s4] sm:$0x1]
        %v309 = vlaneseq
        %v310 = vshrl.u32 %v309, 7
        %v311 = vsub.s32 0, %v310
        %v312 = vrot.slane %v307, %v311
        %v314 = vld [vmem:[%s306] sm:$0xff]
        %v315 = vld [vmem:[%s306 + $0x8] sm:$0xff]
        %v316 = vld [vmem:[#allocation3] sm:$0xff]
        %v317 = vld [vmem:[#allocation3 + $0x8] sm:$0xff]
        %v318 = vld [vmem:[#allocation3 + $0x10] sm:$0xff]
        %v319 = vld [vmem:[#allocation3 + $0x18] sm:$0xff]
        %v320 = vld [vmem:[#allocation3 + $0x20] sm:$0xff]
        %v321 = vld [vmem:[#allocation3 + $0x28] sm:$0xff]
        %v322 = vld [vmem:[#allocation3 + $0x30] sm:$0xff]
        %v323 = vld [vmem:[#allocation3 + $0x38] sm:$0xff]
        %vm324 = vcmask 523264
        %v326 = vsel %vm324, %v314, 0
        %v329 = vsel %vm324, %v315, 0
        %331 = vmatprep.subr.mxu0 0.0
        %332 = vmatpush1.msra.mxu0 0.0
        %333 = vmatprep.subr.mxu0 0.0
        %334 = vmatpush1.msra.mxu0 0.0
        %335 = vmatprep.subr.mxu0 0.0
        %336 = vmatpush1.msra.mxu0 0.0
        %337 = vmatprep.subr.mxu0 0.0
        %338 = vmatpush1.msra.mxu0 0.0
        %339 = vmatprep.subr.mxu0 0.0
        %340 = vmatpush1.msra.mxu0 0.0
        %341 = vmatprep.subr.mxu0 0.0
        %342 = vmatpush1.msra.mxu0 0.0
        %343 = vmatprep.subr.mxu0 0.0
        %344 = vmatpush1.msra.mxu0 0.0
        %345 = vmatprep.subr.mxu0 0.0
        %346 = vmatpush1.msra.mxu0 0.0
        %347 = vmatprep.subr.mxu0 0.0
        %v348 = vand.u32 %v323, 4294901760
        %349 = vmatpush1.msra.mxu0 %v348
        %350 = vmatprep.subr.mxu0 0.0
        %v351 = vand.u32 %v322, 4294901760
        %352 = vmatpush1.msra.mxu0 %v351
        %353 = vmatprep.subr.mxu0 0.0
        %v354 = vand.u32 %v321, 4294901760
        %355 = vmatpush1.msra.mxu0 %v354
        %356 = vmatprep.subr.mxu0 0.0
        %v357 = vand.u32 %v320, 4294901760
        %358 = vmatpush1.msra.mxu0 %v357
        %359 = vmatprep.subr.mxu0 0.0
        %v360 = vand.u32 %v319, 4294901760
        %361 = vmatpush1.msra.mxu0 %v360
        %362 = vmatprep.subr.mxu0 0.0
        %v363 = vand.u32 %v318, 4294901760
        %364 = vmatpush1.msra.mxu0 %v363
        %365 = vmatprep.subr.mxu0 0.0
        %v366 = vand.u32 %v317, 4294901760
        %367 = vmatpush1.msra.mxu0 %v366
        %368 = vmatprep.subr.mxu0 0.0
        %v369 = vand.u32 %v316, 4294901760
        %370 = vmatpush1.msra.mxu0 %v369
        %371 = vmatprep.subr.mxu0 0.0
        %372 = vmatpush2.msra.mxu0 0.0
        %373 = vmatprep.subr.mxu0 0.0
        %374 = vmatpush2.msra.mxu0 0.0
        %375 = vmatprep.subr.mxu0 0.0
        %376 = vmatpush2.msra.mxu0 0.0
        %377 = vmatprep.subr.mxu0 0.0
        %378 = vmatpush2.msra.mxu0 0.0
        %379 = vmatprep.subr.mxu0 0.0
        %380 = vmatpush2.msra.mxu0 0.0
        %381 = vmatprep.subr.mxu0 0.0
        %382 = vmatpush2.msra.mxu0 0.0
        %383 = vmatprep.subr.mxu0 0.0
        %384 = vmatpush2.msra.mxu0 0.0
        %385 = vmatprep.subr.mxu0 0.0
        %386 = vmatpush2.msra.mxu0 0.0
        %387 = vmatprep.subr.mxu0 0.0
        %388 = vmatpush2.msra.mxu0 0.0
        %389 = vmatprep.subr.mxu0 0.0
        %390 = vmatpush2.msra.mxu0 0.0
        %391 = vmatprep.subr.mxu0 0.0
        %392 = vmatpush2.msra.mxu0 0.0
        %393 = vmatprep.subr.mxu0 0.0
        %394 = vmatpush2.msra.mxu0 0.0
        %395 = vmatprep.subr.mxu0 0.0
        %396 = vmatpush2.msra.mxu0 0.0
        %397 = vmatprep.subr.mxu0 0.0
        %398 = vmatpush2.msra.mxu0 0.0
        %399 = vmatprep.subr.mxu0 0.0
        %400 = vmatpush2.msra.mxu0 0.0
        %401 = vmatprep.subr.mxu0 0.0
        %402 = vmatpush2.msra.mxu0 0.0
        %403 = vmatprep.mubr.f32.mxu0 0.0
        %v404 = vand.u32 %v326, 4294901760
        %v405 = vsub.f32 %v326, %v404
        %v406 = vand.u32 %v405, 4294901760
        %v407 = vsub.f32 %v405, %v406
        %v408 = vand.u32 %v407, 4294901760
        %409 = vmatmul.mubr.f32.gmra.mxu0 %v408
        %v410 = vpop.f32.mrf.mxu0
        %v411 = vadd.f32 0.0, %v410
        %v412 = vpop.f32.mrf.mxu0
        %413 = vmatprep.mubr.f32.mxu0 0.0
        %v414 = vand.u32 %v329, 4294901760
        %v415 = vsub.f32 %v329, %v414
        %v416 = vand.u32 %v415, 4294901760
        %v417 = vsub.f32 %v415, %v416
        %v418 = vand.u32 %v417, 4294901760
        %419 = vmatmul.mubr.f32.gmra.mxu0 %v418
        %v420 = vpop.f32.mrf.mxu0
        %v421 = vadd.f32 0.0, %v420
        %v422 = vpop.f32.mrf.mxu0
        %423 = vdwg.mxu0
        %424 = vmatprep.subr.mxu0 0.0
        %425 = vmatpush1.msra.mxu0 0.0
        %426 = vmatprep.subr.mxu0 0.0
        %427 = vmatpush1.msra.mxu0 0.0
        %428 = vmatprep.subr.mxu0 0.0
        %429 = vmatpush1.msra.mxu0 0.0
        %430 = vmatprep.subr.mxu0 0.0
        %431 = vmatpush1.msra.mxu0 0.0
        %432 = vmatprep.subr.mxu0 0.0
        %433 = vmatpush1.msra.mxu0 0.0
        %434 = vmatprep.subr.mxu0 0.0
        %435 = vmatpush1.msra.mxu0 0.0
        %436 = vmatprep.subr.mxu0 0.0
        %437 = vmatpush1.msra.mxu0 0.0
        %438 = vmatprep.subr.mxu0 0.0
        %439 = vmatpush1.msra.mxu0 0.0
        %440 = vmatprep.subr.mxu0 0.0
        %v441 = vand.u32 %v323, 4294901760
        %v442 = vsub.f32 %v323, %v441
        %v443 = vand.u32 %v442, 4294901760
        %v444 = vsub.f32 %v442, %v443
        %v445 = vand.u32 %v444, 4294901760
        %446 = vmatpush1.msra.mxu0 %v445
        %447 = vmatprep.subr.mxu0 0.0
        %v448 = vand.u32 %v322, 4294901760
        %v449 = vsub.f32 %v322, %v448
        %v450 = vand.u32 %v449, 4294901760
        %v451 = vsub.f32 %v449, %v450
        %v452 = vand.u32 %v451, 4294901760
        %453 = vmatpush1.msra.mxu0 %v452
        %454 = vmatprep.subr.mxu0 0.0
        %v455 = vand.u32 %v321, 4294901760
        %v456 = vsub.f32 %v321, %v455
        %v457 = vand.u32 %v456, 4294901760
        %v458 = vsub.f32 %v456, %v457
        %v459 = vand.u32 %v458, 4294901760
        %460 = vmatpush1.msra.mxu0 %v459
        %461 = vmatprep.subr.mxu0 0.0
        %v462 = vand.u32 %v320, 4294901760
        %v463 = vsub.f32 %v320, %v462
        %v464 = vand.u32 %v463, 4294901760
        %v465 = vsub.f32 %v463, %v464
        %v466 = vand.u32 %v465, 4294901760
        %467 = vmatpush1.msra.mxu0 %v466
        %468 = vmatprep.subr.mxu0 0.0
        %v469 = vand.u32 %v319, 4294901760
        %v470 = vsub.f32 %v319, %v469
        %v471 = vand.u32 %v470, 4294901760
        %v472 = vsub.f32 %v470, %v471
        %v473 = vand.u32 %v472, 4294901760
        %474 = vmatpush1.msra.mxu0 %v473
        %475 = vmatprep.subr.mxu0 0.0
        %v476 = vand.u32 %v318, 4294901760
        %v477 = vsub.f32 %v318, %v476
        %v478 = vand.u32 %v477, 4294901760
        %v479 = vsub.f32 %v477, %v478
        %v480 = vand.u32 %v479, 4294901760
        %481 = vmatpush1.msra.mxu0 %v480
        %482 = vmatprep.subr.mxu0 0.0
        %v483 = vand.u32 %v317, 4294901760
        %v484 = vsub.f32 %v317, %v483
        %v485 = vand.u32 %v484, 4294901760
        %v486 = vsub.f32 %v484, %v485
        %v487 = vand.u32 %v486, 4294901760
        %488 = vmatpush1.msra.mxu0 %v487
        %489 = vmatprep.subr.mxu0 0.0
        %v490 = vand.u32 %v316, 4294901760
        %v491 = vsub.f32 %v316, %v490
        %v492 = vand.u32 %v491, 4294901760
        %v493 = vsub.f32 %v491, %v492
        %v494 = vand.u32 %v493, 4294901760
        %495 = vmatpush1.msra.mxu0 %v494
        %496 = vmatprep.subr.mxu0 0.0
        %497 = vmatpush2.msra.mxu0 0.0
        %498 = vmatprep.subr.mxu0 0.0
        %499 = vmatpush2.msra.mxu0 0.0
        %500 = vmatprep.subr.mxu0 0.0
        %501 = vmatpush2.msra.mxu0 0.0
        %502 = vmatprep.subr.mxu0 0.0
        %503 = vmatpush2.msra.mxu0 0.0
        %504 = vmatprep.subr.mxu0 0.0
        %505 = vmatpush2.msra.mxu0 0.0
        %506 = vmatprep.subr.mxu0 0.0
        %507 = vmatpush2.msra.mxu0 0.0
        %508 = vmatprep.subr.mxu0 0.0
        %509 = vmatpush2.msra.mxu0 0.0
        %510 = vmatprep.subr.mxu0 0.0
        %511 = vmatpush2.msra.mxu0 0.0
        %512 = vmatprep.subr.mxu0 0.0
        %513 = vmatpush2.msra.mxu0 0.0
        %514 = vmatprep.subr.mxu0 0.0
        %515 = vmatpush2.msra.mxu0 0.0
        %516 = vmatprep.subr.mxu0 0.0
        %517 = vmatpush2.msra.mxu0 0.0
        %518 = vmatprep.subr.mxu0 0.0
        %519 = vmatpush2.msra.mxu0 0.0
        %520 = vmatprep.subr.mxu0 0.0
        %521 = vmatpush2.msra.mxu0 0.0
        %522 = vmatprep.subr.mxu0 0.0
        %523 = vmatpush2.msra.mxu0 0.0
        %524 = vmatprep.subr.mxu0 0.0
        %525 = vmatpush2.msra.mxu0 0.0
        %526 = vmatprep.subr.mxu0 0.0
        %527 = vmatpush2.msra.mxu0 0.0
        %528 = vmatprep.mubr.f32.mxu0 0.0
        %v529 = vand.u32 %v326, 4294901760
        %530 = vmatmul.mubr.f32.gmra.mxu0 %v529
        %v531 = vpop.f32.mrf.mxu0
        %v532 = vadd.f32 %v411, %v531
        %v533 = vpop.f32.mrf.mxu0
        %534 = vmatprep.mubr.f32.mxu0 0.0
        %v535 = vand.u32 %v329, 4294901760
        %536 = vmatmul.mubr.f32.gmra.mxu0 %v535
        %v537 = vpop.f32.mrf.mxu0
        %v538 = vadd.f32 %v421, %v537
        %v539 = vpop.f32.mrf.mxu0
        %540 = vdwg.mxu0
        %541 = vmatprep.subr.mxu0 0.0
        %542 = vmatpush1.msra.mxu0 0.0
        %543 = vmatprep.subr.mxu0 0.0
        %544 = vmatpush1.msra.mxu0 0.0
        %545 = vmatprep.subr.mxu0 0.0
        %546 = vmatpush1.msra.mxu0 0.0
        %547 = vmatprep.subr.mxu0 0.0
        %548 = vmatpush1.msra.mxu0 0.0
        %549 = vmatprep.subr.mxu0 0.0
        %550 = vmatpush1.msra.mxu0 0.0
        %551 = vmatprep.subr.mxu0 0.0
        %552 = vmatpush1.msra.mxu0 0.0
        %553 = vmatprep.subr.mxu0 0.0
        %554 = vmatpush1.msra.mxu0 0.0
        %555 = vmatprep.subr.mxu0 0.0
        %556 = vmatpush1.msra.mxu0 0.0
        %557 = vmatprep.subr.mxu0 0.0
        %v558 = vand.u32 %v323, 4294901760
        %v559 = vsub.f32 %v323, %v558
        %560 = vmatpush1.msra.mxu0 %v559
        %561 = vmatprep.subr.mxu0 0.0
        %v562 = vand.u32 %v322, 4294901760
        %v563 = vsub.f32 %v322, %v562
        %564 = vmatpush1.msra.mxu0 %v563
        %565 = vmatprep.subr.mxu0 0.0
        %v566 = vand.u32 %v321, 4294901760
        %v567 = vsub.f32 %v321, %v566
        %568 = vmatpush1.msra.mxu0 %v567
        %569 = vmatprep.subr.mxu0 0.0
        %v570 = vand.u32 %v320, 4294901760
        %v571 = vsub.f32 %v320, %v570
        %572 = vmatpush1.msra.mxu0 %v571
        %573 = vmatprep.subr.mxu0 0.0
        %v574 = vand.u32 %v319, 4294901760
        %v575 = vsub.f32 %v319, %v574
        %576 = vmatpush1.msra.mxu0 %v575
        %577 = vmatprep.subr.mxu0 0.0
        %v578 = vand.u32 %v318, 4294901760
        %v579 = vsub.f32 %v318, %v578
        %580 = vmatpush1.msra.mxu0 %v579
        %581 = vmatprep.subr.mxu0 0.0
        %v582 = vand.u32 %v317, 4294901760
        %v583 = vsub.f32 %v317, %v582
        %584 = vmatpush1.msra.mxu0 %v583
        %585 = vmatprep.subr.mxu0 0.0
        %v586 = vand.u32 %v316, 4294901760
        %v587 = vsub.f32 %v316, %v586
        %588 = vmatpush1.msra.mxu0 %v587
        %589 = vmatprep.subr.mxu0 0.0
        %590 = vmatpush2.msra.mxu0 0.0
        %591 = vmatprep.subr.mxu0 0.0
        %592 = vmatpush2.msra.mxu0 0.0
        %593 = vmatprep.subr.mxu0 0.0
        %594 = vmatpush2.msra.mxu0 0.0
        %595 = vmatprep.subr.mxu0 0.0
        %596 = vmatpush2.msra.mxu0 0.0
        %597 = vmatprep.subr.mxu0 0.0
        %598 = vmatpush2.msra.mxu0 0.0
        %599 = vmatprep.subr.mxu0 0.0
        %600 = vmatpush2.msra.mxu0 0.0
        %601 = vmatprep.subr.mxu0 0.0
        %602 = vmatpush2.msra.mxu0 0.0
        %603 = vmatprep.subr.mxu0 0.0
        %604 = vmatpush2.msra.mxu0 0.0
        %605 = vmatprep.subr.mxu0 0.0
        %606 = vmatpush2.msra.mxu0 0.0
        %607 = vmatprep.subr.mxu0 0.0
        %608 = vmatpush2.msra.mxu0 0.0
        %609 = vmatprep.subr.mxu0 0.0
        %610 = vmatpush2.msra.mxu0 0.0
        %611 = vmatprep.subr.mxu0 0.0
        %612 = vmatpush2.msra.mxu0 0.0
        %613 = vmatprep.subr.mxu0 0.0
        %614 = vmatpush2.msra.mxu0 0.0
        %615 = vmatprep.subr.mxu0 0.0
        %616 = vmatpush2.msra.mxu0 0.0
        %617 = vmatprep.subr.mxu0 0.0
        %618 = vmatpush2.msra.mxu0 0.0
        %619 = vmatprep.subr.mxu0 0.0
        %620 = vmatpush2.msra.mxu0 0.0
        %621 = vmatprep.mubr.f32.mxu0 0.0
        %v622 = vand.u32 %v326, 4294901760
        %v623 = vsub.f32 %v326, %v622
        %624 = vmatmul.mubr.f32.gmra.mxu0 %v623
        %v625 = vpop.f32.mrf.mxu0
        %v626 = vadd.f32 %v532, %v625
        %v627 = vpop.f32.mrf.mxu0
        %628 = vmatprep.mubr.f32.mxu0 0.0
        %v629 = vand.u32 %v329, 4294901760
        %v630 = vsub.f32 %v329, %v629
        %631 = vmatmul.mubr.f32.gmra.mxu0 %v630
        %v632 = vpop.f32.mrf.mxu0
        %v633 = vadd.f32 %v538, %v632
        %v634 = vpop.f32.mrf.mxu0
        %635 = vdwg.mxu0
        %636 = vmatprep.subr.mxu0 0.0
        %637 = vmatpush1.msra.mxu0 0.0
        %638 = vmatprep.subr.mxu0 0.0
        %639 = vmatpush1.msra.mxu0 0.0
        %640 = vmatprep.subr.mxu0 0.0
        %641 = vmatpush1.msra.mxu0 0.0
        %642 = vmatprep.subr.mxu0 0.0
        %643 = vmatpush1.msra.mxu0 0.0
        %644 = vmatprep.subr.mxu0 0.0
        %645 = vmatpush1.msra.mxu0 0.0
        %646 = vmatprep.subr.mxu0 0.0
        %647 = vmatpush1.msra.mxu0 0.0
        %648 = vmatprep.subr.mxu0 0.0
        %649 = vmatpush1.msra.mxu0 0.0
        %650 = vmatprep.subr.mxu0 0.0
        %651 = vmatpush1.msra.mxu0 0.0
        %652 = vmatprep.subr.mxu0 0.0
        %v653 = vand.u32 %v323, 4294901760
        %654 = vmatpush1.msra.mxu0 %v653
        %655 = vmatprep.subr.mxu0 0.0
        %v656 = vand.u32 %v322, 4294901760
        %657 = vmatpush1.msra.mxu0 %v656
        %658 = vmatprep.subr.mxu0 0.0
        %v659 = vand.u32 %v321, 4294901760
        %660 = vmatpush1.msra.mxu0 %v659
        %661 = vmatprep.subr.mxu0 0.0
        %v662 = vand.u32 %v320, 4294901760
        %663 = vmatpush1.msra.mxu0 %v662
        %664 = vmatprep.subr.mxu0 0.0
        %v665 = vand.u32 %v319, 4294901760
        %666 = vmatpush1.msra.mxu0 %v665
        %667 = vmatprep.subr.mxu0 0.0
        %v668 = vand.u32 %v318, 4294901760
        %669 = vmatpush1.msra.mxu0 %v668
        %670 = vmatprep.subr.mxu0 0.0
        %v671 = vand.u32 %v317, 4294901760
        %672 = vmatpush1.msra.mxu0 %v671
        %673 = vmatprep.subr.mxu0 0.0
        %v674 = vand.u32 %v316, 4294901760
        %675 = vmatpush1.msra.mxu0 %v674
        %676 = vmatprep.subr.mxu0 0.0
        %677 = vmatpush2.msra.mxu0 0.0
        %678 = vmatprep.subr.mxu0 0.0
        %679 = vmatpush2.msra.mxu0 0.0
        %680 = vmatprep.subr.mxu0 0.0
        %681 = vmatpush2.msra.mxu0 0.0
        %682 = vmatprep.subr.mxu0 0.0
        %683 = vmatpush2.msra.mxu0 0.0
        %684 = vmatprep.subr.mxu0 0.0
        %685 = vmatpush2.msra.mxu0 0.0
        %686 = vmatprep.subr.mxu0 0.0
        %687 = vmatpush2.msra.mxu0 0.0
        %688 = vmatprep.subr.mxu0 0.0
        %689 = vmatpush2.msra.mxu0 0.0
        %690 = vmatprep.subr.mxu0 0.0
        %691 = vmatpush2.msra.mxu0 0.0
        %692 = vmatprep.subr.mxu0 0.0
        %693 = vmatpush2.msra.mxu0 0.0
        %694 = vmatprep.subr.mxu0 0.0
        %695 = vmatpush2.msra.mxu0 0.0
        %696 = vmatprep.subr.mxu0 0.0
        %697 = vmatpush2.msra.mxu0 0.0
        %698 = vmatprep.subr.mxu0 0.0
        %699 = vmatpush2.msra.mxu0 0.0
        %700 = vmatprep.subr.mxu0 0.0
        %701 = vmatpush2.msra.mxu0 0.0
        %702 = vmatprep.subr.mxu0 0.0
        %703 = vmatpush2.msra.mxu0 0.0
        %704 = vmatprep.subr.mxu0 0.0
        %705 = vmatpush2.msra.mxu0 0.0
        %706 = vmatprep.subr.mxu0 0.0
        %707 = vmatpush2.msra.mxu0 0.0
        %708 = vmatprep.mubr.f32.mxu0 0.0
        %v709 = vand.u32 %v326, 4294901760
        %v710 = vsub.f32 %v326, %v709
        %v711 = vand.u32 %v710, 4294901760
        %712 = vmatmul.mubr.f32.gmra.mxu0 %v711
        %v713 = vpop.f32.mrf.mxu0
        %v714 = vadd.f32 %v626, %v713
        %v715 = vpop.f32.mrf.mxu0
        %716 = vmatprep.mubr.f32.mxu0 0.0
        %v717 = vand.u32 %v329, 4294901760
        %v718 = vsub.f32 %v329, %v717
        %v719 = vand.u32 %v718, 4294901760
        %720 = vmatmul.mubr.f32.gmra.mxu0 %v719
        %v721 = vpop.f32.mrf.mxu0
        %v722 = vadd.f32 %v633, %v721
        %v723 = vpop.f32.mrf.mxu0
        %724 = vdwg.mxu0
        %725 = vmatprep.subr.mxu0 0.0
        %726 = vmatpush1.msra.mxu0 0.0
        %727 = vmatprep.subr.mxu0 0.0
        %728 = vmatpush1.msra.mxu0 0.0
        %729 = vmatprep.subr.mxu0 0.0
        %730 = vmatpush1.msra.mxu0 0.0
        %731 = vmatprep.subr.mxu0 0.0
        %732 = vmatpush1.msra.mxu0 0.0
        %733 = vmatprep.subr.mxu0 0.0
        %734 = vmatpush1.msra.mxu0 0.0
        %735 = vmatprep.subr.mxu0 0.0
        %736 = vmatpush1.msra.mxu0 0.0
        %737 = vmatprep.subr.mxu0 0.0
        %738 = vmatpush1.msra.mxu0 0.0
        %739 = vmatprep.subr.mxu0 0.0
        %740 = vmatpush1.msra.mxu0 0.0
        %741 = vmatprep.subr.mxu0 0.0
        %v742 = vand.u32 %v323, 4294901760
        %v743 = vsub.f32 %v323, %v742
        %v744 = vand.u32 %v743, 4294901760
        %745 = vmatpush1.msra.mxu0 %v744
        %746 = vmatprep.subr.mxu0 0.0
        %v747 = vand.u32 %v322, 4294901760
        %v748 = vsub.f32 %v322, %v747
        %v749 = vand.u32 %v748, 4294901760
        %750 = vmatpush1.msra.mxu0 %v749
        %751 = vmatprep.subr.mxu0 0.0
        %v752 = vand.u32 %v321, 4294901760
        %v753 = vsub.f32 %v321, %v752
        %v754 = vand.u32 %v753, 4294901760
        %755 = vmatpush1.msra.mxu0 %v754
        %756 = vmatprep.subr.mxu0 0.0
        %v757 = vand.u32 %v320, 4294901760
        %v758 = vsub.f32 %v320, %v757
        %v759 = vand.u32 %v758, 4294901760
        %760 = vmatpush1.msra.mxu0 %v759
        %761 = vmatprep.subr.mxu0 0.0
        %v762 = vand.u32 %v319, 4294901760
        %v763 = vsub.f32 %v319, %v762
        %v764 = vand.u32 %v763, 4294901760
        %765 = vmatpush1.msra.mxu0 %v764
        %766 = vmatprep.subr.mxu0 0.0
        %v767 = vand.u32 %v318, 4294901760
        %v768 = vsub.f32 %v318, %v767
        %v769 = vand.u32 %v768, 4294901760
        %770 = vmatpush1.msra.mxu0 %v769
        %771 = vmatprep.subr.mxu0 0.0
        %v772 = vand.u32 %v317, 4294901760
        %v773 = vsub.f32 %v317, %v772
        %v774 = vand.u32 %v773, 4294901760
        %775 = vmatpush1.msra.mxu0 %v774
        %776 = vmatprep.subr.mxu0 0.0
        %v777 = vand.u32 %v316, 4294901760
        %v778 = vsub.f32 %v316, %v777
        %v779 = vand.u32 %v778, 4294901760
        %780 = vmatpush1.msra.mxu0 %v779
        %781 = vmatprep.subr.mxu0 0.0
        %782 = vmatpush2.msra.mxu0 0.0
        %783 = vmatprep.subr.mxu0 0.0
        %784 = vmatpush2.msra.mxu0 0.0
        %785 = vmatprep.subr.mxu0 0.0
        %786 = vmatpush2.msra.mxu0 0.0
        %787 = vmatprep.subr.mxu0 0.0
        %788 = vmatpush2.msra.mxu0 0.0
        %789 = vmatprep.subr.mxu0 0.0
        %790 = vmatpush2.msra.mxu0 0.0
        %791 = vmatprep.subr.mxu0 0.0
        %792 = vmatpush2.msra.mxu0 0.0
        %793 = vmatprep.subr.mxu0 0.0
        %794 = vmatpush2.msra.mxu0 0.0
        %795 = vmatprep.subr.mxu0 0.0
        %796 = vmatpush2.msra.mxu0 0.0
        %797 = vmatprep.subr.mxu0 0.0
        %798 = vmatpush2.msra.mxu0 0.0
        %799 = vmatprep.subr.mxu0 0.0
        %800 = vmatpush2.msra.mxu0 0.0
        %801 = vmatprep.subr.mxu0 0.0
        %802 = vmatpush2.msra.mxu0 0.0
        %803 = vmatprep.subr.mxu0 0.0
        %804 = vmatpush2.msra.mxu0 0.0
        %805 = vmatprep.subr.mxu0 0.0
        %806 = vmatpush2.msra.mxu0 0.0
        %807 = vmatprep.subr.mxu0 0.0
        %808 = vmatpush2.msra.mxu0 0.0
        %809 = vmatprep.subr.mxu0 0.0
        %810 = vmatpush2.msra.mxu0 0.0
        %811 = vmatprep.subr.mxu0 0.0
        %812 = vmatpush2.msra.mxu0 0.0
        %813 = vmatprep.mubr.f32.mxu0 0.0
        %v814 = vand.u32 %v326, 4294901760
        %815 = vmatmul.mubr.f32.gmra.mxu0 %v814
        %v816 = vpop.f32.mrf.mxu0
        %v817 = vadd.f32 %v714, %v816
        %v818 = vpop.f32.mrf.mxu0
        %819 = vmatprep.mubr.f32.mxu0 0.0
        %v820 = vand.u32 %v329, 4294901760
        %821 = vmatmul.mubr.f32.gmra.mxu0 %v820
        %v822 = vpop.f32.mrf.mxu0
        %v823 = vadd.f32 %v722, %v822
        %v824 = vpop.f32.mrf.mxu0
        %825 = vdwg.mxu0
        %826 = vmatprep.subr.mxu0 0.0
        %827 = vmatpush1.msra.mxu0 0.0
        %828 = vmatprep.subr.mxu0 0.0
        %829 = vmatpush1.msra.mxu0 0.0
        %830 = vmatprep.subr.mxu0 0.0
        %831 = vmatpush1.msra.mxu0 0.0
        %832 = vmatprep.subr.mxu0 0.0
        %833 = vmatpush1.msra.mxu0 0.0
        %834 = vmatprep.subr.mxu0 0.0
        %835 = vmatpush1.msra.mxu0 0.0
        %836 = vmatprep.subr.mxu0 0.0
        %837 = vmatpush1.msra.mxu0 0.0
        %838 = vmatprep.subr.mxu0 0.0
        %839 = vmatpush1.msra.mxu0 0.0
        %840 = vmatprep.subr.mxu0 0.0
        %841 = vmatpush1.msra.mxu0 0.0
        %842 = vmatprep.subr.mxu0 0.0
        %v843 = vand.u32 %v323, 4294901760
        %844 = vmatpush1.msra.mxu0 %v843
        %845 = vmatprep.subr.mxu0 0.0
        %v846 = vand.u32 %v322, 4294901760
        %847 = vmatpush1.msra.mxu0 %v846
        %848 = vmatprep.subr.mxu0 0.0
        %v849 = vand.u32 %v321, 4294901760
        %850 = vmatpush1.msra.mxu0 %v849
        %851 = vmatprep.subr.mxu0 0.0
        %v852 = vand.u32 %v320, 4294901760
        %853 = vmatpush1.msra.mxu0 %v852
        %854 = vmatprep.subr.mxu0 0.0
        %v855 = vand.u32 %v319, 4294901760
        %856 = vmatpush1.msra.mxu0 %v855
        %857 = vmatprep.subr.mxu0 0.0
        %v858 = vand.u32 %v318, 4294901760
        %859 = vmatpush1.msra.mxu0 %v858
        %860 = vmatprep.subr.mxu0 0.0
        %v861 = vand.u32 %v317, 4294901760
        %862 = vmatpush1.msra.mxu0 %v861
        %863 = vmatprep.subr.mxu0 0.0
        %v864 = vand.u32 %v316, 4294901760
        %865 = vmatpush1.msra.mxu0 %v864
        %866 = vmatprep.subr.mxu0 0.0
        %867 = vmatpush2.msra.mxu0 0.0
        %868 = vmatprep.subr.mxu0 0.0
        %869 = vmatpush2.msra.mxu0 0.0
        %870 = vmatprep.subr.mxu0 0.0
        %871 = vmatpush2.msra.mxu0 0.0
        %872 = vmatprep.subr.mxu0 0.0
        %873 = vmatpush2.msra.mxu0 0.0
        %874 = vmatprep.subr.mxu0 0.0
        %875 = vmatpush2.msra.mxu0 0.0
        %876 = vmatprep.subr.mxu0 0.0
        %877 = vmatpush2.msra.mxu0 0.0
        %878 = vmatprep.subr.mxu0 0.0
        %879 = vmatpush2.msra.mxu0 0.0
        %880 = vmatprep.subr.mxu0 0.0
        %881 = vmatpush2.msra.mxu0 0.0
        %882 = vmatprep.subr.mxu0 0.0
        %883 = vmatpush2.msra.mxu0 0.0
        %884 = vmatprep.subr.mxu0 0.0
        %885 = vmatpush2.msra.mxu0 0.0
        %886 = vmatprep.subr.mxu0 0.0
        %887 = vmatpush2.msra.mxu0 0.0
        %888 = vmatprep.subr.mxu0 0.0
        %889 = vmatpush2.msra.mxu0 0.0
        %890 = vmatprep.subr.mxu0 0.0
        %891 = vmatpush2.msra.mxu0 0.0
        %892 = vmatprep.subr.mxu0 0.0
        %893 = vmatpush2.msra.mxu0 0.0
        %894 = vmatprep.subr.mxu0 0.0
        %895 = vmatpush2.msra.mxu0 0.0
        %896 = vmatprep.subr.mxu0 0.0
        %897 = vmatpush2.msra.mxu0 0.0
        %898 = vmatprep.mubr.f32.mxu0 0.0
        %v899 = vand.u32 %v326, 4294901760
        %900 = vmatmul.mubr.f32.gmra.mxu0 %v899
        %v901 = vpop.f32.mrf.mxu0
        %v902 = vadd.f32 %v817, %v901
        %v903 = vpop.f32.mrf.mxu0
        %904 = vmatprep.mubr.f32.mxu0 0.0
        %v905 = vand.u32 %v329, 4294901760
        %906 = vmatmul.mubr.f32.gmra.mxu0 %v905
        %v907 = vpop.f32.mrf.mxu0
        %v908 = vadd.f32 %v823, %v907
        %v909 = vpop.f32.mrf.mxu0
        %910 = vdwg.mxu0
        %v911 = vadd.f32 %v312, %v902
        %v912 = vadd.f32 %v312, %v908
        %v913 = vld [vmem:[%s306 + $0x1] sm:$0xff]
        %v914 = vld [vmem:[%s306 + $0x9] sm:$0xff]
        %s915 = scalar_lea.vmem [#allocation3], 64
        %v916 = vld [vmem:[%s915] sm:$0xff]
        %v917 = vld [vmem:[%s915 + $0x8] sm:$0xff]
        %v918 = vld [vmem:[%s915 + $0x10] sm:$0xff]
        %v919 = vld [vmem:[%s915 + $0x18] sm:$0xff]
        %v920 = vld [vmem:[%s915 + $0x20] sm:$0xff]
        %v921 = vld [vmem:[%s915 + $0x28] sm:$0xff]
        %v922 = vld [vmem:[%s915 + $0x30] sm:$0xff]
        %v923 = vld [vmem:[%s915 + $0x38] sm:$0xff]
        %v925 = vsel %vm324, %v913, 0
        %v928 = vsel %vm324, %v914, 0
        %930 = vmatprep.subr.mxu0 0.0
        %931 = vmatpush1.msra.mxu0 0.0
        %932 = vmatprep.subr.mxu0 0.0
        %933 = vmatpush1.msra.mxu0 0.0
        %934 = vmatprep.subr.mxu0 0.0
        %935 = vmatpush1.msra.mxu0 0.0
        %936 = vmatprep.subr.mxu0 0.0
        %937 = vmatpush1.msra.mxu0 0.0
        %938 = vmatprep.subr.mxu0 0.0
        %939 = vmatpush1.msra.mxu0 0.0
        %940 = vmatprep.subr.mxu0 0.0
        %941 = vmatpush1.msra.mxu0 0.0
        %942 = vmatprep.subr.mxu0 0.0
        %943 = vmatpush1.msra.mxu0 0.0
        %944 = vmatprep.subr.mxu0 0.0
        %945 = vmatpush1.msra.mxu0 0.0
        %946 = vmatprep.subr.mxu0 0.0
        %v947 = vand.u32 %v923, 4294901760
        %948 = vmatpush1.msra.mxu0 %v947
        %949 = vmatprep.subr.mxu0 0.0
        %v950 = vand.u32 %v922, 4294901760
        %951 = vmatpush1.msra.mxu0 %v950
        %952 = vmatprep.subr.mxu0 0.0
        %v953 = vand.u32 %v921, 4294901760
        %954 = vmatpush1.msra.mxu0 %v953
        %955 = vmatprep.subr.mxu0 0.0
        %v956 = vand.u32 %v920, 4294901760
        %957 = vmatpush1.msra.mxu0 %v956
        %958 = vmatprep.subr.mxu0 0.0
        %v959 = vand.u32 %v919, 4294901760
        %960 = vmatpush1.msra.mxu0 %v959
        %961 = vmatprep.subr.mxu0 0.0
        %v962 = vand.u32 %v918, 4294901760
        %963 = vmatpush1.msra.mxu0 %v962
        %964 = vmatprep.subr.mxu0 0.0
        %v965 = vand.u32 %v917, 4294901760
        %966 = vmatpush1.msra.mxu0 %v965
        %967 = vmatprep.subr.mxu0 0.0
        %v968 = vand.u32 %v916, 4294901760
        %969 = vmatpush1.msra.mxu0 %v968
        %970 = vmatprep.subr.mxu0 0.0
        %971 = vmatpush2.msra.mxu0 0.0
        %972 = vmatprep.subr.mxu0 0.0
        %973 = vmatpush2.msra.mxu0 0.0
        %974 = vmatprep.subr.mxu0 0.0
        %975 = vmatpush2.msra.mxu0 0.0
        %976 = vmatprep.subr.mxu0 0.0
        %977 = vmatpush2.msra.mxu0 0.0
        %978 = vmatprep.subr.mxu0 0.0
        %979 = vmatpush2.msra.mxu0 0.0
        %980 = vmatprep.subr.mxu0 0.0
        %981 = vmatpush2.msra.mxu0 0.0
        %982 = vmatprep.subr.mxu0 0.0
        %983 = vmatpush2.msra.mxu0 0.0
        %984 = vmatprep.subr.mxu0 0.0
        %985 = vmatpush2.msra.mxu0 0.0
        %986 = vmatprep.subr.mxu0 0.0
        %987 = vmatpush2.msra.mxu0 0.0
        %988 = vmatprep.subr.mxu0 0.0
        %989 = vmatpush2.msra.mxu0 0.0
        %990 = vmatprep.subr.mxu0 0.0
        %991 = vmatpush2.msra.mxu0 0.0
        %992 = vmatprep.subr.mxu0 0.0
        %993 = vmatpush2.msra.mxu0 0.0
        %994 = vmatprep.subr.mxu0 0.0
        %995 = vmatpush2.msra.mxu0 0.0
        %996 = vmatprep.subr.mxu0 0.0
        %997 = vmatpush2.msra.mxu0 0.0
        %998 = vmatprep.subr.mxu0 0.0
        %999 = vmatpush2.msra.mxu0 0.0
        %1000 = vmatprep.subr.mxu0 0.0
        %1001 = vmatpush2.msra.mxu0 0.0
        %1002 = vmatprep.mubr.f32.mxu0 0.0
        %v1003 = vand.u32 %v925, 4294901760
        %v1004 = vsub.f32 %v925, %v1003
        %v1005 = vand.u32 %v1004, 4294901760
        %v1006 = vsub.f32 %v1004, %v1005
        %v1007 = vand.u32 %v1006, 4294901760
        %1008 = vmatmul.mubr.f32.gmra.mxu0 %v1007
        %v1009 = vpop.f32.mrf.mxu0
        %v1010 = vadd.f32 0.0, %v1009
        %v1011 = vpop.f32.mrf.mxu0
        %1012 = vmatprep.mubr.f32.mxu0 0.0
        %v1013 = vand.u32 %v928, 4294901760
        %v1014 = vsub.f32 %v928, %v1013
        %v1015 = vand.u32 %v1014, 4294901760
        %v1016 = vsub.f32 %v1014, %v1015
        %v1017 = vand.u32 %v1016, 4294901760
        %1018 = vmatmul.mubr.f32.gmra.mxu0 %v1017
        %v1019 = vpop.f32.mrf.mxu0
        %v1020 = vadd.f32 0.0, %v1019
        %v1021 = vpop.f32.mrf.mxu0
        %1022 = vdwg.mxu0
        %1023 = vmatprep.subr.mxu0 0.0
        %1024 = vmatpush1.msra.mxu0 0.0
        %1025 = vmatprep.subr.mxu0 0.0
        %1026 = vmatpush1.msra.mxu0 0.0
        %1027 = vmatprep.subr.mxu0 0.0
        %1028 = vmatpush1.msra.mxu0 0.0
        %1029 = vmatprep.subr.mxu0 0.0
        %1030 = vmatpush1.msra.mxu0 0.0
        %1031 = vmatprep.subr.mxu0 0.0
        %1032 = vmatpush1.msra.mxu0 0.0
        %1033 = vmatprep.subr.mxu0 0.0
        %1034 = vmatpush1.msra.mxu0 0.0
        %1035 = vmatprep.subr.mxu0 0.0
        %1036 = vmatpush1.msra.mxu0 0.0
        %1037 = vmatprep.subr.mxu0 0.0
        %1038 = vmatpush1.msra.mxu0 0.0
        %1039 = vmatprep.subr.mxu0 0.0
        %v1040 = vand.u32 %v923, 4294901760
        %v1041 = vsub.f32 %v923, %v1040
        %v1042 = vand.u32 %v1041, 4294901760
        %v1043 = vsub.f32 %v1041, %v1042
        %v1044 = vand.u32 %v1043, 4294901760
        %1045 = vmatpush1.msra.mxu0 %v1044
        %1046 = vmatprep.subr.mxu0 0.0
        %v1047 = vand.u32 %v922, 4294901760
        %v1048 = vsub.f32 %v922, %v1047
        %v1049 = vand.u32 %v1048, 4294901760
        %v1050 = vsub.f32 %v1048, %v1049
        %v1051 = vand.u32 %v1050, 4294901760
        %1052 = vmatpush1.msra.mxu0 %v1051
        %1053 = vmatprep.subr.mxu0 0.0
        %v1054 = vand.u32 %v921, 4294901760
        %v1055 = vsub.f32 %v921, %v1054
        %v1056 = vand.u32 %v1055, 4294901760
        %v1057 = vsub.f32 %v1055, %v1056
        %v1058 = vand.u32 %v1057, 4294901760
        %1059 = vmatpush1.msra.mxu0 %v1058
        %1060 = vmatprep.subr.mxu0 0.0
        %v1061 = vand.u32 %v920, 4294901760
        %v1062 = vsub.f32 %v920, %v1061
        %v1063 = vand.u32 %v1062, 4294901760
        %v1064 = vsub.f32 %v1062, %v1063
        %v1065 = vand.u32 %v1064, 4294901760
        %1066 = vmatpush1.msra.mxu0 %v1065
        %1067 = vmatprep.subr.mxu0 0.0
        %v1068 = vand.u32 %v919, 4294901760
        %v1069 = vsub.f32 %v919, %v1068
        %v1070 = vand.u32 %v1069, 4294901760
        %v1071 = vsub.f32 %v1069, %v1070
        %v1072 = vand.u32 %v1071, 4294901760
        %1073 = vmatpush1.msra.mxu0 %v1072
        %1074 = vmatprep.subr.mxu0 0.0
        %v1075 = vand.u32 %v918, 4294901760
        %v1076 = vsub.f32 %v918, %v1075
        %v1077 = vand.u32 %v1076, 4294901760
        %v1078 = vsub.f32 %v1076, %v1077
        %v1079 = vand.u32 %v1078, 4294901760
        %1080 = vmatpush1.msra.mxu0 %v1079
        %1081 = vmatprep.subr.mxu0 0.0
        %v1082 = vand.u32 %v917, 4294901760
        %v1083 = vsub.f32 %v917, %v1082
        %v1084 = vand.u32 %v1083, 4294901760
        %v1085 = vsub.f32 %v1083, %v1084
        %v1086 = vand.u32 %v1085, 4294901760
        %1087 = vmatpush1.msra.mxu0 %v1086
        %1088 = vmatprep.subr.mxu0 0.0
        %v1089 = vand.u32 %v916, 4294901760
        %v1090 = vsub.f32 %v916, %v1089
        %v1091 = vand.u32 %v1090, 4294901760
        %v1092 = vsub.f32 %v1090, %v1091
        %v1093 = vand.u32 %v1092, 4294901760
        %1094 = vmatpush1.msra.mxu0 %v1093
        %1095 = vmatprep.subr.mxu0 0.0
        %1096 = vmatpush2.msra.mxu0 0.0
        %1097 = vmatprep.subr.mxu0 0.0
        %1098 = vmatpush2.msra.mxu0 0.0
        %1099 = vmatprep.subr.mxu0 0.0
        %1100 = vmatpush2.msra.mxu0 0.0
        %1101 = vmatprep.subr.mxu0 0.0
        %1102 = vmatpush2.msra.mxu0 0.0
        %1103 = vmatprep.subr.mxu0 0.0
        %1104 = vmatpush2.msra.mxu0 0.0
        %1105 = vmatprep.subr.mxu0 0.0
        %1106 = vmatpush2.msra.mxu0 0.0
        %1107 = vmatprep.subr.mxu0 0.0
        %1108 = vmatpush2.msra.mxu0 0.0
        %1109 = vmatprep.subr.mxu0 0.0
        %1110 = vmatpush2.msra.mxu0 0.0
        %1111 = vmatprep.subr.mxu0 0.0
        %1112 = vmatpush2.msra.mxu0 0.0
        %1113 = vmatprep.subr.mxu0 0.0
        %1114 = vmatpush2.msra.mxu0 0.0
        %1115 = vmatprep.subr.mxu0 0.0
        %1116 = vmatpush2.msra.mxu0 0.0
        %1117 = vmatprep.subr.mxu0 0.0
        %1118 = vmatpush2.msra.mxu0 0.0
        %1119 = vmatprep.subr.mxu0 0.0
        %1120 = vmatpush2.msra.mxu0 0.0
        %1121 = vmatprep.subr.mxu0 0.0
        %1122 = vmatpush2.msra.mxu0 0.0
        %1123 = vmatprep.subr.mxu0 0.0
        %1124 = vmatpush2.msra.mxu0 0.0
        %1125 = vmatprep.subr.mxu0 0.0
        %1126 = vmatpush2.msra.mxu0 0.0
        %1127 = vmatprep.mubr.f32.mxu0 0.0
        %v1128 = vand.u32 %v925, 4294901760
        %1129 = vmatmul.mubr.f32.gmra.mxu0 %v1128
        %v1130 = vpop.f32.mrf.mxu0
        %v1131 = vadd.f32 %v1010, %v1130
        %v1132 = vpop.f32.mrf.mxu0
        %1133 = vmatprep.mubr.f32.mxu0 0.0
        %v1134 = vand.u32 %v928, 4294901760
        %1135 = vmatmul.mubr.f32.gmra.mxu0 %v1134
        %v1136 = vpop.f32.mrf.mxu0
        %v1137 = vadd.f32 %v1020, %v1136
        %v1138 = vpop.f32.mrf.mxu0
        %1139 = vdwg.mxu0
        %1140 = vmatprep.subr.mxu0 0.0
        %1141 = vmatpush1.msra.mxu0 0.0
        %1142 = vmatprep.subr.mxu0 0.0
        %1143 = vmatpush1.msra.mxu0 0.0
        %1144 = vmatprep.subr.mxu0 0.0
        %1145 = vmatpush1.msra.mxu0 0.0
        %1146 = vmatprep.subr.mxu0 0.0
        %1147 = vmatpush1.msra.mxu0 0.0
        %1148 = vmatprep.subr.mxu0 0.0
        %1149 = vmatpush1.msra.mxu0 0.0
        %1150 = vmatprep.subr.mxu0 0.0
        %1151 = vmatpush1.msra.mxu0 0.0
        %1152 = vmatprep.subr.mxu0 0.0
        %1153 = vmatpush1.msra.mxu0 0.0
        %1154 = vmatprep.subr.mxu0 0.0
        %1155 = vmatpush1.msra.mxu0 0.0
        %1156 = vmatprep.subr.mxu0 0.0
        %v1157 = vand.u32 %v923, 4294901760
        %v1158 = vsub.f32 %v923, %v1157
        %1159 = vmatpush1.msra.mxu0 %v1158
        %1160 = vmatprep.subr.mxu0 0.0
        %v1161 = vand.u32 %v922, 4294901760
        %v1162 = vsub.f32 %v922, %v1161
        %1163 = vmatpush1.msra.mxu0 %v1162
        %1164 = vmatprep.subr.mxu0 0.0
        %v1165 = vand.u32 %v921, 4294901760
        %v1166 = vsub.f32 %v921, %v1165
        %1167 = vmatpush1.msra.mxu0 %v1166
        %1168 = vmatprep.subr.mxu0 0.0
        %v1169 = vand.u32 %v920, 4294901760
        %v1170 = vsub.f32 %v920, %v1169
        %1171 = vmatpush1.msra.mxu0 %v1170
        %1172 = vmatprep.subr.mxu0 0.0
        %v1173 = vand.u32 %v919, 4294901760
        %v1174 = vsub.f32 %v919, %v1173
        %1175 = vmatpush1.msra.mxu0 %v1174
        %1176 = vmatprep.subr.mxu0 0.0
        %v1177 = vand.u32 %v918, 4294901760
        %v1178 = vsub.f32 %v918, %v1177
        %1179 = vmatpush1.msra.mxu0 %v1178
        %1180 = vmatprep.subr.mxu0 0.0
        %v1181 = vand.u32 %v917, 4294901760
        %v1182 = vsub.f32 %v917, %v1181
        %1183 = vmatpush1.msra.mxu0 %v1182
        %1184 = vmatprep.subr.mxu0 0.0
        %v1185 = vand.u32 %v916, 4294901760
        %v1186 = vsub.f32 %v916, %v1185
        %1187 = vmatpush1.msra.mxu0 %v1186
        %1188 = vmatprep.subr.mxu0 0.0
        %1189 = vmatpush2.msra.mxu0 0.0
        %1190 = vmatprep.subr.mxu0 0.0
        %1191 = vmatpush2.msra.mxu0 0.0
        %1192 = vmatprep.subr.mxu0 0.0
        %1193 = vmatpush2.msra.mxu0 0.0
        %1194 = vmatprep.subr.mxu0 0.0
        %1195 = vmatpush2.msra.mxu0 0.0
        %1196 = vmatprep.subr.mxu0 0.0
        %1197 = vmatpush2.msra.mxu0 0.0
        %1198 = vmatprep.subr.mxu0 0.0
        %1199 = vmatpush2.msra.mxu0 0.0
        %1200 = vmatprep.subr.mxu0 0.0
        %1201 = vmatpush2.msra.mxu0 0.0
        %1202 = vmatprep.subr.mxu0 0.0
        %1203 = vmatpush2.msra.mxu0 0.0
        %1204 = vmatprep.subr.mxu0 0.0
        %1205 = vmatpush2.msra.mxu0 0.0
        %1206 = vmatprep.subr.mxu0 0.0
        %1207 = vmatpush2.msra.mxu0 0.0
        %1208 = vmatprep.subr.mxu0 0.0
        %1209 = vmatpush2.msra.mxu0 0.0
        %1210 = vmatprep.subr.mxu0 0.0
        %1211 = vmatpush2.msra.mxu0 0.0
        %1212 = vmatprep.subr.mxu0 0.0
        %1213 = vmatpush2.msra.mxu0 0.0
        %1214 = vmatprep.subr.mxu0 0.0
        %1215 = vmatpush2.msra.mxu0 0.0
        %1216 = vmatprep.subr.mxu0 0.0
        %1217 = vmatpush2.msra.mxu0 0.0
        %1218 = vmatprep.subr.mxu0 0.0
        %1219 = vmatpush2.msra.mxu0 0.0
        %1220 = vmatprep.mubr.f32.mxu0 0.0
        %v1221 = vand.u32 %v925, 4294901760
        %v1222 = vsub.f32 %v925, %v1221
        %1223 = vmatmul.mubr.f32.gmra.mxu0 %v1222
        %v1224 = vpop.f32.mrf.mxu0
        %v1225 = vadd.f32 %v1131, %v1224
        %v1226 = vpop.f32.mrf.mxu0
        %1227 = vmatprep.mubr.f32.mxu0 0.0
        %v1228 = vand.u32 %v928, 4294901760
        %v1229 = vsub.f32 %v928, %v1228
        %1230 = vmatmul.mubr.f32.gmra.mxu0 %v1229
        %v1231 = vpop.f32.mrf.mxu0
        %v1232 = vadd.f32 %v1137, %v1231
        %v1233 = vpop.f32.mrf.mxu0
        %1234 = vdwg.mxu0
        %1235 = vmatprep.subr.mxu0 0.0
        %1236 = vmatpush1.msra.mxu0 0.0
        %1237 = vmatprep.subr.mxu0 0.0
        %1238 = vmatpush1.msra.mxu0 0.0
        %1239 = vmatprep.subr.mxu0 0.0
        %1240 = vmatpush1.msra.mxu0 0.0
        %1241 = vmatprep.subr.mxu0 0.0
        %1242 = vmatpush1.msra.mxu0 0.0
        %1243 = vmatprep.subr.mxu0 0.0
        %1244 = vmatpush1.msra.mxu0 0.0
        %1245 = vmatprep.subr.mxu0 0.0
        %1246 = vmatpush1.msra.mxu0 0.0
        %1247 = vmatprep.subr.mxu0 0.0
        %1248 = vmatpush1.msra.mxu0 0.0
        %1249 = vmatprep.subr.mxu0 0.0
        %1250 = vmatpush1.msra.mxu0 0.0
        %1251 = vmatprep.subr.mxu0 0.0
        %v1252 = vand.u32 %v923, 4294901760
        %1253 = vmatpush1.msra.mxu0 %v1252
        %1254 = vmatprep.subr.mxu0 0.0
        %v1255 = vand.u32 %v922, 4294901760
        %1256 = vmatpush1.msra.mxu0 %v1255
        %1257 = vmatprep.subr.mxu0 0.0
        %v1258 = vand.u32 %v921, 4294901760
        %1259 = vmatpush1.msra.mxu0 %v1258
        %1260 = vmatprep.subr.mxu0 0.0
        %v1261 = vand.u32 %v920, 4294901760
        %1262 = vmatpush1.msra.mxu0 %v1261
        %1263 = vmatprep.subr.mxu0 0.0
        %v1264 = vand.u32 %v919, 4294901760
        %1265 = vmatpush1.msra.mxu0 %v1264
        %1266 = vmatprep.subr.mxu0 0.0
        %v1267 = vand.u32 %v918, 4294901760
        %1268 = vmatpush1.msra.mxu0 %v1267
        %1269 = vmatprep.subr.mxu0 0.0
        %v1270 = vand.u32 %v917, 4294901760
        %1271 = vmatpush1.msra.mxu0 %v1270
        %1272 = vmatprep.subr.mxu0 0.0
        %v1273 = vand.u32 %v916, 4294901760
        %1274 = vmatpush1.msra.mxu0 %v1273
        %1275 = vmatprep.subr.mxu0 0.0
        %1276 = vmatpush2.msra.mxu0 0.0
        %1277 = vmatprep.subr.mxu0 0.0
        %1278 = vmatpush2.msra.mxu0 0.0
        %1279 = vmatprep.subr.mxu0 0.0
        %1280 = vmatpush2.msra.mxu0 0.0
        %1281 = vmatprep.subr.mxu0 0.0
        %1282 = vmatpush2.msra.mxu0 0.0
        %1283 = vmatprep.subr.mxu0 0.0
        %1284 = vmatpush2.msra.mxu0 0.0
        %1285 = vmatprep.subr.mxu0 0.0
        %1286 = vmatpush2.msra.mxu0 0.0
        %1287 = vmatprep.subr.mxu0 0.0
        %1288 = vmatpush2.msra.mxu0 0.0
        %1289 = vmatprep.subr.mxu0 0.0
        %1290 = vmatpush2.msra.mxu0 0.0
        %1291 = vmatprep.subr.mxu0 0.0
        %1292 = vmatpush2.msra.mxu0 0.0
        %1293 = vmatprep.subr.mxu0 0.0
        %1294 = vmatpush2.msra.mxu0 0.0
        %1295 = vmatprep.subr.mxu0 0.0
        %1296 = vmatpush2.msra.mxu0 0.0
        %1297 = vmatprep.subr.mxu0 0.0
        %1298 = vmatpush2.msra.mxu0 0.0
        %1299 = vmatprep.subr.mxu0 0.0
        %1300 = vmatpush2.msra.mxu0 0.0
        %1301 = vmatprep.subr.mxu0 0.0
        %1302 = vmatpush2.msra.mxu0 0.0
        %1303 = vmatprep.subr.mxu0 0.0
        %1304 = vmatpush2.msra.mxu0 0.0
        %1305 = vmatprep.subr.mxu0 0.0
        %1306 = vmatpush2.msra.mxu0 0.0
        %1307 = vmatprep.mubr.f32.mxu0 0.0
        %v1308 = vand.u32 %v925, 4294901760
        %v1309 = vsub.f32 %v925, %v1308
        %v1310 = vand.u32 %v1309, 4294901760
        %1311 = vmatmul.mubr.f32.gmra.mxu0 %v1310
        %v1312 = vpop.f32.mrf.mxu0
        %v1313 = vadd.f32 %v1225, %v1312
        %v1314 = vpop.f32.mrf.mxu0
        %1315 = vmatprep.mubr.f32.mxu0 0.0
        %v1316 = vand.u32 %v928, 4294901760
        %v1317 = vsub.f32 %v928, %v1316
        %v1318 = vand.u32 %v1317, 4294901760
        %1319 = vmatmul.mubr.f32.gmra.mxu0 %v1318
        %v1320 = vpop.f32.mrf.mxu0
        %v1321 = vadd.f32 %v1232, %v1320
        %v1322 = vpop.f32.mrf.mxu0
        %1323 = vdwg.mxu0
        %1324 = vmatprep.subr.mxu0 0.0
        %1325 = vmatpush1.msra.mxu0 0.0
        %1326 = vmatprep.subr.mxu0 0.0
        %1327 = vmatpush1.msra.mxu0 0.0
        %1328 = vmatprep.subr.mxu0 0.0
        %1329 = vmatpush1.msra.mxu0 0.0
        %1330 = vmatprep.subr.mxu0 0.0
        %1331 = vmatpush1.msra.mxu0 0.0
        %1332 = vmatprep.subr.mxu0 0.0
        %1333 = vmatpush1.msra.mxu0 0.0
        %1334 = vmatprep.subr.mxu0 0.0
        %1335 = vmatpush1.msra.mxu0 0.0
        %1336 = vmatprep.subr.mxu0 0.0
        %1337 = vmatpush1.msra.mxu0 0.0
        %1338 = vmatprep.subr.mxu0 0.0
        %1339 = vmatpush1.msra.mxu0 0.0
        %1340 = vmatprep.subr.mxu0 0.0
        %v1341 = vand.u32 %v923, 4294901760
        %v1342 = vsub.f32 %v923, %v1341
        %v1343 = vand.u32 %v1342, 4294901760
        %1344 = vmatpush1.msra.mxu0 %v1343
        %1345 = vmatprep.subr.mxu0 0.0
        %v1346 = vand.u32 %v922, 4294901760
        %v1347 = vsub.f32 %v922, %v1346
        %v1348 = vand.u32 %v1347, 4294901760
        %1349 = vmatpush1.msra.mxu0 %v1348
        %1350 = vmatprep.subr.mxu0 0.0
        %v1351 = vand.u32 %v921, 4294901760
        %v1352 = vsub.f32 %v921, %v1351
        %v1353 = vand.u32 %v1352, 4294901760
        %1354 = vmatpush1.msra.mxu0 %v1353
        %1355 = vmatprep.subr.mxu0 0.0
        %v1356 = vand.u32 %v920, 4294901760
        %v1357 = vsub.f32 %v920, %v1356
        %v1358 = vand.u32 %v1357, 4294901760
        %1359 = vmatpush1.msra.mxu0 %v1358
        %1360 = vmatprep.subr.mxu0 0.0
        %v1361 = vand.u32 %v919, 4294901760
        %v1362 = vsub.f32 %v919, %v1361
        %v1363 = vand.u32 %v1362, 4294901760
        %1364 = vmatpush1.msra.mxu0 %v1363
        %1365 = vmatprep.subr.mxu0 0.0
        %v1366 = vand.u32 %v918, 4294901760
        %v1367 = vsub.f32 %v918, %v1366
        %v1368 = vand.u32 %v1367, 4294901760
        %1369 = vmatpush1.msra.mxu0 %v1368
        %1370 = vmatprep.subr.mxu0 0.0
        %v1371 = vand.u32 %v917, 4294901760
        %v1372 = vsub.f32 %v917, %v1371
        %v1373 = vand.u32 %v1372, 4294901760
        %1374 = vmatpush1.msra.mxu0 %v1373
        %1375 = vmatprep.subr.mxu0 0.0
        %v1376 = vand.u32 %v916, 4294901760
        %v1377 = vsub.f32 %v916, %v1376
        %v1378 = vand.u32 %v1377, 4294901760
        %1379 = vmatpush1.msra.mxu0 %v1378
        %1380 = vmatprep.subr.mxu0 0.0
        %1381 = vmatpush2.msra.mxu0 0.0
        %1382 = vmatprep.subr.mxu0 0.0
        %1383 = vmatpush2.msra.mxu0 0.0
        %1384 = vmatprep.subr.mxu0 0.0
        %1385 = vmatpush2.msra.mxu0 0.0
        %1386 = vmatprep.subr.mxu0 0.0
        %1387 = vmatpush2.msra.mxu0 0.0
        %1388 = vmatprep.subr.mxu0 0.0
        %1389 = vmatpush2.msra.mxu0 0.0
        %1390 = vmatprep.subr.mxu0 0.0
        %1391 = vmatpush2.msra.mxu0 0.0
        %1392 = vmatprep.subr.mxu0 0.0
        %1393 = vmatpush2.msra.mxu0 0.0
        %1394 = vmatprep.subr.mxu0 0.0
        %1395 = vmatpush2.msra.mxu0 0.0
        %1396 = vmatprep.subr.mxu0 0.0
        %1397 = vmatpush2.msra.mxu0 0.0
        %1398 = vmatprep.subr.mxu0 0.0
        %1399 = vmatpush2.msra.mxu0 0.0
        %1400 = vmatprep.subr.mxu0 0.0
        %1401 = vmatpush2.msra.mxu0 0.0
        %1402 = vmatprep.subr.mxu0 0.0
        %1403 = vmatpush2.msra.mxu0 0.0
        %1404 = vmatprep.subr.mxu0 0.0
        %1405 = vmatpush2.msra.mxu0 0.0
        %1406 = vmatprep.subr.mxu0 0.0
        %1407 = vmatpush2.msra.mxu0 0.0
        %1408 = vmatprep.subr.mxu0 0.0
        %1409 = vmatpush2.msra.mxu0 0.0
        %1410 = vmatprep.subr.mxu0 0.0
        %1411 = vmatpush2.msra.mxu0 0.0
        %1412 = vmatprep.mubr.f32.mxu0 0.0
        %v1413 = vand.u32 %v925, 4294901760
        %1414 = vmatmul.mubr.f32.gmra.mxu0 %v1413
        %v1415 = vpop.f32.mrf.mxu0
        %v1416 = vadd.f32 %v1313, %v1415
        %v1417 = vpop.f32.mrf.mxu0
        %1418 = vmatprep.mubr.f32.mxu0 0.0
        %v1419 = vand.u32 %v928, 4294901760
        %1420 = vmatmul.mubr.f32.gmra.mxu0 %v1419
        %v1421 = vpop.f32.mrf.mxu0
        %v1422 = vadd.f32 %v1321, %v1421
        %v1423 = vpop.f32.mrf.mxu0
        %1424 = vdwg.mxu0
        %1425 = vmatprep.subr.mxu0 0.0
        %1426 = vmatpush1.msra.mxu0 0.0
        %1427 = vmatprep.subr.mxu0 0.0
        %1428 = vmatpush1.msra.mxu0 0.0
        %1429 = vmatprep.subr.mxu0 0.0
        %1430 = vmatpush1.msra.mxu0 0.0
        %1431 = vmatprep.subr.mxu0 0.0
        %1432 = vmatpush1.msra.mxu0 0.0
        %1433 = vmatprep.subr.mxu0 0.0
        %1434 = vmatpush1.msra.mxu0 0.0
        %1435 = vmatprep.subr.mxu0 0.0
        %1436 = vmatpush1.msra.mxu0 0.0
        %1437 = vmatprep.subr.mxu0 0.0
        %1438 = vmatpush1.msra.mxu0 0.0
        %1439 = vmatprep.subr.mxu0 0.0
        %1440 = vmatpush1.msra.mxu0 0.0
        %1441 = vmatprep.subr.mxu0 0.0
        %v1442 = vand.u32 %v923, 4294901760
        %1443 = vmatpush1.msra.mxu0 %v1442
        %1444 = vmatprep.subr.mxu0 0.0
        %v1445 = vand.u32 %v922, 4294901760
        %1446 = vmatpush1.msra.mxu0 %v1445
        %1447 = vmatprep.subr.mxu0 0.0
        %v1448 = vand.u32 %v921, 4294901760
        %1449 = vmatpush1.msra.mxu0 %v1448
        %1450 = vmatprep.subr.mxu0 0.0
        %v1451 = vand.u32 %v920, 4294901760
        %1452 = vmatpush1.msra.mxu0 %v1451
        %1453 = vmatprep.subr.mxu0 0.0
        %v1454 = vand.u32 %v919, 4294901760
        %1455 = vmatpush1.msra.mxu0 %v1454
        %1456 = vmatprep.subr.mxu0 0.0
        %v1457 = vand.u32 %v918, 4294901760
        %1458 = vmatpush1.msra.mxu0 %v1457
        %1459 = vmatprep.subr.mxu0 0.0
        %v1460 = vand.u32 %v917, 4294901760
        %1461 = vmatpush1.msra.mxu0 %v1460
        %1462 = vmatprep.subr.mxu0 0.0
        %v1463 = vand.u32 %v916, 4294901760
        %1464 = vmatpush1.msra.mxu0 %v1463
        %1465 = vmatprep.subr.mxu0 0.0
        %1466 = vmatpush2.msra.mxu0 0.0
        %1467 = vmatprep.subr.mxu0 0.0
        %1468 = vmatpush2.msra.mxu0 0.0
        %1469 = vmatprep.subr.mxu0 0.0
        %1470 = vmatpush2.msra.mxu0 0.0
        %1471 = vmatprep.subr.mxu0 0.0
        %1472 = vmatpush2.msra.mxu0 0.0
        %1473 = vmatprep.subr.mxu0 0.0
        %1474 = vmatpush2.msra.mxu0 0.0
        %1475 = vmatprep.subr.mxu0 0.0
        %1476 = vmatpush2.msra.mxu0 0.0
        %1477 = vmatprep.subr.mxu0 0.0
        %1478 = vmatpush2.msra.mxu0 0.0
        %1479 = vmatprep.subr.mxu0 0.0
        %1480 = vmatpush2.msra.mxu0 0.0
        %1481 = vmatprep.subr.mxu0 0.0
        %1482 = vmatpush2.msra.mxu0 0.0
        %1483 = vmatprep.subr.mxu0 0.0
        %1484 = vmatpush2.msra.mxu0 0.0
        %1485 = vmatprep.subr.mxu0 0.0
        %1486 = vmatpush2.msra.mxu0 0.0
        %1487 = vmatprep.subr.mxu0 0.0
        %1488 = vmatpush2.msra.mxu0 0.0
        %1489 = vmatprep.subr.mxu0 0.0
        %1490 = vmatpush2.msra.mxu0 0.0
        %1491 = vmatprep.subr.mxu0 0.0
        %1492 = vmatpush2.msra.mxu0 0.0
        %1493 = vmatprep.subr.mxu0 0.0
        %1494 = vmatpush2.msra.mxu0 0.0
        %1495 = vmatprep.subr.mxu0 0.0
        %1496 = vmatpush2.msra.mxu0 0.0
        %1497 = vmatprep.mubr.f32.mxu0 0.0
        %v1498 = vand.u32 %v925, 4294901760
        %1499 = vmatmul.mubr.f32.gmra.mxu0 %v1498
        %v1500 = vpop.f32.mrf.mxu0
        %v1501 = vadd.f32 %v1416, %v1500
        %v1502 = vpop.f32.mrf.mxu0
        %1503 = vmatprep.mubr.f32.mxu0 0.0
        %v1504 = vand.u32 %v928, 4294901760
        %1505 = vmatmul.mubr.f32.gmra.mxu0 %v1504
        %v1506 = vpop.f32.mrf.mxu0
        %v1507 = vadd.f32 %v1422, %v1506
        %v1508 = vpop.f32.mrf.mxu0
        %1509 = vdwg.mxu0
        %v1510 = vadd.f32 %v911, %v1501
        %v1511 = vadd.f32 %v912, %v1507
        %v1512 = vld [vmem:[%s306 + $0x2] sm:$0xff]
        %v1513 = vld [vmem:[%s306 + $0xa] sm:$0xff]
        %s1514 = scalar_lea.vmem [#allocation3], 128
        %v1515 = vld [vmem:[%s1514] sm:$0xff]
        %v1516 = vld [vmem:[%s1514 + $0x8] sm:$0xff]
        %v1517 = vld [vmem:[%s1514 + $0x10] sm:$0xff]
        %v1518 = vld [vmem:[%s1514 + $0x18] sm:$0xff]
        %v1519 = vld [vmem:[%s1514 + $0x20] sm:$0xff]
        %v1520 = vld [vmem:[%s1514 + $0x28] sm:$0xff]
        %v1521 = vld [vmem:[%s1514 + $0x30] sm:$0xff]
        %v1522 = vld [vmem:[%s1514 + $0x38] sm:$0xff]
        %v1524 = vsel %vm324, %v1512, 0
        %v1527 = vsel %vm324, %v1513, 0
        %1529 = vmatprep.subr.mxu0 0.0
        %1530 = vmatpush1.msra.mxu0 0.0
        %1531 = vmatprep.subr.mxu0 0.0
        %1532 = vmatpush1.msra.mxu0 0.0
        %1533 = vmatprep.subr.mxu0 0.0
        %1534 = vmatpush1.msra.mxu0 0.0
        %1535 = vmatprep.subr.mxu0 0.0
        %1536 = vmatpush1.msra.mxu0 0.0
        %1537 = vmatprep.subr.mxu0 0.0
        %1538 = vmatpush1.msra.mxu0 0.0
        %1539 = vmatprep.subr.mxu0 0.0
        %1540 = vmatpush1.msra.mxu0 0.0
        %1541 = vmatprep.subr.mxu0 0.0
        %1542 = vmatpush1.msra.mxu0 0.0
        %1543 = vmatprep.subr.mxu0 0.0
        %1544 = vmatpush1.msra.mxu0 0.0
        %1545 = vmatprep.subr.mxu0 0.0
        %v1546 = vand.u32 %v1522, 4294901760
        %1547 = vmatpush1.msra.mxu0 %v1546
        %1548 = vmatprep.subr.mxu0 0.0
        %v1549 = vand.u32 %v1521, 4294901760
        %1550 = vmatpush1.msra.mxu0 %v1549
        %1551 = vmatprep.subr.mxu0 0.0
        %v1552 = vand.u32 %v1520, 4294901760
        %1553 = vmatpush1.msra.mxu0 %v1552
        %1554 = vmatprep.subr.mxu0 0.0
        %v1555 = vand.u32 %v1519, 4294901760
        %1556 = vmatpush1.msra.mxu0 %v1555
        %1557 = vmatprep.subr.mxu0 0.0
        %v1558 = vand.u32 %v1518, 4294901760
        %1559 = vmatpush1.msra.mxu0 %v1558
        %1560 = vmatprep.subr.mxu0 0.0
        %v1561 = vand.u32 %v1517, 4294901760
        %1562 = vmatpush1.msra.mxu0 %v1561
        %1563 = vmatprep.subr.mxu0 0.0
        %v1564 = vand.u32 %v1516, 4294901760
        %1565 = vmatpush1.msra.mxu0 %v1564
        %1566 = vmatprep.subr.mxu0 0.0
        %v1567 = vand.u32 %v1515, 4294901760
        %1568 = vmatpush1.msra.mxu0 %v1567
        %1569 = vmatprep.subr.mxu0 0.0
        %1570 = vmatpush2.msra.mxu0 0.0
        %1571 = vmatprep.subr.mxu0 0.0
        %1572 = vmatpush2.msra.mxu0 0.0
        %1573 = vmatprep.subr.mxu0 0.0
        %1574 = vmatpush2.msra.mxu0 0.0
        %1575 = vmatprep.subr.mxu0 0.0
        %1576 = vmatpush2.msra.mxu0 0.0
        %1577 = vmatprep.subr.mxu0 0.0
        %1578 = vmatpush2.msra.mxu0 0.0
        %1579 = vmatprep.subr.mxu0 0.0
        %1580 = vmatpush2.msra.mxu0 0.0
        %1581 = vmatprep.subr.mxu0 0.0
        %1582 = vmatpush2.msra.mxu0 0.0
        %1583 = vmatprep.subr.mxu0 0.0
        %1584 = vmatpush2.msra.mxu0 0.0
        %1585 = vmatprep.subr.mxu0 0.0
        %1586 = vmatpush2.msra.mxu0 0.0
        %1587 = vmatprep.subr.mxu0 0.0
        %1588 = vmatpush2.msra.mxu0 0.0
        %1589 = vmatprep.subr.mxu0 0.0
        %1590 = vmatpush2.msra.mxu0 0.0
        %1591 = vmatprep.subr.mxu0 0.0
        %1592 = vmatpush2.msra.mxu0 0.0
        %1593 = vmatprep.subr.mxu0 0.0
        %1594 = vmatpush2.msra.mxu0 0.0
        %1595 = vmatprep.subr.mxu0 0.0
        %1596 = vmatpush2.msra.mxu0 0.0
        %1597 = vmatprep.subr.mxu0 0.0
        %1598 = vmatpush2.msra.mxu0 0.0
        %1599 = vmatprep.subr.mxu0 0.0
        %1600 = vmatpush2.msra.mxu0 0.0
        %1601 = vmatprep.mubr.f32.mxu0 0.0
        %v1602 = vand.u32 %v1524, 4294901760
        %v1603 = vsub.f32 %v1524, %v1602
        %v1604 = vand.u32 %v1603, 4294901760
        %v1605 = vsub.f32 %v1603, %v1604
        %v1606 = vand.u32 %v1605, 4294901760
        %1607 = vmatmul.mubr.f32.gmra.mxu0 %v1606
        %v1608 = vpop.f32.mrf.mxu0
        %v1609 = vadd.f32 0.0, %v1608
        %v1610 = vpop.f32.mrf.mxu0
        %1611 = vmatprep.mubr.f32.mxu0 0.0
        %v1612 = vand.u32 %v1527, 4294901760
        %v1613 = vsub.f32 %v1527, %v1612
        %v1614 = vand.u32 %v1613, 4294901760
        %v1615 = vsub.f32 %v1613, %v1614
        %v1616 = vand.u32 %v1615, 4294901760
        %1617 = vmatmul.mubr.f32.gmra.mxu0 %v1616
        %v1618 = vpop.f32.mrf.mxu0
        %v1619 = vadd.f32 0.0, %v1618
        %v1620 = vpop.f32.mrf.mxu0
        %1621 = vdwg.mxu0
        %1622 = vmatprep.subr.mxu0 0.0
        %1623 = vmatpush1.msra.mxu0 0.0
        %1624 = vmatprep.subr.mxu0 0.0
        %1625 = vmatpush1.msra.mxu0 0.0
        %1626 = vmatprep.subr.mxu0 0.0
        %1627 = vmatpush1.msra.mxu0 0.0
        %1628 = vmatprep.subr.mxu0 0.0
        %1629 = vmatpush1.msra.mxu0 0.0
        %1630 = vmatprep.subr.mxu0 0.0
        %1631 = vmatpush1.msra.mxu0 0.0
        %1632 = vmatprep.subr.mxu0 0.0
        %1633 = vmatpush1.msra.mxu0 0.0
        %1634 = vmatprep.subr.mxu0 0.0
        %1635 = vmatpush1.msra.mxu0 0.0
        %1636 = vmatprep.subr.mxu0 0.0
        %1637 = vmatpush1.msra.mxu0 0.0
        %1638 = vmatprep.subr.mxu0 0.0
        %v1639 = vand.u32 %v1522, 4294901760
        %v1640 = vsub.f32 %v1522, %v1639
        %v1641 = vand.u32 %v1640, 4294901760
        %v1642 = vsub.f32 %v1640, %v1641
        %v1643 = vand.u32 %v1642, 4294901760
        %1644 = vmatpush1.msra.mxu0 %v1643
        %1645 = vmatprep.subr.mxu0 0.0
        %v1646 = vand.u32 %v1521, 4294901760
        %v1647 = vsub.f32 %v1521, %v1646
        %v1648 = vand.u32 %v1647, 4294901760
        %v1649 = vsub.f32 %v1647, %v1648
        %v1650 = vand.u32 %v1649, 4294901760
        %1651 = vmatpush1.msra.mxu0 %v1650
        %1652 = vmatprep.subr.mxu0 0.0
        %v1653 = vand.u32 %v1520, 4294901760
        %v1654 = vsub.f32 %v1520, %v1653
        %v1655 = vand.u32 %v1654, 4294901760
        %v1656 = vsub.f32 %v1654, %v1655
        %v1657 = vand.u32 %v1656, 4294901760
        %1658 = vmatpush1.msra.mxu0 %v1657
        %1659 = vmatprep.subr.mxu0 0.0
        %v1660 = vand.u32 %v1519, 4294901760
        %v1661 = vsub.f32 %v1519, %v1660
        %v1662 = vand.u32 %v1661, 4294901760
        %v1663 = vsub.f32 %v1661, %v1662
        %v1664 = vand.u32 %v1663, 4294901760
        %1665 = vmatpush1.msra.mxu0 %v1664
        %1666 = vmatprep.subr.mxu0 0.0
        %v1667 = vand.u32 %v1518, 4294901760
        %v1668 = vsub.f32 %v1518, %v1667
        %v1669 = vand.u32 %v1668, 4294901760
        %v1670 = vsub.f32 %v1668, %v1669
        %v1671 = vand.u32 %v1670, 4294901760
        %1672 = vmatpush1.msra.mxu0 %v1671
        %1673 = vmatprep.subr.mxu0 0.0
        %v1674 = vand.u32 %v1517, 4294901760
        %v1675 = vsub.f32 %v1517, %v1674
        %v1676 = vand.u32 %v1675, 4294901760
        %v1677 = vsub.f32 %v1675, %v1676
        %v1678 = vand.u32 %v1677, 4294901760
        %1679 = vmatpush1.msra.mxu0 %v1678
        %1680 = vmatprep.subr.mxu0 0.0
        %v1681 = vand.u32 %v1516, 4294901760
        %v1682 = vsub.f32 %v1516, %v1681
        %v1683 = vand.u32 %v1682, 4294901760
        %v1684 = vsub.f32 %v1682, %v1683
        %v1685 = vand.u32 %v1684, 4294901760
        %1686 = vmatpush1.msra.mxu0 %v1685
        %1687 = vmatprep.subr.mxu0 0.0
        %v1688 = vand.u32 %v1515, 4294901760
        %v1689 = vsub.f32 %v1515, %v1688
        %v1690 = vand.u32 %v1689, 4294901760
        %v1691 = vsub.f32 %v1689, %v1690
        %v1692 = vand.u32 %v1691, 4294901760
        %1693 = vmatpush1.msra.mxu0 %v1692
        %1694 = vmatprep.subr.mxu0 0.0
        %1695 = vmatpush2.msra.mxu0 0.0
        %1696 = vmatprep.subr.mxu0 0.0
        %1697 = vmatpush2.msra.mxu0 0.0
        %1698 = vmatprep.subr.mxu0 0.0
        %1699 = vmatpush2.msra.mxu0 0.0
        %1700 = vmatprep.subr.mxu0 0.0
        %1701 = vmatpush2.msra.mxu0 0.0
        %1702 = vmatprep.subr.mxu0 0.0
        %1703 = vmatpush2.msra.mxu0 0.0
        %1704 = vmatprep.subr.mxu0 0.0
        %1705 = vmatpush2.msra.mxu0 0.0
        %1706 = vmatprep.subr.mxu0 0.0
        %1707 = vmatpush2.msra.mxu0 0.0
        %1708 = vmatprep.subr.mxu0 0.0
        %1709 = vmatpush2.msra.mxu0 0.0
        %1710 = vmatprep.subr.mxu0 0.0
        %1711 = vmatpush2.msra.mxu0 0.0
        %1712 = vmatprep.subr.mxu0 0.0
        %1713 = vmatpush2.msra.mxu0 0.0
        %1714 = vmatprep.subr.mxu0 0.0
        %1715 = vmatpush2.msra.mxu0 0.0
        %1716 = vmatprep.subr.mxu0 0.0
        %1717 = vmatpush2.msra.mxu0 0.0
        %1718 = vmatprep.subr.mxu0 0.0
        %1719 = vmatpush2.msra.mxu0 0.0
        %1720 = vmatprep.subr.mxu0 0.0
        %1721 = vmatpush2.msra.mxu0 0.0
        %1722 = vmatprep.subr.mxu0 0.0
        %1723 = vmatpush2.msra.mxu0 0.0
        %1724 = vmatprep.subr.mxu0 0.0
        %1725 = vmatpush2.msra.mxu0 0.0
        %1726 = vmatprep.mubr.f32.mxu0 0.0
        %v1727 = vand.u32 %v1524, 4294901760
        %1728 = vmatmul.mubr.f32.gmra.mxu0 %v1727
        %v1729 = vpop.f32.mrf.mxu0
        %v1730 = vadd.f32 %v1609, %v1729
        %v1731 = vpop.f32.mrf.mxu0
        %1732 = vmatprep.mubr.f32.mxu0 0.0
        %v1733 = vand.u32 %v1527, 4294901760
        %1734 = vmatmul.mubr.f32.gmra.mxu0 %v1733
        %v1735 = vpop.f32.mrf.mxu0
        %v1736 = vadd.f32 %v1619, %v1735
        %v1737 = vpop.f32.mrf.mxu0
        %1738 = vdwg.mxu0
        %1739 = vmatprep.subr.mxu0 0.0
        %1740 = vmatpush1.msra.mxu0 0.0
        %1741 = vmatprep.subr.mxu0 0.0
        %1742 = vmatpush1.msra.mxu0 0.0
        %1743 = vmatprep.subr.mxu0 0.0
        %1744 = vmatpush1.msra.mxu0 0.0
        %1745 = vmatprep.subr.mxu0 0.0
        %1746 = vmatpush1.msra.mxu0 0.0
        %1747 = vmatprep.subr.mxu0 0.0
        %1748 = vmatpush1.msra.mxu0 0.0
        %1749 = vmatprep.subr.mxu0 0.0
        %1750 = vmatpush1.msra.mxu0 0.0
        %1751 = vmatprep.subr.mxu0 0.0
        %1752 = vmatpush1.msra.mxu0 0.0
        %1753 = vmatprep.subr.mxu0 0.0
        %1754 = vmatpush1.msra.mxu0 0.0
        %1755 = vmatprep.subr.mxu0 0.0
        %v1756 = vand.u32 %v1522, 4294901760
        %v1757 = vsub.f32 %v1522, %v1756
        %1758 = vmatpush1.msra.mxu0 %v1757
        %1759 = vmatprep.subr.mxu0 0.0
        %v1760 = vand.u32 %v1521, 4294901760
        %v1761 = vsub.f32 %v1521, %v1760
        %1762 = vmatpush1.msra.mxu0 %v1761
        %1763 = vmatprep.subr.mxu0 0.0
        %v1764 = vand.u32 %v1520, 4294901760
        %v1765 = vsub.f32 %v1520, %v1764
        %1766 = vmatpush1.msra.mxu0 %v1765
        %1767 = vmatprep.subr.mxu0 0.0
        %v1768 = vand.u32 %v1519, 4294901760
        %v1769 = vsub.f32 %v1519, %v1768
        %1770 = vmatpush1.msra.mxu0 %v1769
        %1771 = vmatprep.subr.mxu0 0.0
        %v1772 = vand.u32 %v1518, 4294901760
        %v1773 = vsub.f32 %v1518, %v1772
        %1774 = vmatpush1.msra.mxu0 %v1773
        %1775 = vmatprep.subr.mxu0 0.0
        %v1776 = vand.u32 %v1517, 4294901760
        %v1777 = vsub.f32 %v1517, %v1776
        %1778 = vmatpush1.msra.mxu0 %v1777
        %1779 = vmatprep.subr.mxu0 0.0
        %v1780 = vand.u32 %v1516, 4294901760
        %v1781 = vsub.f32 %v1516, %v1780
        %1782 = vmatpush1.msra.mxu0 %v1781
        %1783 = vmatprep.subr.mxu0 0.0
        %v1784 = vand.u32 %v1515, 4294901760
        %v1785 = vsub.f32 %v1515, %v1784
        %1786 = vmatpush1.msra.mxu0 %v1785
        %1787 = vmatprep.subr.mxu0 0.0
        %1788 = vmatpush2.msra.mxu0 0.0
        %1789 = vmatprep.subr.mxu0 0.0
        %1790 = vmatpush2.msra.mxu0 0.0
        %1791 = vmatprep.subr.mxu0 0.0
        %1792 = vmatpush2.msra.mxu0 0.0
        %1793 = vmatprep.subr.mxu0 0.0
        %1794 = vmatpush2.msra.mxu0 0.0
        %1795 = vmatprep.subr.mxu0 0.0
        %1796 = vmatpush2.msra.mxu0 0.0
        %1797 = vmatprep.subr.mxu0 0.0
        %1798 = vmatpush2.msra.mxu0 0.0
        %1799 = vmatprep.subr.mxu0 0.0
        %1800 = vmatpush2.msra.mxu0 0.0
        %1801 = vmatprep.subr.mxu0 0.0
        %1802 = vmatpush2.msra.mxu0 0.0
        %1803 = vmatprep.subr.mxu0 0.0
        %1804 = vmatpush2.msra.mxu0 0.0
        %1805 = vmatprep.subr.mxu0 0.0
        %1806 = vmatpush2.msra.mxu0 0.0
        %1807 = vmatprep.subr.mxu0 0.0
        %1808 = vmatpush2.msra.mxu0 0.0
        %1809 = vmatprep.subr.mxu0 0.0
        %1810 = vmatpush2.msra.mxu0 0.0
        %1811 = vmatprep.subr.mxu0 0.0
        %1812 = vmatpush2.msra.mxu0 0.0
        %1813 = vmatprep.subr.mxu0 0.0
        %1814 = vmatpush2.msra.mxu0 0.0
        %1815 = vmatprep.subr.mxu0 0.0
        %1816 = vmatpush2.msra.mxu0 0.0
        %1817 = vmatprep.subr.mxu0 0.0
        %1818 = vmatpush2.msra.mxu0 0.0
        %1819 = vmatprep.mubr.f32.mxu0 0.0
        %v1820 = vand.u32 %v1524, 4294901760
        %v1821 = vsub.f32 %v1524, %v1820
        %1822 = vmatmul.mubr.f32.gmra.mxu0 %v1821
        %v1823 = vpop.f32.mrf.mxu0
        %v1824 = vadd.f32 %v1730, %v1823
        %v1825 = vpop.f32.mrf.mxu0
        %1826 = vmatprep.mubr.f32.mxu0 0.0
        %v1827 = vand.u32 %v1527, 4294901760
        %v1828 = vsub.f32 %v1527, %v1827
        %1829 = vmatmul.mubr.f32.gmra.mxu0 %v1828
        %v1830 = vpop.f32.mrf.mxu0
        %v1831 = vadd.f32 %v1736, %v1830
        %v1832 = vpop.f32.mrf.mxu0
        %1833 = vdwg.mxu0
        %1834 = vmatprep.subr.mxu0 0.0
        %1835 = vmatpush1.msra.mxu0 0.0
        %1836 = vmatprep.subr.mxu0 0.0
        %1837 = vmatpush1.msra.mxu0 0.0
        %1838 = vmatprep.subr.mxu0 0.0
        %1839 = vmatpush1.msra.mxu0 0.0
        %1840 = vmatprep.subr.mxu0 0.0
        %1841 = vmatpush1.msra.mxu0 0.0
        %1842 = vmatprep.subr.mxu0 0.0
        %1843 = vmatpush1.msra.mxu0 0.0
        %1844 = vmatprep.subr.mxu0 0.0
        %1845 = vmatpush1.msra.mxu0 0.0
        %1846 = vmatprep.subr.mxu0 0.0
        %1847 = vmatpush1.msra.mxu0 0.0
        %1848 = vmatprep.subr.mxu0 0.0
        %1849 = vmatpush1.msra.mxu0 0.0
        %1850 = vmatprep.subr.mxu0 0.0
        %v1851 = vand.u32 %v1522, 4294901760
        %1852 = vmatpush1.msra.mxu0 %v1851
        %1853 = vmatprep.subr.mxu0 0.0
        %v1854 = vand.u32 %v1521, 4294901760
        %1855 = vmatpush1.msra.mxu0 %v1854
        %1856 = vmatprep.subr.mxu0 0.0
        %v1857 = vand.u32 %v1520, 4294901760
        %1858 = vmatpush1.msra.mxu0 %v1857
        %1859 = vmatprep.subr.mxu0 0.0
        %v1860 = vand.u32 %v1519, 4294901760
        %1861 = vmatpush1.msra.mxu0 %v1860
        %1862 = vmatprep.subr.mxu0 0.0
        %v1863 = vand.u32 %v1518, 4294901760
        %1864 = vmatpush1.msra.mxu0 %v1863
        %1865 = vmatprep.subr.mxu0 0.0
        %v1866 = vand.u32 %v1517, 4294901760
        %1867 = vmatpush1.msra.mxu0 %v1866
        %1868 = vmatprep.subr.mxu0 0.0
        %v1869 = vand.u32 %v1516, 4294901760
        %1870 = vmatpush1.msra.mxu0 %v1869
        %1871 = vmatprep.subr.mxu0 0.0
        %v1872 = vand.u32 %v1515, 4294901760
        %1873 = vmatpush1.msra.mxu0 %v1872
        %1874 = vmatprep.subr.mxu0 0.0
        %1875 = vmatpush2.msra.mxu0 0.0
        %1876 = vmatprep.subr.mxu0 0.0
        %1877 = vmatpush2.msra.mxu0 0.0
        %1878 = vmatprep.subr.mxu0 0.0
        %1879 = vmatpush2.msra.mxu0 0.0
        %1880 = vmatprep.subr.mxu0 0.0
        %1881 = vmatpush2.msra.mxu0 0.0
        %1882 = vmatprep.subr.mxu0 0.0
        %1883 = vmatpush2.msra.mxu0 0.0
        %1884 = vmatprep.subr.mxu0 0.0
        %1885 = vmatpush2.msra.mxu0 0.0
        %1886 = vmatprep.subr.mxu0 0.0
        %1887 = vmatpush2.msra.mxu0 0.0
        %1888 = vmatprep.subr.mxu0 0.0
        %1889 = vmatpush2.msra.mxu0 0.0
        %1890 = vmatprep.subr.mxu0 0.0
        %1891 = vmatpush2.msra.mxu0 0.0
        %1892 = vmatprep.subr.mxu0 0.0
        %1893 = vmatpush2.msra.mxu0 0.0
        %1894 = vmatprep.subr.mxu0 0.0
        %1895 = vmatpush2.msra.mxu0 0.0
        %1896 = vmatprep.subr.mxu0 0.0
        %1897 = vmatpush2.msra.mxu0 0.0
        %1898 = vmatprep.subr.mxu0 0.0
        %1899 = vmatpush2.msra.mxu0 0.0
        %1900 = vmatprep.subr.mxu0 0.0
        %1901 = vmatpush2.msra.mxu0 0.0
        %1902 = vmatprep.subr.mxu0 0.0
        %1903 = vmatpush2.msra.mxu0 0.0
        %1904 = vmatprep.subr.mxu0 0.0
        %1905 = vmatpush2.msra.mxu0 0.0
        %1906 = vmatprep.mubr.f32.mxu0 0.0
        %v1907 = vand.u32 %v1524, 4294901760
        %v1908 = vsub.f32 %v1524, %v1907
        %v1909 = vand.u32 %v1908, 4294901760
        %1910 = vmatmul.mubr.f32.gmra.mxu0 %v1909
        %v1911 = vpop.f32.mrf.mxu0
        %v1912 = vadd.f32 %v1824, %v1911
        %v1913 = vpop.f32.mrf.mxu0
        %1914 = vmatprep.mubr.f32.mxu0 0.0
        %v1915 = vand.u32 %v1527, 4294901760
        %v1916 = vsub.f32 %v1527, %v1915
        %v1917 = vand.u32 %v1916, 4294901760
        %1918 = vmatmul.mubr.f32.gmra.mxu0 %v1917
        %v1919 = vpop.f32.mrf.mxu0
        %v1920 = vadd.f32 %v1831, %v1919
        %v1921 = vpop.f32.mrf.mxu0
        %1922 = vdwg.mxu0
        %1923 = vmatprep.subr.mxu0 0.0
        %1924 = vmatpush1.msra.mxu0 0.0
        %1925 = vmatprep.subr.mxu0 0.0
        %1926 = vmatpush1.msra.mxu0 0.0
        %1927 = vmatprep.subr.mxu0 0.0
        %1928 = vmatpush1.msra.mxu0 0.0
        %1929 = vmatprep.subr.mxu0 0.0
        %1930 = vmatpush1.msra.mxu0 0.0
        %1931 = vmatprep.subr.mxu0 0.0
        %1932 = vmatpush1.msra.mxu0 0.0
        %1933 = vmatprep.subr.mxu0 0.0
        %1934 = vmatpush1.msra.mxu0 0.0
        %1935 = vmatprep.subr.mxu0 0.0
        %1936 = vmatpush1.msra.mxu0 0.0
        %1937 = vmatprep.subr.mxu0 0.0
        %1938 = vmatpush1.msra.mxu0 0.0
        %1939 = vmatprep.subr.mxu0 0.0
        %v1940 = vand.u32 %v1522, 4294901760
        %v1941 = vsub.f32 %v1522, %v1940
        %v1942 = vand.u32 %v1941, 4294901760
        %1943 = vmatpush1.msra.mxu0 %v1942
        %1944 = vmatprep.subr.mxu0 0.0
        %v1945 = vand.u32 %v1521, 4294901760
        %v1946 = vsub.f32 %v1521, %v1945
        %v1947 = vand.u32 %v1946, 4294901760
        %1948 = vmatpush1.msra.mxu0 %v1947
        %1949 = vmatprep.subr.mxu0 0.0
        %v1950 = vand.u32 %v1520, 4294901760
        %v1951 = vsub.f32 %v1520, %v1950
        %v1952 = vand.u32 %v1951, 4294901760
        %1953 = vmatpush1.msra.mxu0 %v1952
        %1954 = vmatprep.subr.mxu0 0.0
        %v1955 = vand.u32 %v1519, 4294901760
        %v1956 = vsub.f32 %v1519, %v1955
        %v1957 = vand.u32 %v1956, 4294901760
        %1958 = vmatpush1.msra.mxu0 %v1957
        %1959 = vmatprep.subr.mxu0 0.0
        %v1960 = vand.u32 %v1518, 4294901760
        %v1961 = vsub.f32 %v1518, %v1960
        %v1962 = vand.u32 %v1961, 4294901760
        %1963 = vmatpush1.msra.mxu0 %v1962
        %1964 = vmatprep.subr.mxu0 0.0
        %v1965 = vand.u32 %v1517, 4294901760
        %v1966 = vsub.f32 %v1517, %v1965
        %v1967 = vand.u32 %v1966, 4294901760
        %1968 = vmatpush1.msra.mxu0 %v1967
        %1969 = vmatprep.subr.mxu0 0.0
        %v1970 = vand.u32 %v1516, 4294901760
        %v1971 = vsub.f32 %v1516, %v1970
        %v1972 = vand.u32 %v1971, 4294901760
        %1973 = vmatpush1.msra.mxu0 %v1972
        %1974 = vmatprep.subr.mxu0 0.0
        %v1975 = vand.u32 %v1515, 4294901760
        %v1976 = vsub.f32 %v1515, %v1975
        %v1977 = vand.u32 %v1976, 4294901760
        %1978 = vmatpush1.msra.mxu0 %v1977
        %1979 = vmatprep.subr.mxu0 0.0
        %1980 = vmatpush2.msra.mxu0 0.0
        %1981 = vmatprep.subr.mxu0 0.0
        %1982 = vmatpush2.msra.mxu0 0.0
        %1983 = vmatprep.subr.mxu0 0.0
        %1984 = vmatpush2.msra.mxu0 0.0
        %1985 = vmatprep.subr.mxu0 0.0
        %1986 = vmatpush2.msra.mxu0 0.0
        %1987 = vmatprep.subr.mxu0 0.0
        %1988 = vmatpush2.msra.mxu0 0.0
        %1989 = vmatprep.subr.mxu0 0.0
        %1990 = vmatpush2.msra.mxu0 0.0
        %1991 = vmatprep.subr.mxu0 0.0
        %1992 = vmatpush2.msra.mxu0 0.0
        %1993 = vmatprep.subr.mxu0 0.0
        %1994 = vmatpush2.msra.mxu0 0.0
        %1995 = vmatprep.subr.mxu0 0.0
        %1996 = vmatpush2.msra.mxu0 0.0
        %1997 = vmatprep.subr.mxu0 0.0
        %1998 = vmatpush2.msra.mxu0 0.0
        %1999 = vmatprep.subr.mxu0 0.0
        %2000 = vmatpush2.msra.mxu0 0.0
        %2001 = vmatprep.subr.mxu0 0.0
        %2002 = vmatpush2.msra.mxu0 0.0
        %2003 = vmatprep.subr.mxu0 0.0
        %2004 = vmatpush2.msra.mxu0 0.0
        %2005 = vmatprep.subr.mxu0 0.0
        %2006 = vmatpush2.msra.mxu0 0.0
        %2007 = vmatprep.subr.mxu0 0.0
        %2008 = vmatpush2.msra.mxu0 0.0
        %2009 = vmatprep.subr.mxu0 0.0
        %2010 = vmatpush2.msra.mxu0 0.0
        %2011 = vmatprep.mubr.f32.mxu0 0.0
        %v2012 = vand.u32 %v1524, 4294901760
        %2013 = vmatmul.mubr.f32.gmra.mxu0 %v2012
        %v2014 = vpop.f32.mrf.mxu0
        %v2015 = vadd.f32 %v1912, %v2014
        %v2016 = vpop.f32.mrf.mxu0
        %2017 = vmatprep.mubr.f32.mxu0 0.0
        %v2018 = vand.u32 %v1527, 4294901760
        %2019 = vmatmul.mubr.f32.gmra.mxu0 %v2018
        %v2020 = vpop.f32.mrf.mxu0
        %v2021 = vadd.f32 %v1920, %v2020
        %v2022 = vpop.f32.mrf.mxu0
        %2023 = vdwg.mxu0
        %2024 = vmatprep.subr.mxu0 0.0
        %2025 = vmatpush1.msra.mxu0 0.0
        %2026 = vmatprep.subr.mxu0 0.0
        %2027 = vmatpush1.msra.mxu0 0.0
        %2028 = vmatprep.subr.mxu0 0.0
        %2029 = vmatpush1.msra.mxu0 0.0
        %2030 = vmatprep.subr.mxu0 0.0
        %2031 = vmatpush1.msra.mxu0 0.0
        %2032 = vmatprep.subr.mxu0 0.0
        %2033 = vmatpush1.msra.mxu0 0.0
        %2034 = vmatprep.subr.mxu0 0.0
        %2035 = vmatpush1.msra.mxu0 0.0
        %2036 = vmatprep.subr.mxu0 0.0
        %2037 = vmatpush1.msra.mxu0 0.0
        %2038 = vmatprep.subr.mxu0 0.0
        %2039 = vmatpush1.msra.mxu0 0.0
        %2040 = vmatprep.subr.mxu0 0.0
        %v2041 = vand.u32 %v1522, 4294901760
        %2042 = vmatpush1.msra.mxu0 %v2041
        %2043 = vmatprep.subr.mxu0 0.0
        %v2044 = vand.u32 %v1521, 4294901760
        %2045 = vmatpush1.msra.mxu0 %v2044
        %2046 = vmatprep.subr.mxu0 0.0
        %v2047 = vand.u32 %v1520, 4294901760
        %2048 = vmatpush1.msra.mxu0 %v2047
        %2049 = vmatprep.subr.mxu0 0.0
        %v2050 = vand.u32 %v1519, 4294901760
        %2051 = vmatpush1.msra.mxu0 %v2050
        %2052 = vmatprep.subr.mxu0 0.0
        %v2053 = vand.u32 %v1518, 4294901760
        %2054 = vmatpush1.msra.mxu0 %v2053
        %2055 = vmatprep.subr.mxu0 0.0
        %v2056 = vand.u32 %v1517, 4294901760
        %2057 = vmatpush1.msra.mxu0 %v2056
        %2058 = vmatprep.subr.mxu0 0.0
        %v2059 = vand.u32 %v1516, 4294901760
        %2060 = vmatpush1.msra.mxu0 %v2059
        %2061 = vmatprep.subr.mxu0 0.0
        %v2062 = vand.u32 %v1515, 4294901760
        %2063 = vmatpush1.msra.mxu0 %v2062
        %2064 = vmatprep.subr.mxu0 0.0
        %2065 = vmatpush2.msra.mxu0 0.0
        %2066 = vmatprep.subr.mxu0 0.0
        %2067 = vmatpush2.msra.mxu0 0.0
        %2068 = vmatprep.subr.mxu0 0.0
        %2069 = vmatpush2.msra.mxu0 0.0
        %2070 = vmatprep.subr.mxu0 0.0
        %2071 = vmatpush2.msra.mxu0 0.0
        %2072 = vmatprep.subr.mxu0 0.0
        %2073 = vmatpush2.msra.mxu0 0.0
        %2074 = vmatprep.subr.mxu0 0.0
        %2075 = vmatpush2.msra.mxu0 0.0
        %2076 = vmatprep.subr.mxu0 0.0
        %2077 = vmatpush2.msra.mxu0 0.0
        %2078 = vmatprep.subr.mxu0 0.0
        %2079 = vmatpush2.msra.mxu0 0.0
        %2080 = vmatprep.subr.mxu0 0.0
        %2081 = vmatpush2.msra.mxu0 0.0
        %2082 = vmatprep.subr.mxu0 0.0
        %2083 = vmatpush2.msra.mxu0 0.0
        %2084 = vmatprep.subr.mxu0 0.0
        %2085 = vmatpush2.msra.mxu0 0.0
        %2086 = vmatprep.subr.mxu0 0.0
        %2087 = vmatpush2.msra.mxu0 0.0
        %2088 = vmatprep.subr.mxu0 0.0
        %2089 = vmatpush2.msra.mxu0 0.0
        %2090 = vmatprep.subr.mxu0 0.0
        %2091 = vmatpush2.msra.mxu0 0.0
        %2092 = vmatprep.subr.mxu0 0.0
        %2093 = vmatpush2.msra.mxu0 0.0
        %2094 = vmatprep.subr.mxu0 0.0
        %2095 = vmatpush2.msra.mxu0 0.0
        %2096 = vmatprep.mubr.f32.mxu0 0.0
        %v2097 = vand.u32 %v1524, 4294901760
        %2098 = vmatmul.mubr.f32.gmra.mxu0 %v2097
        %v2099 = vpop.f32.mrf.mxu0
        %v2100 = vadd.f32 %v2015, %v2099
        %v2101 = vpop.f32.mrf.mxu0
        %2102 = vmatprep.mubr.f32.mxu0 0.0
        %v2103 = vand.u32 %v1527, 4294901760
        %2104 = vmatmul.mubr.f32.gmra.mxu0 %v2103
        %v2105 = vpop.f32.mrf.mxu0
        %v2106 = vadd.f32 %v2021, %v2105
        %v2107 = vpop.f32.mrf.mxu0
        %2108 = vdwg.mxu0
        %v2109 = vadd.f32 %v1510, %v2100
        %v2110 = vadd.f32 %v1511, %v2106
        %v2111 = vmul.f32 %v2109, 0.01
        %v2112 = vmul.f32 %v2110, 0.01
        %v2113 = vmax.f32 %v2109, %v2111
        %v2114 = vmax.f32 %v2110, %v2112
        %v2115 = vld [vmem:[%s5] sm:$0x1]
        %v2117 = vlaneseq
        %v2118 = vshrl.u32 %v2117, 7
        %v2119 = vsub.s32 0, %v2118
        %v2120 = vrot.slane %v2115, %v2119
        %v2122 = vld [vmem:[%s2] sm:$0xff]
        %v2123 = vld [vmem:[%s2 + $0x8] sm:$0xff]
        %v2124 = vld [vmem:[%s2 + $0x10] sm:$0xff]
        %v2125 = vld [vmem:[%s2 + $0x18] sm:$0xff]
        %v2126 = vld [vmem:[%s2 + $0x20] sm:$0xff]
        %v2127 = vld [vmem:[%s2 + $0x28] sm:$0xff]
        %v2128 = vld [vmem:[%s2 + $0x30] sm:$0xff]
        %v2129 = vld [vmem:[%s2 + $0x38] sm:$0xff]
        %2130 = vmatprep.subr.mxu0 0.0
        %2131 = vmatpush1.msra.mxu0 0.0
        %2132 = vmatprep.subr.mxu0 0.0
        %2133 = vmatpush1.msra.mxu0 0.0
        %2134 = vmatprep.subr.mxu0 0.0
        %2135 = vmatpush1.msra.mxu0 0.0
        %2136 = vmatprep.subr.mxu0 0.0
        %2137 = vmatpush1.msra.mxu0 0.0
        %2138 = vmatprep.subr.mxu0 0.0
        %2139 = vmatpush1.msra.mxu0 0.0
        %2140 = vmatprep.subr.mxu0 0.0
        %2141 = vmatpush1.msra.mxu0 0.0
        %2142 = vmatprep.subr.mxu0 0.0
        %2143 = vmatpush1.msra.mxu0 0.0
        %2144 = vmatprep.subr.mxu0 0.0
        %2145 = vmatpush1.msra.mxu0 0.0
        %2146 = vmatprep.subr.mxu0 0.0
        %v2147 = vand.u32 %v2129, 4294901760
        %2148 = vmatpush1.msra.mxu0 %v2147
        %2149 = vmatprep.subr.mxu0 0.0
        %v2150 = vand.u32 %v2128, 4294901760
        %2151 = vmatpush1.msra.mxu0 %v2150
        %2152 = vmatprep.subr.mxu0 0.0
        %v2153 = vand.u32 %v2127, 4294901760
        %2154 = vmatpush1.msra.mxu0 %v2153
        %2155 = vmatprep.subr.mxu0 0.0
        %v2156 = vand.u32 %v2126, 4294901760
        %2157 = vmatpush1.msra.mxu0 %v2156
        %2158 = vmatprep.subr.mxu0 0.0
        %v2159 = vand.u32 %v2125, 4294901760
        %2160 = vmatpush1.msra.mxu0 %v2159
        %2161 = vmatprep.subr.mxu0 0.0
        %v2162 = vand.u32 %v2124, 4294901760
        %2163 = vmatpush1.msra.mxu0 %v2162
        %2164 = vmatprep.subr.mxu0 0.0
        %v2165 = vand.u32 %v2123, 4294901760
        %2166 = vmatpush1.msra.mxu0 %v2165
        %2167 = vmatprep.subr.mxu0 0.0
        %v2168 = vand.u32 %v2122, 4294901760
        %2169 = vmatpush1.msra.mxu0 %v2168
        %2170 = vmatprep.subr.mxu0 0.0
        %2171 = vmatpush2.msra.mxu0 0.0
        %2172 = vmatprep.subr.mxu0 0.0
        %2173 = vmatpush2.msra.mxu0 0.0
        %2174 = vmatprep.subr.mxu0 0.0
        %2175 = vmatpush2.msra.mxu0 0.0
        %2176 = vmatprep.subr.mxu0 0.0
        %2177 = vmatpush2.msra.mxu0 0.0
        %2178 = vmatprep.subr.mxu0 0.0
        %2179 = vmatpush2.msra.mxu0 0.0
        %2180 = vmatprep.subr.mxu0 0.0
        %2181 = vmatpush2.msra.mxu0 0.0
        %2182 = vmatprep.subr.mxu0 0.0
        %2183 = vmatpush2.msra.mxu0 0.0
        %2184 = vmatprep.subr.mxu0 0.0
        %2185 = vmatpush2.msra.mxu0 0.0
        %2186 = vmatprep.subr.mxu0 0.0
        %2187 = vmatpush2.msra.mxu0 0.0
        %2188 = vmatprep.subr.mxu0 0.0
        %2189 = vmatpush2.msra.mxu0 0.0
        %2190 = vmatprep.subr.mxu0 0.0
        %2191 = vmatpush2.msra.mxu0 0.0
        %2192 = vmatprep.subr.mxu0 0.0
        %2193 = vmatpush2.msra.mxu0 0.0
        %2194 = vmatprep.subr.mxu0 0.0
        %2195 = vmatpush2.msra.mxu0 0.0
        %2196 = vmatprep.subr.mxu0 0.0
        %2197 = vmatpush2.msra.mxu0 0.0
        %2198 = vmatprep.subr.mxu0 0.0
        %2199 = vmatpush2.msra.mxu0 0.0
        %2200 = vmatprep.subr.mxu0 0.0
        %2201 = vmatpush2.msra.mxu0 0.0
        %2202 = vmatprep.mubr.f32.mxu0 0.0
        %v2203 = vand.u32 %v925, 4294901760
        %v2204 = vsub.f32 %v925, %v2203
        %v2205 = vand.u32 %v2204, 4294901760
        %v2206 = vsub.f32 %v2204, %v2205
        %v2207 = vand.u32 %v2206, 4294901760
        %2208 = vmatmul.mubr.f32.gmra.mxu0 %v2207
        %v2209 = vpop.f32.mrf.mxu0
        %v2210 = vadd.f32 0.0, %v2209
        %v2211 = vpop.f32.mrf.mxu0
        %2212 = vmatprep.mubr.f32.mxu0 0.0
        %v2213 = vand.u32 %v928, 4294901760
        %v2214 = vsub.f32 %v928, %v2213
        %v2215 = vand.u32 %v2214, 4294901760
        %v2216 = vsub.f32 %v2214, %v2215
        %v2217 = vand.u32 %v2216, 4294901760
        %2218 = vmatmul.mubr.f32.gmra.mxu0 %v2217
        %v2219 = vpop.f32.mrf.mxu0
        %v2220 = vadd.f32 0.0, %v2219
        %v2221 = vpop.f32.mrf.mxu0
        %2222 = vdwg.mxu0
        %2223 = vmatprep.subr.mxu0 0.0
        %2224 = vmatpush1.msra.mxu0 0.0
        %2225 = vmatprep.subr.mxu0 0.0
        %2226 = vmatpush1.msra.mxu0 0.0
        %2227 = vmatprep.subr.mxu0 0.0
        %2228 = vmatpush1.msra.mxu0 0.0
        %2229 = vmatprep.subr.mxu0 0.0
        %2230 = vmatpush1.msra.mxu0 0.0
        %2231 = vmatprep.subr.mxu0 0.0
        %2232 = vmatpush1.msra.mxu0 0.0
        %2233 = vmatprep.subr.mxu0 0.0
        %2234 = vmatpush1.msra.mxu0 0.0
        %2235 = vmatprep.subr.mxu0 0.0
        %2236 = vmatpush1.msra.mxu0 0.0
        %2237 = vmatprep.subr.mxu0 0.0
        %2238 = vmatpush1.msra.mxu0 0.0
        %2239 = vmatprep.subr.mxu0 0.0
        %v2240 = vand.u32 %v2129, 4294901760
        %v2241 = vsub.f32 %v2129, %v2240
        %v2242 = vand.u32 %v2241, 4294901760
        %v2243 = vsub.f32 %v2241, %v2242
        %v2244 = vand.u32 %v2243, 4294901760
        %2245 = vmatpush1.msra.mxu0 %v2244
        %2246 = vmatprep.subr.mxu0 0.0
        %v2247 = vand.u32 %v2128, 4294901760
        %v2248 = vsub.f32 %v2128, %v2247
        %v2249 = vand.u32 %v2248, 4294901760
        %v2250 = vsub.f32 %v2248, %v2249
        %v2251 = vand.u32 %v2250, 4294901760
        %2252 = vmatpush1.msra.mxu0 %v2251
        %2253 = vmatprep.subr.mxu0 0.0
        %v2254 = vand.u32 %v2127, 4294901760
        %v2255 = vsub.f32 %v2127, %v2254
        %v2256 = vand.u32 %v2255, 4294901760
        %v2257 = vsub.f32 %v2255, %v2256
        %v2258 = vand.u32 %v2257, 4294901760
        %2259 = vmatpush1.msra.mxu0 %v2258
        %2260 = vmatprep.subr.mxu0 0.0
        %v2261 = vand.u32 %v2126, 4294901760
        %v2262 = vsub.f32 %v2126, %v2261
        %v2263 = vand.u32 %v2262, 4294901760
        %v2264 = vsub.f32 %v2262, %v2263
        %v2265 = vand.u32 %v2264, 4294901760
        %2266 = vmatpush1.msra.mxu0 %v2265
        %2267 = vmatprep.subr.mxu0 0.0
        %v2268 = vand.u32 %v2125, 4294901760
        %v2269 = vsub.f32 %v2125, %v2268
        %v2270 = vand.u32 %v2269, 4294901760
        %v2271 = vsub.f32 %v2269, %v2270
        %v2272 = vand.u32 %v2271, 4294901760
        %2273 = vmatpush1.msra.mxu0 %v2272
        %2274 = vmatprep.subr.mxu0 0.0
        %v2275 = vand.u32 %v2124, 4294901760
        %v2276 = vsub.f32 %v2124, %v2275
        %v2277 = vand.u32 %v2276, 4294901760
        %v2278 = vsub.f32 %v2276, %v2277
        %v2279 = vand.u32 %v2278, 4294901760
        %2280 = vmatpush1.msra.mxu0 %v2279
        %2281 = vmatprep.subr.mxu0 0.0
        %v2282 = vand.u32 %v2123, 4294901760
        %v2283 = vsub.f32 %v2123, %v2282
        %v2284 = vand.u32 %v2283, 4294901760
        %v2285 = vsub.f32 %v2283, %v2284
        %v2286 = vand.u32 %v2285, 4294901760
        %2287 = vmatpush1.msra.mxu0 %v2286
        %2288 = vmatprep.subr.mxu0 0.0
        %v2289 = vand.u32 %v2122, 4294901760
        %v2290 = vsub.f32 %v2122, %v2289
        %v2291 = vand.u32 %v2290, 4294901760
        %v2292 = vsub.f32 %v2290, %v2291
        %v2293 = vand.u32 %v2292, 4294901760
        %2294 = vmatpush1.msra.mxu0 %v2293
        %2295 = vmatprep.subr.mxu0 0.0
        %2296 = vmatpush2.msra.mxu0 0.0
        %2297 = vmatprep.subr.mxu0 0.0
        %2298 = vmatpush2.msra.mxu0 0.0
        %2299 = vmatprep.subr.mxu0 0.0
        %2300 = vmatpush2.msra.mxu0 0.0
        %2301 = vmatprep.subr.mxu0 0.0
        %2302 = vmatpush2.msra.mxu0 0.0
        %2303 = vmatprep.subr.mxu0 0.0
        %2304 = vmatpush2.msra.mxu0 0.0
        %2305 = vmatprep.subr.mxu0 0.0
        %2306 = vmatpush2.msra.mxu0 0.0
        %2307 = vmatprep.subr.mxu0 0.0
        %2308 = vmatpush2.msra.mxu0 0.0
        %2309 = vmatprep.subr.mxu0 0.0
        %2310 = vmatpush2.msra.mxu0 0.0
        %2311 = vmatprep.subr.mxu0 0.0
        %2312 = vmatpush2.msra.mxu0 0.0
        %2313 = vmatprep.subr.mxu0 0.0
        %2314 = vmatpush2.msra.mxu0 0.0
        %2315 = vmatprep.subr.mxu0 0.0
        %2316 = vmatpush2.msra.mxu0 0.0
        %2317 = vmatprep.subr.mxu0 0.0
        %2318 = vmatpush2.msra.mxu0 0.0
        %2319 = vmatprep.subr.mxu0 0.0
        %2320 = vmatpush2.msra.mxu0 0.0
        %2321 = vmatprep.subr.mxu0 0.0
        %2322 = vmatpush2.msra.mxu0 0.0
        %2323 = vmatprep.subr.mxu0 0.0
        %2324 = vmatpush2.msra.mxu0 0.0
        %2325 = vmatprep.subr.mxu0 0.0
        %2326 = vmatpush2.msra.mxu0 0.0
        %2327 = vmatprep.mubr.f32.mxu0 0.0
        %v2328 = vand.u32 %v925, 4294901760
        %2329 = vmatmul.mubr.f32.gmra.mxu0 %v2328
        %v2330 = vpop.f32.mrf.mxu0
        %v2331 = vadd.f32 %v2210, %v2330
        %v2332 = vpop.f32.mrf.mxu0
        %2333 = vmatprep.mubr.f32.mxu0 0.0
        %v2334 = vand.u32 %v928, 4294901760
        %2335 = vmatmul.mubr.f32.gmra.mxu0 %v2334
        %v2336 = vpop.f32.mrf.mxu0
        %v2337 = vadd.f32 %v2220, %v2336
        %v2338 = vpop.f32.mrf.mxu0
        %2339 = vdwg.mxu0
        %2340 = vmatprep.subr.mxu0 0.0
        %2341 = vmatpush1.msra.mxu0 0.0
        %2342 = vmatprep.subr.mxu0 0.0
        %2343 = vmatpush1.msra.mxu0 0.0
        %2344 = vmatprep.subr.mxu0 0.0
        %2345 = vmatpush1.msra.mxu0 0.0
        %2346 = vmatprep.subr.mxu0 0.0
        %2347 = vmatpush1.msra.mxu0 0.0
        %2348 = vmatprep.subr.mxu0 0.0
        %2349 = vmatpush1.msra.mxu0 0.0
        %2350 = vmatprep.subr.mxu0 0.0
        %2351 = vmatpush1.msra.mxu0 0.0
        %2352 = vmatprep.subr.mxu0 0.0
        %2353 = vmatpush1.msra.mxu0 0.0
        %2354 = vmatprep.subr.mxu0 0.0
        %2355 = vmatpush1.msra.mxu0 0.0
        %2356 = vmatprep.subr.mxu0 0.0
        %v2357 = vand.u32 %v2129, 4294901760
        %v2358 = vsub.f32 %v2129, %v2357
        %2359 = vmatpush1.msra.mxu0 %v2358
        %2360 = vmatprep.subr.mxu0 0.0
        %v2361 = vand.u32 %v2128, 4294901760
        %v2362 = vsub.f32 %v2128, %v2361
        %2363 = vmatpush1.msra.mxu0 %v2362
        %2364 = vmatprep.subr.mxu0 0.0
        %v2365 = vand.u32 %v2127, 4294901760
        %v2366 = vsub.f32 %v2127, %v2365
        %2367 = vmatpush1.msra.mxu0 %v2366
        %2368 = vmatprep.subr.mxu0 0.0
        %v2369 = vand.u32 %v2126, 4294901760
        %v2370 = vsub.f32 %v2126, %v2369
        %2371 = vmatpush1.msra.mxu0 %v2370
        %2372 = vmatprep.subr.mxu0 0.0
        %v2373 = vand.u32 %v2125, 4294901760
        %v2374 = vsub.f32 %v2125, %v2373
        %2375 = vmatpush1.msra.mxu0 %v2374
        %2376 = vmatprep.subr.mxu0 0.0
        %v2377 = vand.u32 %v2124, 4294901760
        %v2378 = vsub.f32 %v2124, %v2377
        %2379 = vmatpush1.msra.mxu0 %v2378
        %2380 = vmatprep.subr.mxu0 0.0
        %v2381 = vand.u32 %v2123, 4294901760
        %v2382 = vsub.f32 %v2123, %v2381
        %2383 = vmatpush1.msra.mxu0 %v2382
        %2384 = vmatprep.subr.mxu0 0.0
        %v2385 = vand.u32 %v2122, 4294901760
        %v2386 = vsub.f32 %v2122, %v2385
        %2387 = vmatpush1.msra.mxu0 %v2386
        %2388 = vmatprep.subr.mxu0 0.0
        %2389 = vmatpush2.msra.mxu0 0.0
        %2390 = vmatprep.subr.mxu0 0.0
        %2391 = vmatpush2.msra.mxu0 0.0
        %2392 = vmatprep.subr.mxu0 0.0
        %2393 = vmatpush2.msra.mxu0 0.0
        %2394 = vmatprep.subr.mxu0 0.0
        %2395 = vmatpush2.msra.mxu0 0.0
        %2396 = vmatprep.subr.mxu0 0.0
        %2397 = vmatpush2.msra.mxu0 0.0
        %2398 = vmatprep.subr.mxu0 0.0
        %2399 = vmatpush2.msra.mxu0 0.0
        %2400 = vmatprep.subr.mxu0 0.0
        %2401 = vmatpush2.msra.mxu0 0.0
        %2402 = vmatprep.subr.mxu0 0.0
        %2403 = vmatpush2.msra.mxu0 0.0
        %2404 = vmatprep.subr.mxu0 0.0
        %2405 = vmatpush2.msra.mxu0 0.0
        %2406 = vmatprep.subr.mxu0 0.0
        %2407 = vmatpush2.msra.mxu0 0.0
        %2408 = vmatprep.subr.mxu0 0.0
        %2409 = vmatpush2.msra.mxu0 0.0
        %2410 = vmatprep.subr.mxu0 0.0
        %2411 = vmatpush2.msra.mxu0 0.0
        %2412 = vmatprep.subr.mxu0 0.0
        %2413 = vmatpush2.msra.mxu0 0.0
        %2414 = vmatprep.subr.mxu0 0.0
        %2415 = vmatpush2.msra.mxu0 0.0
        %2416 = vmatprep.subr.mxu0 0.0
        %2417 = vmatpush2.msra.mxu0 0.0
        %2418 = vmatprep.subr.mxu0 0.0
        %2419 = vmatpush2.msra.mxu0 0.0
        %2420 = vmatprep.mubr.f32.mxu0 0.0
        %v2421 = vand.u32 %v925, 4294901760
        %v2422 = vsub.f32 %v925, %v2421
        %2423 = vmatmul.mubr.f32.gmra.mxu0 %v2422
        %v2424 = vpop.f32.mrf.mxu0
        %v2425 = vadd.f32 %v2331, %v2424
        %v2426 = vpop.f32.mrf.mxu0
        %2427 = vmatprep.mubr.f32.mxu0 0.0
        %v2428 = vand.u32 %v928, 4294901760
        %v2429 = vsub.f32 %v928, %v2428
        %2430 = vmatmul.mubr.f32.gmra.mxu0 %v2429
        %v2431 = vpop.f32.mrf.mxu0
        %v2432 = vadd.f32 %v2337, %v2431
        %v2433 = vpop.f32.mrf.mxu0
        %2434 = vdwg.mxu0
        %2435 = vmatprep.subr.mxu0 0.0
        %2436 = vmatpush1.msra.mxu0 0.0
        %2437 = vmatprep.subr.mxu0 0.0
        %2438 = vmatpush1.msra.mxu0 0.0
        %2439 = vmatprep.subr.mxu0 0.0
        %2440 = vmatpush1.msra.mxu0 0.0
        %2441 = vmatprep.subr.mxu0 0.0
        %2442 = vmatpush1.msra.mxu0 0.0
        %2443 = vmatprep.subr.mxu0 0.0
        %2444 = vmatpush1.msra.mxu0 0.0
        %2445 = vmatprep.subr.mxu0 0.0
        %2446 = vmatpush1.msra.mxu0 0.0
        %2447 = vmatprep.subr.mxu0 0.0
        %2448 = vmatpush1.msra.mxu0 0.0
        %2449 = vmatprep.subr.mxu0 0.0
        %2450 = vmatpush1.msra.mxu0 0.0
        %2451 = vmatprep.subr.mxu0 0.0
        %v2452 = vand.u32 %v2129, 4294901760
        %2453 = vmatpush1.msra.mxu0 %v2452
        %2454 = vmatprep.subr.mxu0 0.0
        %v2455 = vand.u32 %v2128, 4294901760
        %2456 = vmatpush1.msra.mxu0 %v2455
        %2457 = vmatprep.subr.mxu0 0.0
        %v2458 = vand.u32 %v2127, 4294901760
        %2459 = vmatpush1.msra.mxu0 %v2458
        %2460 = vmatprep.subr.mxu0 0.0
        %v2461 = vand.u32 %v2126, 4294901760
        %2462 = vmatpush1.msra.mxu0 %v2461
        %2463 = vmatprep.subr.mxu0 0.0
        %v2464 = vand.u32 %v2125, 4294901760
        %2465 = vmatpush1.msra.mxu0 %v2464
        %2466 = vmatprep.subr.mxu0 0.0
        %v2467 = vand.u32 %v2124, 4294901760
        %2468 = vmatpush1.msra.mxu0 %v2467
        %2469 = vmatprep.subr.mxu0 0.0
        %v2470 = vand.u32 %v2123, 4294901760
        %2471 = vmatpush1.msra.mxu0 %v2470
        %2472 = vmatprep.subr.mxu0 0.0
        %v2473 = vand.u32 %v2122, 4294901760
        %2474 = vmatpush1.msra.mxu0 %v2473
        %2475 = vmatprep.subr.mxu0 0.0
        %2476 = vmatpush2.msra.mxu0 0.0
        %2477 = vmatprep.subr.mxu0 0.0
        %2478 = vmatpush2.msra.mxu0 0.0
        %2479 = vmatprep.subr.mxu0 0.0
        %2480 = vmatpush2.msra.mxu0 0.0
        %2481 = vmatprep.subr.mxu0 0.0
        %2482 = vmatpush2.msra.mxu0 0.0
        %2483 = vmatprep.subr.mxu0 0.0
        %2484 = vmatpush2.msra.mxu0 0.0
        %2485 = vmatprep.subr.mxu0 0.0
        %2486 = vmatpush2.msra.mxu0 0.0
        %2487 = vmatprep.subr.mxu0 0.0
        %2488 = vmatpush2.msra.mxu0 0.0
        %2489 = vmatprep.subr.mxu0 0.0
        %2490 = vmatpush2.msra.mxu0 0.0
        %2491 = vmatprep.subr.mxu0 0.0
        %2492 = vmatpush2.msra.mxu0 0.0
        %2493 = vmatprep.subr.mxu0 0.0
        %2494 = vmatpush2.msra.mxu0 0.0
        %2495 = vmatprep.subr.mxu0 0.0
        %2496 = vmatpush2.msra.mxu0 0.0
        %2497 = vmatprep.subr.mxu0 0.0
        %2498 = vmatpush2.msra.mxu0 0.0
        %2499 = vmatprep.subr.mxu0 0.0
        %2500 = vmatpush2.msra.mxu0 0.0
        %2501 = vmatprep.subr.mxu0 0.0
        %2502 = vmatpush2.msra.mxu0 0.0
        %2503 = vmatprep.subr.mxu0 0.0
        %2504 = vmatpush2.msra.mxu0 0.0
        %2505 = vmatprep.subr.mxu0 0.0
        %2506 = vmatpush2.msra.mxu0 0.0
        %2507 = vmatprep.mubr.f32.mxu0 0.0
        %v2508 = vand.u32 %v925, 4294901760
        %v2509 = vsub.f32 %v925, %v2508
        %v2510 = vand.u32 %v2509, 4294901760
        %2511 = vmatmul.mubr.f32.gmra.mxu0 %v2510
        %v2512 = vpop.f32.mrf.mxu0
        %v2513 = vadd.f32 %v2425, %v2512
        %v2514 = vpop.f32.mrf.mxu0
        %2515 = vmatprep.mubr.f32.mxu0 0.0
        %v2516 = vand.u32 %v928, 4294901760
        %v2517 = vsub.f32 %v928, %v2516
        %v2518 = vand.u32 %v2517, 4294901760
        %2519 = vmatmul.mubr.f32.gmra.mxu0 %v2518
        %v2520 = vpop.f32.mrf.mxu0
        %v2521 = vadd.f32 %v2432, %v2520
        %v2522 = vpop.f32.mrf.mxu0
        %2523 = vdwg.mxu0
        %2524 = vmatprep.subr.mxu0 0.0
        %2525 = vmatpush1.msra.mxu0 0.0
        %2526 = vmatprep.subr.mxu0 0.0
        %2527 = vmatpush1.msra.mxu0 0.0
        %2528 = vmatprep.subr.mxu0 0.0
        %2529 = vmatpush1.msra.mxu0 0.0
        %2530 = vmatprep.subr.mxu0 0.0
        %2531 = vmatpush1.msra.mxu0 0.0
        %2532 = vmatprep.subr.mxu0 0.0
        %2533 = vmatpush1.msra.mxu0 0.0
        %2534 = vmatprep.subr.mxu0 0.0
        %2535 = vmatpush1.msra.mxu0 0.0
        %2536 = vmatprep.subr.mxu0 0.0
        %2537 = vmatpush1.msra.mxu0 0.0
        %2538 = vmatprep.subr.mxu0 0.0
        %2539 = vmatpush1.msra.mxu0 0.0
        %2540 = vmatprep.subr.mxu0 0.0
        %v2541 = vand.u32 %v2129, 4294901760
        %v2542 = vsub.f32 %v2129, %v2541
        %v2543 = vand.u32 %v2542, 4294901760
        %2544 = vmatpush1.msra.mxu0 %v2543
        %2545 = vmatprep.subr.mxu0 0.0
        %v2546 = vand.u32 %v2128, 4294901760
        %v2547 = vsub.f32 %v2128, %v2546
        %v2548 = vand.u32 %v2547, 4294901760
        %2549 = vmatpush1.msra.mxu0 %v2548
        %2550 = vmatprep.subr.mxu0 0.0
        %v2551 = vand.u32 %v2127, 4294901760
        %v2552 = vsub.f32 %v2127, %v2551
        %v2553 = vand.u32 %v2552, 4294901760
        %2554 = vmatpush1.msra.mxu0 %v2553
        %2555 = vmatprep.subr.mxu0 0.0
        %v2556 = vand.u32 %v2126, 4294901760
        %v2557 = vsub.f32 %v2126, %v2556
        %v2558 = vand.u32 %v2557, 4294901760
        %2559 = vmatpush1.msra.mxu0 %v2558
        %2560 = vmatprep.subr.mxu0 0.0
        %v2561 = vand.u32 %v2125, 4294901760
        %v2562 = vsub.f32 %v2125, %v2561
        %v2563 = vand.u32 %v2562, 4294901760
        %2564 = vmatpush1.msra.mxu0 %v2563
        %2565 = vmatprep.subr.mxu0 0.0
        %v2566 = vand.u32 %v2124, 4294901760
        %v2567 = vsub.f32 %v2124, %v2566
        %v2568 = vand.u32 %v2567, 4294901760
        %2569 = vmatpush1.msra.mxu0 %v2568
        %2570 = vmatprep.subr.mxu0 0.0
        %v2571 = vand.u32 %v2123, 4294901760
        %v2572 = vsub.f32 %v2123, %v2571
        %v2573 = vand.u32 %v2572, 4294901760
        %2574 = vmatpush1.msra.mxu0 %v2573
        %2575 = vmatprep.subr.mxu0 0.0
        %v2576 = vand.u32 %v2122, 4294901760
        %v2577 = vsub.f32 %v2122, %v2576
        %v2578 = vand.u32 %v2577, 4294901760
        %2579 = vmatpush1.msra.mxu0 %v2578
        %2580 = vmatprep.subr.mxu0 0.0
        %2581 = vmatpush2.msra.mxu0 0.0
        %2582 = vmatprep.subr.mxu0 0.0
        %2583 = vmatpush2.msra.mxu0 0.0
        %2584 = vmatprep.subr.mxu0 0.0
        %2585 = vmatpush2.msra.mxu0 0.0
        %2586 = vmatprep.subr.mxu0 0.0
        %2587 = vmatpush2.msra.mxu0 0.0
        %2588 = vmatprep.subr.mxu0 0.0
        %2589 = vmatpush2.msra.mxu0 0.0
        %2590 = vmatprep.subr.mxu0 0.0
        %2591 = vmatpush2.msra.mxu0 0.0
        %2592 = vmatprep.subr.mxu0 0.0
        %2593 = vmatpush2.msra.mxu0 0.0
        %2594 = vmatprep.subr.mxu0 0.0
        %2595 = vmatpush2.msra.mxu0 0.0
        %2596 = vmatprep.subr.mxu0 0.0
        %2597 = vmatpush2.msra.mxu0 0.0
        %2598 = vmatprep.subr.mxu0 0.0
        %2599 = vmatpush2.msra.mxu0 0.0
        %2600 = vmatprep.subr.mxu0 0.0
        %2601 = vmatpush2.msra.mxu0 0.0
        %2602 = vmatprep.subr.mxu0 0.0
        %2603 = vmatpush2.msra.mxu0 0.0
        %2604 = vmatprep.subr.mxu0 0.0
        %2605 = vmatpush2.msra.mxu0 0.0
        %2606 = vmatprep.subr.mxu0 0.0
        %2607 = vmatpush2.msra.mxu0 0.0
        %2608 = vmatprep.subr.mxu0 0.0
        %2609 = vmatpush2.msra.mxu0 0.0
        %2610 = vmatprep.subr.mxu0 0.0
        %2611 = vmatpush2.msra.mxu0 0.0
        %2612 = vmatprep.mubr.f32.mxu0 0.0
        %v2613 = vand.u32 %v925, 4294901760
        %2614 = vmatmul.mubr.f32.gmra.mxu0 %v2613
        %v2615 = vpop.f32.mrf.mxu0
        %v2616 = vadd.f32 %v2513, %v2615
        %v2617 = vpop.f32.mrf.mxu0
        %2618 = vmatprep.mubr.f32.mxu0 0.0
        %v2619 = vand.u32 %v928, 4294901760
        %2620 = vmatmul.mubr.f32.gmra.mxu0 %v2619
        %v2621 = vpop.f32.mrf.mxu0
        %v2622 = vadd.f32 %v2521, %v2621
        %v2623 = vpop.f32.mrf.mxu0
        %2624 = vdwg.mxu0
        %2625 = vmatprep.subr.mxu0 0.0
        %2626 = vmatpush1.msra.mxu0 0.0
        %2627 = vmatprep.subr.mxu0 0.0
        %2628 = vmatpush1.msra.mxu0 0.0
        %2629 = vmatprep.subr.mxu0 0.0
        %2630 = vmatpush1.msra.mxu0 0.0
        %2631 = vmatprep.subr.mxu0 0.0
        %2632 = vmatpush1.msra.mxu0 0.0
        %2633 = vmatprep.subr.mxu0 0.0
        %2634 = vmatpush1.msra.mxu0 0.0
        %2635 = vmatprep.subr.mxu0 0.0
        %2636 = vmatpush1.msra.mxu0 0.0
        %2637 = vmatprep.subr.mxu0 0.0
        %2638 = vmatpush1.msra.mxu0 0.0
        %2639 = vmatprep.subr.mxu0 0.0
        %2640 = vmatpush1.msra.mxu0 0.0
        %2641 = vmatprep.subr.mxu0 0.0
        %v2642 = vand.u32 %v2129, 4294901760
        %2643 = vmatpush1.msra.mxu0 %v2642
        %2644 = vmatprep.subr.mxu0 0.0
        %v2645 = vand.u32 %v2128, 4294901760
        %2646 = vmatpush1.msra.mxu0 %v2645
        %2647 = vmatprep.subr.mxu0 0.0
        %v2648 = vand.u32 %v2127, 4294901760
        %2649 = vmatpush1.msra.mxu0 %v2648
        %2650 = vmatprep.subr.mxu0 0.0
        %v2651 = vand.u32 %v2126, 4294901760
        %2652 = vmatpush1.msra.mxu0 %v2651
        %2653 = vmatprep.subr.mxu0 0.0
        %v2654 = vand.u32 %v2125, 4294901760
        %2655 = vmatpush1.msra.mxu0 %v2654
        %2656 = vmatprep.subr.mxu0 0.0
        %v2657 = vand.u32 %v2124, 4294901760
        %2658 = vmatpush1.msra.mxu0 %v2657
        %2659 = vmatprep.subr.mxu0 0.0
        %v2660 = vand.u32 %v2123, 4294901760
        %2661 = vmatpush1.msra.mxu0 %v2660
        %2662 = vmatprep.subr.mxu0 0.0
        %v2663 = vand.u32 %v2122, 4294901760
        %2664 = vmatpush1.msra.mxu0 %v2663
        %2665 = vmatprep.subr.mxu0 0.0
        %2666 = vmatpush2.msra.mxu0 0.0
        %2667 = vmatprep.subr.mxu0 0.0
        %2668 = vmatpush2.msra.mxu0 0.0
        %2669 = vmatprep.subr.mxu0 0.0
        %2670 = vmatpush2.msra.mxu0 0.0
        %2671 = vmatprep.subr.mxu0 0.0
        %2672 = vmatpush2.msra.mxu0 0.0
        %2673 = vmatprep.subr.mxu0 0.0
        %2674 = vmatpush2.msra.mxu0 0.0
        %2675 = vmatprep.subr.mxu0 0.0
        %2676 = vmatpush2.msra.mxu0 0.0
        %2677 = vmatprep.subr.mxu0 0.0
        %2678 = vmatpush2.msra.mxu0 0.0
        %2679 = vmatprep.subr.mxu0 0.0
        %2680 = vmatpush2.msra.mxu0 0.0
        %2681 = vmatprep.subr.mxu0 0.0
        %2682 = vmatpush2.msra.mxu0 0.0
        %2683 = vmatprep.subr.mxu0 0.0
        %2684 = vmatpush2.msra.mxu0 0.0
        %2685 = vmatprep.subr.mxu0 0.0
        %2686 = vmatpush2.msra.mxu0 0.0
        %2687 = vmatprep.subr.mxu0 0.0
        %2688 = vmatpush2.msra.mxu0 0.0
        %2689 = vmatprep.subr.mxu0 0.0
        %2690 = vmatpush2.msra.mxu0 0.0
        %2691 = vmatprep.subr.mxu0 0.0
        %2692 = vmatpush2.msra.mxu0 0.0
        %2693 = vmatprep.subr.mxu0 0.0
        %2694 = vmatpush2.msra.mxu0 0.0
        %2695 = vmatprep.subr.mxu0 0.0
        %2696 = vmatpush2.msra.mxu0 0.0
        %2697 = vmatprep.mubr.f32.mxu0 0.0
        %v2698 = vand.u32 %v925, 4294901760
        %2699 = vmatmul.mubr.f32.gmra.mxu0 %v2698
        %v2700 = vpop.f32.mrf.mxu0
        %v2701 = vadd.f32 %v2616, %v2700
        %v2702 = vpop.f32.mrf.mxu0
        %2703 = vmatprep.mubr.f32.mxu0 0.0
        %v2704 = vand.u32 %v928, 4294901760
        %2705 = vmatmul.mubr.f32.gmra.mxu0 %v2704
        %v2706 = vpop.f32.mrf.mxu0
        %v2707 = vadd.f32 %v2622, %v2706
        %v2708 = vpop.f32.mrf.mxu0
        %2709 = vdwg.mxu0
        %v2710 = vadd.f32 %v2120, %v2701
        %v2711 = vadd.f32 %v2120, %v2707
        %2712 = vst [vmem:[#allocation2] sm:$0x1] 0.0
        %2713 = vst [vmem:[#allocation2 + $0x11] sm:$0x1] 0.0
        %2714 = vst [vmem:[#allocation2 + $0x1] sm:$0xff] %v2113
        %2715 = vst [vmem:[#allocation2 + $0x9] sm:$0xff] %v2114
        %v2716 = vld [vmem:[%s6] sm:$0x1]
        %v2718 = vlaneseq
        %v2719 = vshrl.u32 %v2718, 7
        %v2720 = vsub.s32 0, %v2719
        %v2721 = vrot.slane %v2716, %v2720
        %s2723 = scalar_lea.vmem [#allocation6], 128
        %v2724 = vld [vmem:[%s2723] sm:$0xff]
        %v2725 = vld [vmem:[%s2723 + $0x8] sm:$0xff]
        %v2726 = vld [vmem:[%s2723 + $0x10] sm:$0xff]
        %v2727 = vld [vmem:[%s2723 + $0x18] sm:$0xff]
        %v2728 = vld [vmem:[%s2723 + $0x20] sm:$0xff]
        %v2729 = vld [vmem:[%s2723 + $0x28] sm:$0xff]
        %v2730 = vld [vmem:[%s2723 + $0x30] sm:$0xff]
        %v2731 = vld [vmem:[%s2723 + $0x38] sm:$0xff]
        %v2732 = vld [vmem:[%s2723 + $0x40] sm:$0xff]
        %v2733 = vld [vmem:[%s2723 + $0x48] sm:$0xff]
        %v2734 = vld [vmem:[%s2723 + $0x50] sm:$0xff]
        %v2735 = vld [vmem:[%s2723 + $0x58] sm:$0xff]
        %v2736 = vld [vmem:[%s2723 + $0x60] sm:$0xff]
        %v2737 = vld [vmem:[%s2723 + $0x68] sm:$0xff]
        %v2738 = vld [vmem:[%s2723 + $0x70] sm:$0xff]
        %v2739 = vld [vmem:[%s2723 + $0x78] sm:$0xff]
        %2740 = vmatprep.subr.mxu0 0.0
        %v2741 = vand.u32 %v2739, 4294901760
        %2742 = vmatpush1.msra.mxu0 %v2741
        %2743 = vmatprep.subr.mxu0 0.0
        %v2744 = vand.u32 %v2738, 4294901760
        %2745 = vmatpush1.msra.mxu0 %v2744
        %2746 = vmatprep.subr.mxu0 0.0
        %v2747 = vand.u32 %v2737, 4294901760
        %2748 = vmatpush1.msra.mxu0 %v2747
        %2749 = vmatprep.subr.mxu0 0.0
        %v2750 = vand.u32 %v2736, 4294901760
        %2751 = vmatpush1.msra.mxu0 %v2750
        %2752 = vmatprep.subr.mxu0 0.0
        %v2753 = vand.u32 %v2735, 4294901760
        %2754 = vmatpush1.msra.mxu0 %v2753
        %2755 = vmatprep.subr.mxu0 0.0
        %v2756 = vand.u32 %v2734, 4294901760
        %2757 = vmatpush1.msra.mxu0 %v2756
        %2758 = vmatprep.subr.mxu0 0.0
        %v2759 = vand.u32 %v2733, 4294901760
        %2760 = vmatpush1.msra.mxu0 %v2759
        %2761 = vmatprep.subr.mxu0 0.0
        %v2762 = vand.u32 %v2732, 4294901760
        %2763 = vmatpush1.msra.mxu0 %v2762
        %2764 = vmatprep.subr.mxu0 0.0
        %v2765 = vand.u32 %v2731, 4294901760
        %2766 = vmatpush1.msra.mxu0 %v2765
        %2767 = vmatprep.subr.mxu0 0.0
        %v2768 = vand.u32 %v2730, 4294901760
        %2769 = vmatpush1.msra.mxu0 %v2768
        %2770 = vmatprep.subr.mxu0 0.0
        %v2771 = vand.u32 %v2729, 4294901760
        %2772 = vmatpush1.msra.mxu0 %v2771
        %2773 = vmatprep.subr.mxu0 0.0
        %v2774 = vand.u32 %v2728, 4294901760
        %2775 = vmatpush1.msra.mxu0 %v2774
        %2776 = vmatprep.subr.mxu0 0.0
        %v2777 = vand.u32 %v2727, 4294901760
        %2778 = vmatpush1.msra.mxu0 %v2777
        %2779 = vmatprep.subr.mxu0 0.0
        %v2780 = vand.u32 %v2726, 4294901760
        %2781 = vmatpush1.msra.mxu0 %v2780
        %2782 = vmatprep.subr.mxu0 0.0
        %v2783 = vand.u32 %v2725, 4294901760
        %2784 = vmatpush1.msra.mxu0 %v2783
        %2785 = vmatprep.subr.mxu0 0.0
        %v2786 = vand.u32 %v2724, 4294901760
        %2787 = vmatpush1.msra.mxu0 %v2786
        %2788 = vmatprep.subr.mxu0 0.0
        %2789 = vmatpush2.msra.mxu0 0.0
        %2790 = vmatprep.subr.mxu0 0.0
        %2791 = vmatpush2.msra.mxu0 0.0
        %2792 = vmatprep.subr.mxu0 0.0
        %2793 = vmatpush2.msra.mxu0 0.0
        %2794 = vmatprep.subr.mxu0 0.0
        %2795 = vmatpush2.msra.mxu0 0.0
        %2796 = vmatprep.subr.mxu0 0.0
        %2797 = vmatpush2.msra.mxu0 0.0
        %2798 = vmatprep.subr.mxu0 0.0
        %2799 = vmatpush2.msra.mxu0 0.0
        %2800 = vmatprep.subr.mxu0 0.0
        %2801 = vmatpush2.msra.mxu0 0.0
        %2802 = vmatprep.subr.mxu0 0.0
        %2803 = vmatpush2.msra.mxu0 0.0
        %2804 = vmatprep.subr.mxu0 0.0
        %2805 = vmatpush2.msra.mxu0 0.0
        %2806 = vmatprep.subr.mxu0 0.0
        %2807 = vmatpush2.msra.mxu0 0.0
        %2808 = vmatprep.subr.mxu0 0.0
        %2809 = vmatpush2.msra.mxu0 0.0
        %2810 = vmatprep.subr.mxu0 0.0
        %2811 = vmatpush2.msra.mxu0 0.0
        %2812 = vmatprep.subr.mxu0 0.0
        %2813 = vmatpush2.msra.mxu0 0.0
        %2814 = vmatprep.subr.mxu0 0.0
        %2815 = vmatpush2.msra.mxu0 0.0
        %2816 = vmatprep.subr.mxu0 0.0
        %2817 = vmatpush2.msra.mxu0 0.0
        %2818 = vmatprep.subr.mxu0 0.0
        %2819 = vmatpush2.msra.mxu0 0.0
        %2820 = vmatprep.mubr.f32.mxu0 0.0
        %v2821 = vand.u32 %v2113, 4294901760
        %v2822 = vsub.f32 %v2113, %v2821
        %v2823 = vand.u32 %v2822, 4294901760
        %v2824 = vsub.f32 %v2822, %v2823
        %v2825 = vand.u32 %v2824, 4294901760
        %2826 = vmatmul.mubr.f32.gmra.mxu0 %v2825
        %v2827 = vpop.f32.mrf.mxu0
        %v2828 = vadd.f32 0.0, %v2827
        %v2829 = vpop.f32.mrf.mxu0
        %2830 = vmatprep.mubr.f32.mxu0 0.0
        %v2831 = vand.u32 %v2114, 4294901760
        %v2832 = vsub.f32 %v2114, %v2831
        %v2833 = vand.u32 %v2832, 4294901760
        %v2834 = vsub.f32 %v2832, %v2833
        %v2835 = vand.u32 %v2834, 4294901760
        %2836 = vmatmul.mubr.f32.gmra.mxu0 %v2835
        %v2837 = vpop.f32.mrf.mxu0
        %v2838 = vadd.f32 0.0, %v2837
        %v2839 = vpop.f32.mrf.mxu0
        %2840 = vdwg.mxu0
        %2841 = vmatprep.subr.mxu0 0.0
        %v2842 = vand.u32 %v2739, 4294901760
        %v2843 = vsub.f32 %v2739, %v2842
        %v2844 = vand.u32 %v2843, 4294901760
        %v2845 = vsub.f32 %v2843, %v2844
        %v2846 = vand.u32 %v2845, 4294901760
        %2847 = vmatpush1.msra.mxu0 %v2846
        %2848 = vmatprep.subr.mxu0 0.0
        %v2849 = vand.u32 %v2738, 4294901760
        %v2850 = vsub.f32 %v2738, %v2849
        %v2851 = vand.u32 %v2850, 4294901760
        %v2852 = vsub.f32 %v2850, %v2851
        %v2853 = vand.u32 %v2852, 4294901760
        %2854 = vmatpush1.msra.mxu0 %v2853
        %2855 = vmatprep.subr.mxu0 0.0
        %v2856 = vand.u32 %v2737, 4294901760
        %v2857 = vsub.f32 %v2737, %v2856
        %v2858 = vand.u32 %v2857, 4294901760
        %v2859 = vsub.f32 %v2857, %v2858
        %v2860 = vand.u32 %v2859, 4294901760
        %2861 = vmatpush1.msra.mxu0 %v2860
        %2862 = vmatprep.subr.mxu0 0.0
        %v2863 = vand.u32 %v2736, 4294901760
        %v2864 = vsub.f32 %v2736, %v2863
        %v2865 = vand.u32 %v2864, 4294901760
        %v2866 = vsub.f32 %v2864, %v2865
        %v2867 = vand.u32 %v2866, 4294901760
        %2868 = vmatpush1.msra.mxu0 %v2867
        %2869 = vmatprep.subr.mxu0 0.0
        %v2870 = vand.u32 %v2735, 4294901760
        %v2871 = vsub.f32 %v2735, %v2870
        %v2872 = vand.u32 %v2871, 4294901760
        %v2873 = vsub.f32 %v2871, %v2872
        %v2874 = vand.u32 %v2873, 4294901760
        %2875 = vmatpush1.msra.mxu0 %v2874
        %2876 = vmatprep.subr.mxu0 0.0
        %v2877 = vand.u32 %v2734, 4294901760
        %v2878 = vsub.f32 %v2734, %v2877
        %v2879 = vand.u32 %v2878, 4294901760
        %v2880 = vsub.f32 %v2878, %v2879
        %v2881 = vand.u32 %v2880, 4294901760
        %2882 = vmatpush1.msra.mxu0 %v2881
        %2883 = vmatprep.subr.mxu0 0.0
        %v2884 = vand.u32 %v2733, 4294901760
        %v2885 = vsub.f32 %v2733, %v2884
        %v2886 = vand.u32 %v2885, 4294901760
        %v2887 = vsub.f32 %v2885, %v2886
        %v2888 = vand.u32 %v2887, 4294901760
        %2889 = vmatpush1.msra.mxu0 %v2888
        %2890 = vmatprep.subr.mxu0 0.0
        %v2891 = vand.u32 %v2732, 4294901760
        %v2892 = vsub.f32 %v2732, %v2891
        %v2893 = vand.u32 %v2892, 4294901760
        %v2894 = vsub.f32 %v2892, %v2893
        %v2895 = vand.u32 %v2894, 4294901760
        %2896 = vmatpush1.msra.mxu0 %v2895
        %2897 = vmatprep.subr.mxu0 0.0
        %v2898 = vand.u32 %v2731, 4294901760
        %v2899 = vsub.f32 %v2731, %v2898
        %v2900 = vand.u32 %v2899, 4294901760
        %v2901 = vsub.f32 %v2899, %v2900
        %v2902 = vand.u32 %v2901, 4294901760
        %2903 = vmatpush1.msra.mxu0 %v2902
        %2904 = vmatprep.subr.mxu0 0.0
        %v2905 = vand.u32 %v2730, 4294901760
        %v2906 = vsub.f32 %v2730, %v2905
        %v2907 = vand.u32 %v2906, 4294901760
        %v2908 = vsub.f32 %v2906, %v2907
        %v2909 = vand.u32 %v2908, 4294901760
        %2910 = vmatpush1.msra.mxu0 %v2909
        %2911 = vmatprep.subr.mxu0 0.0
        %v2912 = vand.u32 %v2729, 4294901760
        %v2913 = vsub.f32 %v2729, %v2912
        %v2914 = vand.u32 %v2913, 4294901760
        %v2915 = vsub.f32 %v2913, %v2914
        %v2916 = vand.u32 %v2915, 4294901760
        %2917 = vmatpush1.msra.mxu0 %v2916
        %2918 = vmatprep.subr.mxu0 0.0
        %v2919 = vand.u32 %v2728, 4294901760
        %v2920 = vsub.f32 %v2728, %v2919
        %v2921 = vand.u32 %v2920, 4294901760
        %v2922 = vsub.f32 %v2920, %v2921
        %v2923 = vand.u32 %v2922, 4294901760
        %2924 = vmatpush1.msra.mxu0 %v2923
        %2925 = vmatprep.subr.mxu0 0.0
        %v2926 = vand.u32 %v2727, 4294901760
        %v2927 = vsub.f32 %v2727, %v2926
        %v2928 = vand.u32 %v2927, 4294901760
        %v2929 = vsub.f32 %v2927, %v2928
        %v2930 = vand.u32 %v2929, 4294901760
        %2931 = vmatpush1.msra.mxu0 %v2930
        %2932 = vmatprep.subr.mxu0 0.0
        %v2933 = vand.u32 %v2726, 4294901760
        %v2934 = vsub.f32 %v2726, %v2933
        %v2935 = vand.u32 %v2934, 4294901760
        %v2936 = vsub.f32 %v2934, %v2935
        %v2937 = vand.u32 %v2936, 4294901760
        %2938 = vmatpush1.msra.mxu0 %v2937
        %2939 = vmatprep.subr.mxu0 0.0
        %v2940 = vand.u32 %v2725, 4294901760
        %v2941 = vsub.f32 %v2725, %v2940
        %v2942 = vand.u32 %v2941, 4294901760
        %v2943 = vsub.f32 %v2941, %v2942
        %v2944 = vand.u32 %v2943, 4294901760
        %2945 = vmatpush1.msra.mxu0 %v2944
        %2946 = vmatprep.subr.mxu0 0.0
        %v2947 = vand.u32 %v2724, 4294901760
        %v2948 = vsub.f32 %v2724, %v2947
        %v2949 = vand.u32 %v2948, 4294901760
        %v2950 = vsub.f32 %v2948, %v2949
        %v2951 = vand.u32 %v2950, 4294901760
        %2952 = vmatpush1.msra.mxu0 %v2951
        %2953 = vmatprep.subr.mxu0 0.0
        %2954 = vmatpush2.msra.mxu0 0.0
        %2955 = vmatprep.subr.mxu0 0.0
        %2956 = vmatpush2.msra.mxu0 0.0
        %2957 = vmatprep.subr.mxu0 0.0
        %2958 = vmatpush2.msra.mxu0 0.0
        %2959 = vmatprep.subr.mxu0 0.0
        %2960 = vmatpush2.msra.mxu0 0.0
        %2961 = vmatprep.subr.mxu0 0.0
        %2962 = vmatpush2.msra.mxu0 0.0
        %2963 = vmatprep.subr.mxu0 0.0
        %2964 = vmatpush2.msra.mxu0 0.0
        %2965 = vmatprep.subr.mxu0 0.0
        %2966 = vmatpush2.msra.mxu0 0.0
        %2967 = vmatprep.subr.mxu0 0.0
        %2968 = vmatpush2.msra.mxu0 0.0
        %2969 = vmatprep.subr.mxu0 0.0
        %2970 = vmatpush2.msra.mxu0 0.0
        %2971 = vmatprep.subr.mxu0 0.0
        %2972 = vmatpush2.msra.mxu0 0.0
        %2973 = vmatprep.subr.mxu0 0.0
        %2974 = vmatpush2.msra.mxu0 0.0
        %2975 = vmatprep.subr.mxu0 0.0
        %2976 = vmatpush2.msra.mxu0 0.0
        %2977 = vmatprep.subr.mxu0 0.0
        %2978 = vmatpush2.msra.mxu0 0.0
        %2979 = vmatprep.subr.mxu0 0.0
        %2980 = vmatpush2.msra.mxu0 0.0
        %2981 = vmatprep.subr.mxu0 0.0
        %2982 = vmatpush2.msra.mxu0 0.0
        %2983 = vmatprep.subr.mxu0 0.0
        %2984 = vmatpush2.msra.mxu0 0.0
        %2985 = vmatprep.mubr.f32.mxu0 0.0
        %v2986 = vand.u32 %v2113, 4294901760
        %2987 = vmatmul.mubr.f32.gmra.mxu0 %v2986
        %v2988 = vpop.f32.mrf.mxu0
        %v2989 = vadd.f32 %v2828, %v2988
        %v2990 = vpop.f32.mrf.mxu0
        %2991 = vmatprep.mubr.f32.mxu0 0.0
        %v2992 = vand.u32 %v2114, 4294901760
        %2993 = vmatmul.mubr.f32.gmra.mxu0 %v2992
        %v2994 = vpop.f32.mrf.mxu0
        %v2995 = vadd.f32 %v2838, %v2994
        %v2996 = vpop.f32.mrf.mxu0
        %2997 = vdwg.mxu0
        %2998 = vmatprep.subr.mxu0 0.0
        %v2999 = vand.u32 %v2739, 4294901760
        %v3000 = vsub.f32 %v2739, %v2999
        %3001 = vmatpush1.msra.mxu0 %v3000
        %3002 = vmatprep.subr.mxu0 0.0
        %v3003 = vand.u32 %v2738, 4294901760
        %v3004 = vsub.f32 %v2738, %v3003
        %3005 = vmatpush1.msra.mxu0 %v3004
        %3006 = vmatprep.subr.mxu0 0.0
        %v3007 = vand.u32 %v2737, 4294901760
        %v3008 = vsub.f32 %v2737, %v3007
        %3009 = vmatpush1.msra.mxu0 %v3008
        %3010 = vmatprep.subr.mxu0 0.0
        %v3011 = vand.u32 %v2736, 4294901760
        %v3012 = vsub.f32 %v2736, %v3011
        %3013 = vmatpush1.msra.mxu0 %v3012
        %3014 = vmatprep.subr.mxu0 0.0
        %v3015 = vand.u32 %v2735, 4294901760
        %v3016 = vsub.f32 %v2735, %v3015
        %3017 = vmatpush1.msra.mxu0 %v3016
        %3018 = vmatprep.subr.mxu0 0.0
        %v3019 = vand.u32 %v2734, 4294901760
        %v3020 = vsub.f32 %v2734, %v3019
        %3021 = vmatpush1.msra.mxu0 %v3020
        %3022 = vmatprep.subr.mxu0 0.0
        %v3023 = vand.u32 %v2733, 4294901760
        %v3024 = vsub.f32 %v2733, %v3023
        %3025 = vmatpush1.msra.mxu0 %v3024
        %3026 = vmatprep.subr.mxu0 0.0
        %v3027 = vand.u32 %v2732, 4294901760
        %v3028 = vsub.f32 %v2732, %v3027
        %3029 = vmatpush1.msra.mxu0 %v3028
        %3030 = vmatprep.subr.mxu0 0.0
        %v3031 = vand.u32 %v2731, 4294901760
        %v3032 = vsub.f32 %v2731, %v3031
        %3033 = vmatpush1.msra.mxu0 %v3032
        %3034 = vmatprep.subr.mxu0 0.0
        %v3035 = vand.u32 %v2730, 4294901760
        %v3036 = vsub.f32 %v2730, %v3035
        %3037 = vmatpush1.msra.mxu0 %v3036
        %3038 = vmatprep.subr.mxu0 0.0
        %v3039 = vand.u32 %v2729, 4294901760
        %v3040 = vsub.f32 %v2729, %v3039
        %3041 = vmatpush1.msra.mxu0 %v3040
        %3042 = vmatprep.subr.mxu0 0.0
        %v3043 = vand.u32 %v2728, 4294901760
        %v3044 = vsub.f32 %v2728, %v3043
        %3045 = vmatpush1.msra.mxu0 %v3044
        %3046 = vmatprep.subr.mxu0 0.0
        %v3047 = vand.u32 %v2727, 4294901760
        %v3048 = vsub.f32 %v2727, %v3047
        %3049 = vmatpush1.msra.mxu0 %v3048
        %3050 = vmatprep.subr.mxu0 0.0
        %v3051 = vand.u32 %v2726, 4294901760
        %v3052 = vsub.f32 %v2726, %v3051
        %3053 = vmatpush1.msra.mxu0 %v3052
        %3054 = vmatprep.subr.mxu0 0.0
        %v3055 = vand.u32 %v2725, 4294901760
        %v3056 = vsub.f32 %v2725, %v3055
        %3057 = vmatpush1.msra.mxu0 %v3056
        %3058 = vmatprep.subr.mxu0 0.0
        %v3059 = vand.u32 %v2724, 4294901760
        %v3060 = vsub.f32 %v2724, %v3059
        %3061 = vmatpush1.msra.mxu0 %v3060
        %3062 = vmatprep.subr.mxu0 0.0
        %3063 = vmatpush2.msra.mxu0 0.0
        %3064 = vmatprep.subr.mxu0 0.0
        %3065 = vmatpush2.msra.mxu0 0.0
        %3066 = vmatprep.subr.mxu0 0.0
        %3067 = vmatpush2.msra.mxu0 0.0
        %3068 = vmatprep.subr.mxu0 0.0
        %3069 = vmatpush2.msra.mxu0 0.0
        %3070 = vmatprep.subr.mxu0 0.0
        %3071 = vmatpush2.msra.mxu0 0.0
        %3072 = vmatprep.subr.mxu0 0.0
        %3073 = vmatpush2.msra.mxu0 0.0
        %3074 = vmatprep.subr.mxu0 0.0
        %3075 = vmatpush2.msra.mxu0 0.0
        %3076 = vmatprep.subr.mxu0 0.0
        %3077 = vmatpush2.msra.mxu0 0.0
        %3078 = vmatprep.subr.mxu0 0.0
        %3079 = vmatpush2.msra.mxu0 0.0
        %3080 = vmatprep.subr.mxu0 0.0
        %3081 = vmatpush2.msra.mxu0 0.0
        %3082 = vmatprep.subr.mxu0 0.0
        %3083 = vmatpush2.msra.mxu0 0.0
        %3084 = vmatprep.subr.mxu0 0.0
        %3085 = vmatpush2.msra.mxu0 0.0
        %3086 = vmatprep.subr.mxu0 0.0
        %3087 = vmatpush2.msra.mxu0 0.0
        %3088 = vmatprep.subr.mxu0 0.0
        %3089 = vmatpush2.msra.mxu0 0.0
        %3090 = vmatprep.subr.mxu0 0.0
        %3091 = vmatpush2.msra.mxu0 0.0
        %3092 = vmatprep.subr.mxu0 0.0
        %3093 = vmatpush2.msra.mxu0 0.0
        %3094 = vmatprep.mubr.f32.mxu0 0.0
        %v3095 = vand.u32 %v2113, 4294901760
        %v3096 = vsub.f32 %v2113, %v3095
        %3097 = vmatmul.mubr.f32.gmra.mxu0 %v3096
        %v3098 = vpop.f32.mrf.mxu0
        %v3099 = vadd.f32 %v2989, %v3098
        %v3100 = vpop.f32.mrf.mxu0
        %3101 = vmatprep.mubr.f32.mxu0 0.0
        %v3102 = vand.u32 %v2114, 4294901760
        %v3103 = vsub.f32 %v2114, %v3102
        %3104 = vmatmul.mubr.f32.gmra.mxu0 %v3103
        %v3105 = vpop.f32.mrf.mxu0
        %v3106 = vadd.f32 %v2995, %v3105
        %v3107 = vpop.f32.mrf.mxu0
        %3108 = vdwg.mxu0
        %3109 = vmatprep.subr.mxu0 0.0
        %v3110 = vand.u32 %v2739, 4294901760
        %3111 = vmatpush1.msra.mxu0 %v3110
        %3112 = vmatprep.subr.mxu0 0.0
        %v3113 = vand.u32 %v2738, 4294901760
        %3114 = vmatpush1.msra.mxu0 %v3113
        %3115 = vmatprep.subr.mxu0 0.0
        %v3116 = vand.u32 %v2737, 4294901760
        %3117 = vmatpush1.msra.mxu0 %v3116
        %3118 = vmatprep.subr.mxu0 0.0
        %v3119 = vand.u32 %v2736, 4294901760
        %3120 = vmatpush1.msra.mxu0 %v3119
        %3121 = vmatprep.subr.mxu0 0.0
        %v3122 = vand.u32 %v2735, 4294901760
        %3123 = vmatpush1.msra.mxu0 %v3122
        %3124 = vmatprep.subr.mxu0 0.0
        %v3125 = vand.u32 %v2734, 4294901760
        %3126 = vmatpush1.msra.mxu0 %v3125
        %3127 = vmatprep.subr.mxu0 0.0
        %v3128 = vand.u32 %v2733, 4294901760
        %3129 = vmatpush1.msra.mxu0 %v3128
        %3130 = vmatprep.subr.mxu0 0.0
        %v3131 = vand.u32 %v2732, 4294901760
        %3132 = vmatpush1.msra.mxu0 %v3131
        %3133 = vmatprep.subr.mxu0 0.0
        %v3134 = vand.u32 %v2731, 4294901760
        %3135 = vmatpush1.msra.mxu0 %v3134
        %3136 = vmatprep.subr.mxu0 0.0
        %v3137 = vand.u32 %v2730, 4294901760
        %3138 = vmatpush1.msra.mxu0 %v3137
        %3139 = vmatprep.subr.mxu0 0.0
        %v3140 = vand.u32 %v2729, 4294901760
        %3141 = vmatpush1.msra.mxu0 %v3140
        %3142 = vmatprep.subr.mxu0 0.0
        %v3143 = vand.u32 %v2728, 4294901760
        %3144 = vmatpush1.msra.mxu0 %v3143
        %3145 = vmatprep.subr.mxu0 0.0
        %v3146 = vand.u32 %v2727, 4294901760
        %3147 = vmatpush1.msra.mxu0 %v3146
        %3148 = vmatprep.subr.mxu0 0.0
        %v3149 = vand.u32 %v2726, 4294901760
        %3150 = vmatpush1.msra.mxu0 %v3149
        %3151 = vmatprep.subr.mxu0 0.0
        %v3152 = vand.u32 %v2725, 4294901760
        %3153 = vmatpush1.msra.mxu0 %v3152
        %3154 = vmatprep.subr.mxu0 0.0
        %v3155 = vand.u32 %v2724, 4294901760
        %3156 = vmatpush1.msra.mxu0 %v3155
        %3157 = vmatprep.subr.mxu0 0.0
        %3158 = vmatpush2.msra.mxu0 0.0
        %3159 = vmatprep.subr.mxu0 0.0
        %3160 = vmatpush2.msra.mxu0 0.0
        %3161 = vmatprep.subr.mxu0 0.0
        %3162 = vmatpush2.msra.mxu0 0.0
        %3163 = vmatprep.subr.mxu0 0.0
        %3164 = vmatpush2.msra.mxu0 0.0
        %3165 = vmatprep.subr.mxu0 0.0
        %3166 = vmatpush2.msra.mxu0 0.0
        %3167 = vmatprep.subr.mxu0 0.0
        %3168 = vmatpush2.msra.mxu0 0.0
        %3169 = vmatprep.subr.mxu0 0.0
        %3170 = vmatpush2.msra.mxu0 0.0
        %3171 = vmatprep.subr.mxu0 0.0
        %3172 = vmatpush2.msra.mxu0 0.0
        %3173 = vmatprep.subr.mxu0 0.0
        %3174 = vmatpush2.msra.mxu0 0.0
        %3175 = vmatprep.subr.mxu0 0.0
        %3176 = vmatpush2.msra.mxu0 0.0
        %3177 = vmatprep.subr.mxu0 0.0
        %3178 = vmatpush2.msra.mxu0 0.0
        %3179 = vmatprep.subr.mxu0 0.0
        %3180 = vmatpush2.msra.mxu0 0.0
        %3181 = vmatprep.subr.mxu0 0.0
        %3182 = vmatpush2.msra.mxu0 0.0
        %3183 = vmatprep.subr.mxu0 0.0
        %3184 = vmatpush2.msra.mxu0 0.0
        %3185 = vmatprep.subr.mxu0 0.0
        %3186 = vmatpush2.msra.mxu0 0.0
        %3187 = vmatprep.subr.mxu0 0.0
        %3188 = vmatpush2.msra.mxu0 0.0
        %3189 = vmatprep.mubr.f32.mxu0 0.0
        %v3190 = vand.u32 %v2113, 4294901760
        %v3191 = vsub.f32 %v2113, %v3190
        %v3192 = vand.u32 %v3191, 4294901760
        %3193 = vmatmul.mubr.f32.gmra.mxu0 %v3192
        %v3194 = vpop.f32.mrf.mxu0
        %v3195 = vadd.f32 %v3099, %v3194
        %v3196 = vpop.f32.mrf.mxu0
        %3197 = vmatprep.mubr.f32.mxu0 0.0
        %v3198 = vand.u32 %v2114, 4294901760
        %v3199 = vsub.f32 %v2114, %v3198
        %v3200 = vand.u32 %v3199, 4294901760
        %3201 = vmatmul.mubr.f32.gmra.mxu0 %v3200
        %v3202 = vpop.f32.mrf.mxu0
        %v3203 = vadd.f32 %v3106, %v3202
        %v3204 = vpop.f32.mrf.mxu0
        %3205 = vdwg.mxu0
        %3206 = vmatprep.subr.mxu0 0.0
        %v3207 = vand.u32 %v2739, 4294901760
        %v3208 = vsub.f32 %v2739, %v3207
        %v3209 = vand.u32 %v3208, 4294901760
        %3210 = vmatpush1.msra.mxu0 %v3209
        %3211 = vmatprep.subr.mxu0 0.0
        %v3212 = vand.u32 %v2738, 4294901760
        %v3213 = vsub.f32 %v2738, %v3212
        %v3214 = vand.u32 %v3213, 4294901760
        %3215 = vmatpush1.msra.mxu0 %v3214
        %3216 = vmatprep.subr.mxu0 0.0
        %v3217 = vand.u32 %v2737, 4294901760
        %v3218 = vsub.f32 %v2737, %v3217
        %v3219 = vand.u32 %v3218, 4294901760
        %3220 = vmatpush1.msra.mxu0 %v3219
        %3221 = vmatprep.subr.mxu0 0.0
        %v3222 = vand.u32 %v2736, 4294901760
        %v3223 = vsub.f32 %v2736, %v3222
        %v3224 = vand.u32 %v3223, 4294901760
        %3225 = vmatpush1.msra.mxu0 %v3224
        %3226 = vmatprep.subr.mxu0 0.0
        %v3227 = vand.u32 %v2735, 4294901760
        %v3228 = vsub.f32 %v2735, %v3227
        %v3229 = vand.u32 %v3228, 4294901760
        %3230 = vmatpush1.msra.mxu0 %v3229
        %3231 = vmatprep.subr.mxu0 0.0
        %v3232 = vand.u32 %v2734, 4294901760
        %v3233 = vsub.f32 %v2734, %v3232
        %v3234 = vand.u32 %v3233, 4294901760
        %3235 = vmatpush1.msra.mxu0 %v3234
        %3236 = vmatprep.subr.mxu0 0.0
        %v3237 = vand.u32 %v2733, 4294901760
        %v3238 = vsub.f32 %v2733, %v3237
        %v3239 = vand.u32 %v3238, 4294901760
        %3240 = vmatpush1.msra.mxu0 %v3239
        %3241 = vmatprep.subr.mxu0 0.0
        %v3242 = vand.u32 %v2732, 4294901760
        %v3243 = vsub.f32 %v2732, %v3242
        %v3244 = vand.u32 %v3243, 4294901760
        %3245 = vmatpush1.msra.mxu0 %v3244
        %3246 = vmatprep.subr.mxu0 0.0
        %v3247 = vand.u32 %v2731, 4294901760
        %v3248 = vsub.f32 %v2731, %v3247
        %v3249 = vand.u32 %v3248, 4294901760
        %3250 = vmatpush1.msra.mxu0 %v3249
        %3251 = vmatprep.subr.mxu0 0.0
        %v3252 = vand.u32 %v2730, 4294901760
        %v3253 = vsub.f32 %v2730, %v3252
        %v3254 = vand.u32 %v3253, 4294901760
        %3255 = vmatpush1.msra.mxu0 %v3254
        %3256 = vmatprep.subr.mxu0 0.0
        %v3257 = vand.u32 %v2729, 4294901760
        %v3258 = vsub.f32 %v2729, %v3257
        %v3259 = vand.u32 %v3258, 4294901760
        %3260 = vmatpush1.msra.mxu0 %v3259
        %3261 = vmatprep.subr.mxu0 0.0
        %v3262 = vand.u32 %v2728, 4294901760
        %v3263 = vsub.f32 %v2728, %v3262
        %v3264 = vand.u32 %v3263, 4294901760
        %3265 = vmatpush1.msra.mxu0 %v3264
        %3266 = vmatprep.subr.mxu0 0.0
        %v3267 = vand.u32 %v2727, 4294901760
        %v3268 = vsub.f32 %v2727, %v3267
        %v3269 = vand.u32 %v3268, 4294901760
        %3270 = vmatpush1.msra.mxu0 %v3269
        %3271 = vmatprep.subr.mxu0 0.0
        %v3272 = vand.u32 %v2726, 4294901760
        %v3273 = vsub.f32 %v2726, %v3272
        %v3274 = vand.u32 %v3273, 4294901760
        %3275 = vmatpush1.msra.mxu0 %v3274
        %3276 = vmatprep.subr.mxu0 0.0
        %v3277 = vand.u32 %v2725, 4294901760
        %v3278 = vsub.f32 %v2725, %v3277
        %v3279 = vand.u32 %v3278, 4294901760
        %3280 = vmatpush1.msra.mxu0 %v3279
        %3281 = vmatprep.subr.mxu0 0.0
        %v3282 = vand.u32 %v2724, 4294901760
        %v3283 = vsub.f32 %v2724, %v3282
        %v3284 = vand.u32 %v3283, 4294901760
        %3285 = vmatpush1.msra.mxu0 %v3284
        %3286 = vmatprep.subr.mxu0 0.0
        %3287 = vmatpush2.msra.mxu0 0.0
        %3288 = vmatprep.subr.mxu0 0.0
        %3289 = vmatpush2.msra.mxu0 0.0
        %3290 = vmatprep.subr.mxu0 0.0
        %3291 = vmatpush2.msra.mxu0 0.0
        %3292 = vmatprep.subr.mxu0 0.0
        %3293 = vmatpush2.msra.mxu0 0.0
        %3294 = vmatprep.subr.mxu0 0.0
        %3295 = vmatpush2.msra.mxu0 0.0
        %3296 = vmatprep.subr.mxu0 0.0
        %3297 = vmatpush2.msra.mxu0 0.0
        %3298 = vmatprep.subr.mxu0 0.0
        %3299 = vmatpush2.msra.mxu0 0.0
        %3300 = vmatprep.subr.mxu0 0.0
        %3301 = vmatpush2.msra.mxu0 0.0
        %3302 = vmatprep.subr.mxu0 0.0
        %3303 = vmatpush2.msra.mxu0 0.0
        %3304 = vmatprep.subr.mxu0 0.0
        %3305 = vmatpush2.msra.mxu0 0.0
        %3306 = vmatprep.subr.mxu0 0.0
        %3307 = vmatpush2.msra.mxu0 0.0
        %3308 = vmatprep.subr.mxu0 0.0
        %3309 = vmatpush2.msra.mxu0 0.0
        %3310 = vmatprep.subr.mxu0 0.0
        %3311 = vmatpush2.msra.mxu0 0.0
        %3312 = vmatprep.subr.mxu0 0.0
        %3313 = vmatpush2.msra.mxu0 0.0
        %3314 = vmatprep.subr.mxu0 0.0
        %3315 = vmatpush2.msra.mxu0 0.0
        %3316 = vmatprep.subr.mxu0 0.0
        %3317 = vmatpush2.msra.mxu0 0.0
        %3318 = vmatprep.mubr.f32.mxu0 0.0
        %v3319 = vand.u32 %v2113, 4294901760
        %3320 = vmatmul.mubr.f32.gmra.mxu0 %v3319
        %v3321 = vpop.f32.mrf.mxu0
        %v3322 = vadd.f32 %v3195, %v3321
        %v3323 = vpop.f32.mrf.mxu0
        %3324 = vmatprep.mubr.f32.mxu0 0.0
        %v3325 = vand.u32 %v2114, 4294901760
        %3326 = vmatmul.mubr.f32.gmra.mxu0 %v3325
        %v3327 = vpop.f32.mrf.mxu0
        %v3328 = vadd.f32 %v3203, %v3327
        %v3329 = vpop.f32.mrf.mxu0
        %3330 = vdwg.mxu0
        %3331 = vmatprep.subr.mxu0 0.0
        %v3332 = vand.u32 %v2739, 4294901760
        %3333 = vmatpush1.msra.mxu0 %v3332
        %3334 = vmatprep.subr.mxu0 0.0
        %v3335 = vand.u32 %v2738, 4294901760
        %3336 = vmatpush1.msra.mxu0 %v3335
        %3337 = vmatprep.subr.mxu0 0.0
        %v3338 = vand.u32 %v2737, 4294901760
        %3339 = vmatpush1.msra.mxu0 %v3338
        %3340 = vmatprep.subr.mxu0 0.0
        %v3341 = vand.u32 %v2736, 4294901760
        %3342 = vmatpush1.msra.mxu0 %v3341
        %3343 = vmatprep.subr.mxu0 0.0
        %v3344 = vand.u32 %v2735, 4294901760
        %3345 = vmatpush1.msra.mxu0 %v3344
        %3346 = vmatprep.subr.mxu0 0.0
        %v3347 = vand.u32 %v2734, 4294901760
        %3348 = vmatpush1.msra.mxu0 %v3347
        %3349 = vmatprep.subr.mxu0 0.0
        %v3350 = vand.u32 %v2733, 4294901760
        %3351 = vmatpush1.msra.mxu0 %v3350
        %3352 = vmatprep.subr.mxu0 0.0
        %v3353 = vand.u32 %v2732, 4294901760
        %3354 = vmatpush1.msra.mxu0 %v3353
        %3355 = vmatprep.subr.mxu0 0.0
        %v3356 = vand.u32 %v2731, 4294901760
        %3357 = vmatpush1.msra.mxu0 %v3356
        %3358 = vmatprep.subr.mxu0 0.0
        %v3359 = vand.u32 %v2730, 4294901760
        %3360 = vmatpush1.msra.mxu0 %v3359
        %3361 = vmatprep.subr.mxu0 0.0
        %v3362 = vand.u32 %v2729, 4294901760
        %3363 = vmatpush1.msra.mxu0 %v3362
        %3364 = vmatprep.subr.mxu0 0.0
        %v3365 = vand.u32 %v2728, 4294901760
        %3366 = vmatpush1.msra.mxu0 %v3365
        %3367 = vmatprep.subr.mxu0 0.0
        %v3368 = vand.u32 %v2727, 4294901760
        %3369 = vmatpush1.msra.mxu0 %v3368
        %3370 = vmatprep.subr.mxu0 0.0
        %v3371 = vand.u32 %v2726, 4294901760
        %3372 = vmatpush1.msra.mxu0 %v3371
        %3373 = vmatprep.subr.mxu0 0.0
        %v3374 = vand.u32 %v2725, 4294901760
        %3375 = vmatpush1.msra.mxu0 %v3374
        %3376 = vmatprep.subr.mxu0 0.0
        %v3377 = vand.u32 %v2724, 4294901760
        %3378 = vmatpush1.msra.mxu0 %v3377
        %3379 = vmatprep.subr.mxu0 0.0
        %3380 = vmatpush2.msra.mxu0 0.0
        %3381 = vmatprep.subr.mxu0 0.0
        %3382 = vmatpush2.msra.mxu0 0.0
        %3383 = vmatprep.subr.mxu0 0.0
        %3384 = vmatpush2.msra.mxu0 0.0
        %3385 = vmatprep.subr.mxu0 0.0
        %3386 = vmatpush2.msra.mxu0 0.0
        %3387 = vmatprep.subr.mxu0 0.0
        %3388 = vmatpush2.msra.mxu0 0.0
        %3389 = vmatprep.subr.mxu0 0.0
        %3390 = vmatpush2.msra.mxu0 0.0
        %3391 = vmatprep.subr.mxu0 0.0
        %3392 = vmatpush2.msra.mxu0 0.0
        %3393 = vmatprep.subr.mxu0 0.0
        %3394 = vmatpush2.msra.mxu0 0.0
        %3395 = vmatprep.subr.mxu0 0.0
        %3396 = vmatpush2.msra.mxu0 0.0
        %3397 = vmatprep.subr.mxu0 0.0
        %3398 = vmatpush2.msra.mxu0 0.0
        %3399 = vmatprep.subr.mxu0 0.0
        %3400 = vmatpush2.msra.mxu0 0.0
        %3401 = vmatprep.subr.mxu0 0.0
        %3402 = vmatpush2.msra.mxu0 0.0
        %3403 = vmatprep.subr.mxu0 0.0
        %3404 = vmatpush2.msra.mxu0 0.0
        %3405 = vmatprep.subr.mxu0 0.0
        %3406 = vmatpush2.msra.mxu0 0.0
        %3407 = vmatprep.subr.mxu0 0.0
        %3408 = vmatpush2.msra.mxu0 0.0
        %3409 = vmatprep.subr.mxu0 0.0
        %3410 = vmatpush2.msra.mxu0 0.0
        %3411 = vmatprep.mubr.f32.mxu0 0.0
        %v3412 = vand.u32 %v2113, 4294901760
        %3413 = vmatmul.mubr.f32.gmra.mxu0 %v3412
        %v3414 = vpop.f32.mrf.mxu0
        %v3415 = vadd.f32 %v3322, %v3414
        %v3416 = vpop.f32.mrf.mxu0
        %3417 = vmatprep.mubr.f32.mxu0 0.0
        %v3418 = vand.u32 %v2114, 4294901760
        %3419 = vmatmul.mubr.f32.gmra.mxu0 %v3418
        %v3420 = vpop.f32.mrf.mxu0
        %v3421 = vadd.f32 %v3328, %v3420
        %v3422 = vpop.f32.mrf.mxu0
        %3423 = vdwg.mxu0
        %v3424 = vadd.f32 %v2721, %v3415
        %v3425 = vadd.f32 %v2721, %v3421
        %v3426 = vld [vmem:[#allocation2] sm:$0xff]
        %v3427 = vld [vmem:[#allocation2 + $0x8] sm:$0xff]
        %v3428 = vld [vmem:[#allocation6] sm:$0xff]
        %v3429 = vld [vmem:[#allocation6 + $0x8] sm:$0xff]
        %v3430 = vld [vmem:[#allocation6 + $0x10] sm:$0xff]
        %v3431 = vld [vmem:[#allocation6 + $0x18] sm:$0xff]
        %v3432 = vld [vmem:[#allocation6 + $0x20] sm:$0xff]
        %v3433 = vld [vmem:[#allocation6 + $0x28] sm:$0xff]
        %v3434 = vld [vmem:[#allocation6 + $0x30] sm:$0xff]
        %v3435 = vld [vmem:[#allocation6 + $0x38] sm:$0xff]
        %v3436 = vld [vmem:[#allocation6 + $0x40] sm:$0xff]
        %v3437 = vld [vmem:[#allocation6 + $0x48] sm:$0xff]
        %v3438 = vld [vmem:[#allocation6 + $0x50] sm:$0xff]
        %v3439 = vld [vmem:[#allocation6 + $0x58] sm:$0xff]
        %v3440 = vld [vmem:[#allocation6 + $0x60] sm:$0xff]
        %v3441 = vld [vmem:[#allocation6 + $0x68] sm:$0xff]
        %v3442 = vld [vmem:[#allocation6 + $0x70] sm:$0xff]
        %v3443 = vld [vmem:[#allocation6 + $0x78] sm:$0xff]
        %3444 = vmatprep.subr.mxu0 0.0
        %v3445 = vand.u32 %v3443, 4294901760
        %3446 = vmatpush1.msra.mxu0 %v3445
        %3447 = vmatprep.subr.mxu0 0.0
        %v3448 = vand.u32 %v3442, 4294901760
        %3449 = vmatpush1.msra.mxu0 %v3448
        %3450 = vmatprep.subr.mxu0 0.0
        %v3451 = vand.u32 %v3441, 4294901760
        %3452 = vmatpush1.msra.mxu0 %v3451
        %3453 = vmatprep.subr.mxu0 0.0
        %v3454 = vand.u32 %v3440, 4294901760
        %3455 = vmatpush1.msra.mxu0 %v3454
        %3456 = vmatprep.subr.mxu0 0.0
        %v3457 = vand.u32 %v3439, 4294901760
        %3458 = vmatpush1.msra.mxu0 %v3457
        %3459 = vmatprep.subr.mxu0 0.0
        %v3460 = vand.u32 %v3438, 4294901760
        %3461 = vmatpush1.msra.mxu0 %v3460
        %3462 = vmatprep.subr.mxu0 0.0
        %v3463 = vand.u32 %v3437, 4294901760
        %3464 = vmatpush1.msra.mxu0 %v3463
        %3465 = vmatprep.subr.mxu0 0.0
        %v3466 = vand.u32 %v3436, 4294901760
        %3467 = vmatpush1.msra.mxu0 %v3466
        %3468 = vmatprep.subr.mxu0 0.0
        %v3469 = vand.u32 %v3435, 4294901760
        %3470 = vmatpush1.msra.mxu0 %v3469
        %3471 = vmatprep.subr.mxu0 0.0
        %v3472 = vand.u32 %v3434, 4294901760
        %3473 = vmatpush1.msra.mxu0 %v3472
        %3474 = vmatprep.subr.mxu0 0.0
        %v3475 = vand.u32 %v3433, 4294901760
        %3476 = vmatpush1.msra.mxu0 %v3475
        %3477 = vmatprep.subr.mxu0 0.0
        %v3478 = vand.u32 %v3432, 4294901760
        %3479 = vmatpush1.msra.mxu0 %v3478
        %3480 = vmatprep.subr.mxu0 0.0
        %v3481 = vand.u32 %v3431, 4294901760
        %3482 = vmatpush1.msra.mxu0 %v3481
        %3483 = vmatprep.subr.mxu0 0.0
        %v3484 = vand.u32 %v3430, 4294901760
        %3485 = vmatpush1.msra.mxu0 %v3484
        %3486 = vmatprep.subr.mxu0 0.0
        %v3487 = vand.u32 %v3429, 4294901760
        %3488 = vmatpush1.msra.mxu0 %v3487
        %3489 = vmatprep.subr.mxu0 0.0
        %v3490 = vand.u32 %v3428, 4294901760
        %3491 = vmatpush1.msra.mxu0 %v3490
        %3492 = vmatprep.subr.mxu0 0.0
        %3493 = vmatpush2.msra.mxu0 0.0
        %3494 = vmatprep.subr.mxu0 0.0
        %3495 = vmatpush2.msra.mxu0 0.0
        %3496 = vmatprep.subr.mxu0 0.0
        %3497 = vmatpush2.msra.mxu0 0.0
        %3498 = vmatprep.subr.mxu0 0.0
        %3499 = vmatpush2.msra.mxu0 0.0
        %3500 = vmatprep.subr.mxu0 0.0
        %3501 = vmatpush2.msra.mxu0 0.0
        %3502 = vmatprep.subr.mxu0 0.0
        %3503 = vmatpush2.msra.mxu0 0.0
        %3504 = vmatprep.subr.mxu0 0.0
        %3505 = vmatpush2.msra.mxu0 0.0
        %3506 = vmatprep.subr.mxu0 0.0
        %3507 = vmatpush2.msra.mxu0 0.0
        %3508 = vmatprep.subr.mxu0 0.0
        %3509 = vmatpush2.msra.mxu0 0.0
        %3510 = vmatprep.subr.mxu0 0.0
        %3511 = vmatpush2.msra.mxu0 0.0
        %3512 = vmatprep.subr.mxu0 0.0
        %3513 = vmatpush2.msra.mxu0 0.0
        %3514 = vmatprep.subr.mxu0 0.0
        %3515 = vmatpush2.msra.mxu0 0.0
        %3516 = vmatprep.subr.mxu0 0.0
        %3517 = vmatpush2.msra.mxu0 0.0
        %3518 = vmatprep.subr.mxu0 0.0
        %3519 = vmatpush2.msra.mxu0 0.0
        %3520 = vmatprep.subr.mxu0 0.0
        %3521 = vmatpush2.msra.mxu0 0.0
        %3522 = vmatprep.subr.mxu0 0.0
        %3523 = vmatpush2.msra.mxu0 0.0
        %3524 = vmatprep.mubr.f32.mxu0 0.0
        %v3525 = vand.u32 %v3426, 4294901760
        %v3526 = vsub.f32 %v3426, %v3525
        %v3527 = vand.u32 %v3526, 4294901760
        %v3528 = vsub.f32 %v3526, %v3527
        %v3529 = vand.u32 %v3528, 4294901760
        %3530 = vmatmul.mubr.f32.gmra.mxu0 %v3529
        %v3531 = vpop.f32.mrf.mxu0
        %v3532 = vadd.f32 0.0, %v3531
        %v3533 = vpop.f32.mrf.mxu0
        %3534 = vmatprep.mubr.f32.mxu0 0.0
        %v3535 = vand.u32 %v3427, 4294901760
        %v3536 = vsub.f32 %v3427, %v3535
        %v3537 = vand.u32 %v3536, 4294901760
        %v3538 = vsub.f32 %v3536, %v3537
        %v3539 = vand.u32 %v3538, 4294901760
        %3540 = vmatmul.mubr.f32.gmra.mxu0 %v3539
        %v3541 = vpop.f32.mrf.mxu0
        %v3542 = vadd.f32 0.0, %v3541
        %v3543 = vpop.f32.mrf.mxu0
        %3544 = vdwg.mxu0
        %3545 = vmatprep.subr.mxu0 0.0
        %v3546 = vand.u32 %v3443, 4294901760
        %v3547 = vsub.f32 %v3443, %v3546
        %v3548 = vand.u32 %v3547, 4294901760
        %v3549 = vsub.f32 %v3547, %v3548
        %v3550 = vand.u32 %v3549, 4294901760
        %3551 = vmatpush1.msra.mxu0 %v3550
        %3552 = vmatprep.subr.mxu0 0.0
        %v3553 = vand.u32 %v3442, 4294901760
        %v3554 = vsub.f32 %v3442, %v3553
        %v3555 = vand.u32 %v3554, 4294901760
        %v3556 = vsub.f32 %v3554, %v3555
        %v3557 = vand.u32 %v3556, 4294901760
        %3558 = vmatpush1.msra.mxu0 %v3557
        %3559 = vmatprep.subr.mxu0 0.0
        %v3560 = vand.u32 %v3441, 4294901760
        %v3561 = vsub.f32 %v3441, %v3560
        %v3562 = vand.u32 %v3561, 4294901760
        %v3563 = vsub.f32 %v3561, %v3562
        %v3564 = vand.u32 %v3563, 4294901760
        %3565 = vmatpush1.msra.mxu0 %v3564
        %3566 = vmatprep.subr.mxu0 0.0
        %v3567 = vand.u32 %v3440, 4294901760
        %v3568 = vsub.f32 %v3440, %v3567
        %v3569 = vand.u32 %v3568, 4294901760
        %v3570 = vsub.f32 %v3568, %v3569
        %v3571 = vand.u32 %v3570, 4294901760
        %3572 = vmatpush1.msra.mxu0 %v3571
        %3573 = vmatprep.subr.mxu0 0.0
        %v3574 = vand.u32 %v3439, 4294901760
        %v3575 = vsub.f32 %v3439, %v3574
        %v3576 = vand.u32 %v3575, 4294901760
        %v3577 = vsub.f32 %v3575, %v3576
        %v3578 = vand.u32 %v3577, 4294901760
        %3579 = vmatpush1.msra.mxu0 %v3578
        %3580 = vmatprep.subr.mxu0 0.0
        %v3581 = vand.u32 %v3438, 4294901760
        %v3582 = vsub.f32 %v3438, %v3581
        %v3583 = vand.u32 %v3582, 4294901760
        %v3584 = vsub.f32 %v3582, %v3583
        %v3585 = vand.u32 %v3584, 4294901760
        %3586 = vmatpush1.msra.mxu0 %v3585
        %3587 = vmatprep.subr.mxu0 0.0
        %v3588 = vand.u32 %v3437, 4294901760
        %v3589 = vsub.f32 %v3437, %v3588
        %v3590 = vand.u32 %v3589, 4294901760
        %v3591 = vsub.f32 %v3589, %v3590
        %v3592 = vand.u32 %v3591, 4294901760
        %3593 = vmatpush1.msra.mxu0 %v3592
        %3594 = vmatprep.subr.mxu0 0.0
        %v3595 = vand.u32 %v3436, 4294901760
        %v3596 = vsub.f32 %v3436, %v3595
        %v3597 = vand.u32 %v3596, 4294901760
        %v3598 = vsub.f32 %v3596, %v3597
        %v3599 = vand.u32 %v3598, 4294901760
        %3600 = vmatpush1.msra.mxu0 %v3599
        %3601 = vmatprep.subr.mxu0 0.0
        %v3602 = vand.u32 %v3435, 4294901760
        %v3603 = vsub.f32 %v3435, %v3602
        %v3604 = vand.u32 %v3603, 4294901760
        %v3605 = vsub.f32 %v3603, %v3604
        %v3606 = vand.u32 %v3605, 4294901760
        %3607 = vmatpush1.msra.mxu0 %v3606
        %3608 = vmatprep.subr.mxu0 0.0
        %v3609 = vand.u32 %v3434, 4294901760
        %v3610 = vsub.f32 %v3434, %v3609
        %v3611 = vand.u32 %v3610, 4294901760
        %v3612 = vsub.f32 %v3610, %v3611
        %v3613 = vand.u32 %v3612, 4294901760
        %3614 = vmatpush1.msra.mxu0 %v3613
        %3615 = vmatprep.subr.mxu0 0.0
        %v3616 = vand.u32 %v3433, 4294901760
        %v3617 = vsub.f32 %v3433, %v3616
        %v3618 = vand.u32 %v3617, 4294901760
        %v3619 = vsub.f32 %v3617, %v3618
        %v3620 = vand.u32 %v3619, 4294901760
        %3621 = vmatpush1.msra.mxu0 %v3620
        %3622 = vmatprep.subr.mxu0 0.0
        %v3623 = vand.u32 %v3432, 4294901760
        %v3624 = vsub.f32 %v3432, %v3623
        %v3625 = vand.u32 %v3624, 4294901760
        %v3626 = vsub.f32 %v3624, %v3625
        %v3627 = vand.u32 %v3626, 4294901760
        %3628 = vmatpush1.msra.mxu0 %v3627
        %3629 = vmatprep.subr.mxu0 0.0
        %v3630 = vand.u32 %v3431, 4294901760
        %v3631 = vsub.f32 %v3431, %v3630
        %v3632 = vand.u32 %v3631, 4294901760
        %v3633 = vsub.f32 %v3631, %v3632
        %v3634 = vand.u32 %v3633, 4294901760
        %3635 = vmatpush1.msra.mxu0 %v3634
        %3636 = vmatprep.subr.mxu0 0.0
        %v3637 = vand.u32 %v3430, 4294901760
        %v3638 = vsub.f32 %v3430, %v3637
        %v3639 = vand.u32 %v3638, 4294901760
        %v3640 = vsub.f32 %v3638, %v3639
        %v3641 = vand.u32 %v3640, 4294901760
        %3642 = vmatpush1.msra.mxu0 %v3641
        %3643 = vmatprep.subr.mxu0 0.0
        %v3644 = vand.u32 %v3429, 4294901760
        %v3645 = vsub.f32 %v3429, %v3644
        %v3646 = vand.u32 %v3645, 4294901760
        %v3647 = vsub.f32 %v3645, %v3646
        %v3648 = vand.u32 %v3647, 4294901760
        %3649 = vmatpush1.msra.mxu0 %v3648
        %3650 = vmatprep.subr.mxu0 0.0
        %v3651 = vand.u32 %v3428, 4294901760
        %v3652 = vsub.f32 %v3428, %v3651
        %v3653 = vand.u32 %v3652, 4294901760
        %v3654 = vsub.f32 %v3652, %v3653
        %v3655 = vand.u32 %v3654, 4294901760
        %3656 = vmatpush1.msra.mxu0 %v3655
        %3657 = vmatprep.subr.mxu0 0.0
        %3658 = vmatpush2.msra.mxu0 0.0
        %3659 = vmatprep.subr.mxu0 0.0
        %3660 = vmatpush2.msra.mxu0 0.0
        %3661 = vmatprep.subr.mxu0 0.0
        %3662 = vmatpush2.msra.mxu0 0.0
        %3663 = vmatprep.subr.mxu0 0.0
        %3664 = vmatpush2.msra.mxu0 0.0
        %3665 = vmatprep.subr.mxu0 0.0
        %3666 = vmatpush2.msra.mxu0 0.0
        %3667 = vmatprep.subr.mxu0 0.0
        %3668 = vmatpush2.msra.mxu0 0.0
        %3669 = vmatprep.subr.mxu0 0.0
        %3670 = vmatpush2.msra.mxu0 0.0
        %3671 = vmatprep.subr.mxu0 0.0
        %3672 = vmatpush2.msra.mxu0 0.0
        %3673 = vmatprep.subr.mxu0 0.0
        %3674 = vmatpush2.msra.mxu0 0.0
        %3675 = vmatprep.subr.mxu0 0.0
        %3676 = vmatpush2.msra.mxu0 0.0
        %3677 = vmatprep.subr.mxu0 0.0
        %3678 = vmatpush2.msra.mxu0 0.0
        %3679 = vmatprep.subr.mxu0 0.0
        %3680 = vmatpush2.msra.mxu0 0.0
        %3681 = vmatprep.subr.mxu0 0.0
        %3682 = vmatpush2.msra.mxu0 0.0
        %3683 = vmatprep.subr.mxu0 0.0
        %3684 = vmatpush2.msra.mxu0 0.0
        %3685 = vmatprep.subr.mxu0 0.0
        %3686 = vmatpush2.msra.mxu0 0.0
        %3687 = vmatprep.subr.mxu0 0.0
        %3688 = vmatpush2.msra.mxu0 0.0
        %3689 = vmatprep.mubr.f32.mxu0 0.0
        %v3690 = vand.u32 %v3426, 4294901760
        %3691 = vmatmul.mubr.f32.gmra.mxu0 %v3690
        %v3692 = vpop.f32.mrf.mxu0
        %v3693 = vadd.f32 %v3532, %v3692
        %v3694 = vpop.f32.mrf.mxu0
        %3695 = vmatprep.mubr.f32.mxu0 0.0
        %v3696 = vand.u32 %v3427, 4294901760
        %3697 = vmatmul.mubr.f32.gmra.mxu0 %v3696
        %v3698 = vpop.f32.mrf.mxu0
        %v3699 = vadd.f32 %v3542, %v3698
        %v3700 = vpop.f32.mrf.mxu0
        %3701 = vdwg.mxu0
        %3702 = vmatprep.subr.mxu0 0.0
        %v3703 = vand.u32 %v3443, 4294901760
        %v3704 = vsub.f32 %v3443, %v3703
        %3705 = vmatpush1.msra.mxu0 %v3704
        %3706 = vmatprep.subr.mxu0 0.0
        %v3707 = vand.u32 %v3442, 4294901760
        %v3708 = vsub.f32 %v3442, %v3707
        %3709 = vmatpush1.msra.mxu0 %v3708
        %3710 = vmatprep.subr.mxu0 0.0
        %v3711 = vand.u32 %v3441, 4294901760
        %v3712 = vsub.f32 %v3441, %v3711
        %3713 = vmatpush1.msra.mxu0 %v3712
        %3714 = vmatprep.subr.mxu0 0.0
        %v3715 = vand.u32 %v3440, 4294901760
        %v3716 = vsub.f32 %v3440, %v3715
        %3717 = vmatpush1.msra.mxu0 %v3716
        %3718 = vmatprep.subr.mxu0 0.0
        %v3719 = vand.u32 %v3439, 4294901760
        %v3720 = vsub.f32 %v3439, %v3719
        %3721 = vmatpush1.msra.mxu0 %v3720
        %3722 = vmatprep.subr.mxu0 0.0
        %v3723 = vand.u32 %v3438, 4294901760
        %v3724 = vsub.f32 %v3438, %v3723
        %3725 = vmatpush1.msra.mxu0 %v3724
        %3726 = vmatprep.subr.mxu0 0.0
        %v3727 = vand.u32 %v3437, 4294901760
        %v3728 = vsub.f32 %v3437, %v3727
        %3729 = vmatpush1.msra.mxu0 %v3728
        %3730 = vmatprep.subr.mxu0 0.0
        %v3731 = vand.u32 %v3436, 4294901760
        %v3732 = vsub.f32 %v3436, %v3731
        %3733 = vmatpush1.msra.mxu0 %v3732
        %3734 = vmatprep.subr.mxu0 0.0
        %v3735 = vand.u32 %v3435, 4294901760
        %v3736 = vsub.f32 %v3435, %v3735
        %3737 = vmatpush1.msra.mxu0 %v3736
        %3738 = vmatprep.subr.mxu0 0.0
        %v3739 = vand.u32 %v3434, 4294901760
        %v3740 = vsub.f32 %v3434, %v3739
        %3741 = vmatpush1.msra.mxu0 %v3740
        %3742 = vmatprep.subr.mxu0 0.0
        %v3743 = vand.u32 %v3433, 4294901760
        %v3744 = vsub.f32 %v3433, %v3743
        %3745 = vmatpush1.msra.mxu0 %v3744
        %3746 = vmatprep.subr.mxu0 0.0
        %v3747 = vand.u32 %v3432, 4294901760
        %v3748 = vsub.f32 %v3432, %v3747
        %3749 = vmatpush1.msra.mxu0 %v3748
        %3750 = vmatprep.subr.mxu0 0.0
        %v3751 = vand.u32 %v3431, 4294901760
        %v3752 = vsub.f32 %v3431, %v3751
        %3753 = vmatpush1.msra.mxu0 %v3752
        %3754 = vmatprep.subr.mxu0 0.0
        %v3755 = vand.u32 %v3430, 4294901760
        %v3756 = vsub.f32 %v3430, %v3755
        %3757 = vmatpush1.msra.mxu0 %v3756
        %3758 = vmatprep.subr.mxu0 0.0
        %v3759 = vand.u32 %v3429, 4294901760
        %v3760 = vsub.f32 %v3429, %v3759
        %3761 = vmatpush1.msra.mxu0 %v3760
        %3762 = vmatprep.subr.mxu0 0.0
        %v3763 = vand.u32 %v3428, 4294901760
        %v3764 = vsub.f32 %v3428, %v3763
        %3765 = vmatpush1.msra.mxu0 %v3764
        %3766 = vmatprep.subr.mxu0 0.0
        %3767 = vmatpush2.msra.mxu0 0.0
        %3768 = vmatprep.subr.mxu0 0.0
        %3769 = vmatpush2.msra.mxu0 0.0
        %3770 = vmatprep.subr.mxu0 0.0
        %3771 = vmatpush2.msra.mxu0 0.0
        %3772 = vmatprep.subr.mxu0 0.0
        %3773 = vmatpush2.msra.mxu0 0.0
        %3774 = vmatprep.subr.mxu0 0.0
        %3775 = vmatpush2.msra.mxu0 0.0
        %3776 = vmatprep.subr.mxu0 0.0
        %3777 = vmatpush2.msra.mxu0 0.0
        %3778 = vmatprep.subr.mxu0 0.0
        %3779 = vmatpush2.msra.mxu0 0.0
        %3780 = vmatprep.subr.mxu0 0.0
        %3781 = vmatpush2.msra.mxu0 0.0
        %3782 = vmatprep.subr.mxu0 0.0
        %3783 = vmatpush2.msra.mxu0 0.0
        %3784 = vmatprep.subr.mxu0 0.0
        %3785 = vmatpush2.msra.mxu0 0.0
        %3786 = vmatprep.subr.mxu0 0.0
        %3787 = vmatpush2.msra.mxu0 0.0
        %3788 = vmatprep.subr.mxu0 0.0
        %3789 = vmatpush2.msra.mxu0 0.0
        %3790 = vmatprep.subr.mxu0 0.0
        %3791 = vmatpush2.msra.mxu0 0.0
        %3792 = vmatprep.subr.mxu0 0.0
        %3793 = vmatpush2.msra.mxu0 0.0
        %3794 = vmatprep.subr.mxu0 0.0
        %3795 = vmatpush2.msra.mxu0 0.0
        %3796 = vmatprep.subr.mxu0 0.0
        %3797 = vmatpush2.msra.mxu0 0.0
        %3798 = vmatprep.mubr.f32.mxu0 0.0
        %v3799 = vand.u32 %v3426, 4294901760
        %v3800 = vsub.f32 %v3426, %v3799
        %3801 = vmatmul.mubr.f32.gmra.mxu0 %v3800
        %v3802 = vpop.f32.mrf.mxu0
        %v3803 = vadd.f32 %v3693, %v3802
        %v3804 = vpop.f32.mrf.mxu0
        %3805 = vmatprep.mubr.f32.mxu0 0.0
        %v3806 = vand.u32 %v3427, 4294901760
        %v3807 = vsub.f32 %v3427, %v3806
        %3808 = vmatmul.mubr.f32.gmra.mxu0 %v3807
        %v3809 = vpop.f32.mrf.mxu0
        %v3810 = vadd.f32 %v3699, %v3809
        %v3811 = vpop.f32.mrf.mxu0
        %3812 = vdwg.mxu0
        %3813 = vmatprep.subr.mxu0 0.0
        %v3814 = vand.u32 %v3443, 4294901760
        %3815 = vmatpush1.msra.mxu0 %v3814
        %3816 = vmatprep.subr.mxu0 0.0
        %v3817 = vand.u32 %v3442, 4294901760
        %3818 = vmatpush1.msra.mxu0 %v3817
        %3819 = vmatprep.subr.mxu0 0.0
        %v3820 = vand.u32 %v3441, 4294901760
        %3821 = vmatpush1.msra.mxu0 %v3820
        %3822 = vmatprep.subr.mxu0 0.0
        %v3823 = vand.u32 %v3440, 4294901760
        %3824 = vmatpush1.msra.mxu0 %v3823
        %3825 = vmatprep.subr.mxu0 0.0
        %v3826 = vand.u32 %v3439, 4294901760
        %3827 = vmatpush1.msra.mxu0 %v3826
        %3828 = vmatprep.subr.mxu0 0.0
        %v3829 = vand.u32 %v3438, 4294901760
        %3830 = vmatpush1.msra.mxu0 %v3829
        %3831 = vmatprep.subr.mxu0 0.0
        %v3832 = vand.u32 %v3437, 4294901760
        %3833 = vmatpush1.msra.mxu0 %v3832
        %3834 = vmatprep.subr.mxu0 0.0
        %v3835 = vand.u32 %v3436, 4294901760
        %3836 = vmatpush1.msra.mxu0 %v3835
        %3837 = vmatprep.subr.mxu0 0.0
        %v3838 = vand.u32 %v3435, 4294901760
        %3839 = vmatpush1.msra.mxu0 %v3838
        %3840 = vmatprep.subr.mxu0 0.0
        %v3841 = vand.u32 %v3434, 4294901760
        %3842 = vmatpush1.msra.mxu0 %v3841
        %3843 = vmatprep.subr.mxu0 0.0
        %v3844 = vand.u32 %v3433, 4294901760
        %3845 = vmatpush1.msra.mxu0 %v3844
        %3846 = vmatprep.subr.mxu0 0.0
        %v3847 = vand.u32 %v3432, 4294901760
        %3848 = vmatpush1.msra.mxu0 %v3847
        %3849 = vmatprep.subr.mxu0 0.0
        %v3850 = vand.u32 %v3431, 4294901760
        %3851 = vmatpush1.msra.mxu0 %v3850
        %3852 = vmatprep.subr.mxu0 0.0
        %v3853 = vand.u32 %v3430, 4294901760
        %3854 = vmatpush1.msra.mxu0 %v3853
        %3855 = vmatprep.subr.mxu0 0.0
        %v3856 = vand.u32 %v3429, 4294901760
        %3857 = vmatpush1.msra.mxu0 %v3856
        %3858 = vmatprep.subr.mxu0 0.0
        %v3859 = vand.u32 %v3428, 4294901760
        %3860 = vmatpush1.msra.mxu0 %v3859
        %3861 = vmatprep.subr.mxu0 0.0
        %3862 = vmatpush2.msra.mxu0 0.0
        %3863 = vmatprep.subr.mxu0 0.0
        %3864 = vmatpush2.msra.mxu0 0.0
        %3865 = vmatprep.subr.mxu0 0.0
        %3866 = vmatpush2.msra.mxu0 0.0
        %3867 = vmatprep.subr.mxu0 0.0
        %3868 = vmatpush2.msra.mxu0 0.0
        %3869 = vmatprep.subr.mxu0 0.0
        %3870 = vmatpush2.msra.mxu0 0.0
        %3871 = vmatprep.subr.mxu0 0.0
        %3872 = vmatpush2.msra.mxu0 0.0
        %3873 = vmatprep.subr.mxu0 0.0
        %3874 = vmatpush2.msra.mxu0 0.0
        %3875 = vmatprep.subr.mxu0 0.0
        %3876 = vmatpush2.msra.mxu0 0.0
        %3877 = vmatprep.subr.mxu0 0.0
        %3878 = vmatpush2.msra.mxu0 0.0
        %3879 = vmatprep.subr.mxu0 0.0
        %3880 = vmatpush2.msra.mxu0 0.0
        %3881 = vmatprep.subr.mxu0 0.0
        %3882 = vmatpush2.msra.mxu0 0.0
        %3883 = vmatprep.subr.mxu0 0.0
        %3884 = vmatpush2.msra.mxu0 0.0
        %3885 = vmatprep.subr.mxu0 0.0
        %3886 = vmatpush2.msra.mxu0 0.0
        %3887 = vmatprep.subr.mxu0 0.0
        %3888 = vmatpush2.msra.mxu0 0.0
        %3889 = vmatprep.subr.mxu0 0.0
        %3890 = vmatpush2.msra.mxu0 0.0
        %3891 = vmatprep.subr.mxu0 0.0
        %3892 = vmatpush2.msra.mxu0 0.0
        %3893 = vmatprep.mubr.f32.mxu0 0.0
        %v3894 = vand.u32 %v3426, 4294901760
        %v3895 = vsub.f32 %v3426, %v3894
        %v3896 = vand.u32 %v3895, 4294901760
        %3897 = vmatmul.mubr.f32.gmra.mxu0 %v3896
        %v3898 = vpop.f32.mrf.mxu0
        %v3899 = vadd.f32 %v3803, %v3898
        %v3900 = vpop.f32.mrf.mxu0
        %3901 = vmatprep.mubr.f32.mxu0 0.0
        %v3902 = vand.u32 %v3427, 4294901760
        %v3903 = vsub.f32 %v3427, %v3902
        %v3904 = vand.u32 %v3903, 4294901760
        %3905 = vmatmul.mubr.f32.gmra.mxu0 %v3904
        %v3906 = vpop.f32.mrf.mxu0
        %v3907 = vadd.f32 %v3810, %v3906
        %v3908 = vpop.f32.mrf.mxu0
        %3909 = vdwg.mxu0
        %3910 = vmatprep.subr.mxu0 0.0
        %v3911 = vand.u32 %v3443, 4294901760
        %v3912 = vsub.f32 %v3443, %v3911
        %v3913 = vand.u32 %v3912, 4294901760
        %3914 = vmatpush1.msra.mxu0 %v3913
        %3915 = vmatprep.subr.mxu0 0.0
        %v3916 = vand.u32 %v3442, 4294901760
        %v3917 = vsub.f32 %v3442, %v3916
        %v3918 = vand.u32 %v3917, 4294901760
        %3919 = vmatpush1.msra.mxu0 %v3918
        %3920 = vmatprep.subr.mxu0 0.0
        %v3921 = vand.u32 %v3441, 4294901760
        %v3922 = vsub.f32 %v3441, %v3921
        %v3923 = vand.u32 %v3922, 4294901760
        %3924 = vmatpush1.msra.mxu0 %v3923
        %3925 = vmatprep.subr.mxu0 0.0
        %v3926 = vand.u32 %v3440, 4294901760
        %v3927 = vsub.f32 %v3440, %v3926
        %v3928 = vand.u32 %v3927, 4294901760
        %3929 = vmatpush1.msra.mxu0 %v3928
        %3930 = vmatprep.subr.mxu0 0.0
        %v3931 = vand.u32 %v3439, 4294901760
        %v3932 = vsub.f32 %v3439, %v3931
        %v3933 = vand.u32 %v3932, 4294901760
        %3934 = vmatpush1.msra.mxu0 %v3933
        %3935 = vmatprep.subr.mxu0 0.0
        %v3936 = vand.u32 %v3438, 4294901760
        %v3937 = vsub.f32 %v3438, %v3936
        %v3938 = vand.u32 %v3937, 4294901760
        %3939 = vmatpush1.msra.mxu0 %v3938
        %3940 = vmatprep.subr.mxu0 0.0
        %v3941 = vand.u32 %v3437, 4294901760
        %v3942 = vsub.f32 %v3437, %v3941
        %v3943 = vand.u32 %v3942, 4294901760
        %3944 = vmatpush1.msra.mxu0 %v3943
        %3945 = vmatprep.subr.mxu0 0.0
        %v3946 = vand.u32 %v3436, 4294901760
        %v3947 = vsub.f32 %v3436, %v3946
        %v3948 = vand.u32 %v3947, 4294901760
        %3949 = vmatpush1.msra.mxu0 %v3948
        %3950 = vmatprep.subr.mxu0 0.0
        %v3951 = vand.u32 %v3435, 4294901760
        %v3952 = vsub.f32 %v3435, %v3951
        %v3953 = vand.u32 %v3952, 4294901760
        %3954 = vmatpush1.msra.mxu0 %v3953
        %3955 = vmatprep.subr.mxu0 0.0
        %v3956 = vand.u32 %v3434, 4294901760
        %v3957 = vsub.f32 %v3434, %v3956
        %v3958 = vand.u32 %v3957, 4294901760
        %3959 = vmatpush1.msra.mxu0 %v3958
        %3960 = vmatprep.subr.mxu0 0.0
        %v3961 = vand.u32 %v3433, 4294901760
        %v3962 = vsub.f32 %v3433, %v3961
        %v3963 = vand.u32 %v3962, 4294901760
        %3964 = vmatpush1.msra.mxu0 %v3963
        %3965 = vmatprep.subr.mxu0 0.0
        %v3966 = vand.u32 %v3432, 4294901760
        %v3967 = vsub.f32 %v3432, %v3966
        %v3968 = vand.u32 %v3967, 4294901760
        %3969 = vmatpush1.msra.mxu0 %v3968
        %3970 = vmatprep.subr.mxu0 0.0
        %v3971 = vand.u32 %v3431, 4294901760
        %v3972 = vsub.f32 %v3431, %v3971
        %v3973 = vand.u32 %v3972, 4294901760
        %3974 = vmatpush1.msra.mxu0 %v3973
        %3975 = vmatprep.subr.mxu0 0.0
        %v3976 = vand.u32 %v3430, 4294901760
        %v3977 = vsub.f32 %v3430, %v3976
        %v3978 = vand.u32 %v3977, 4294901760
        %3979 = vmatpush1.msra.mxu0 %v3978
        %3980 = vmatprep.subr.mxu0 0.0
        %v3981 = vand.u32 %v3429, 4294901760
        %v3982 = vsub.f32 %v3429, %v3981
        %v3983 = vand.u32 %v3982, 4294901760
        %3984 = vmatpush1.msra.mxu0 %v3983
        %3985 = vmatprep.subr.mxu0 0.0
        %v3986 = vand.u32 %v3428, 4294901760
        %v3987 = vsub.f32 %v3428, %v3986
        %v3988 = vand.u32 %v3987, 4294901760
        %3989 = vmatpush1.msra.mxu0 %v3988
        %3990 = vmatprep.subr.mxu0 0.0
        %3991 = vmatpush2.msra.mxu0 0.0
        %3992 = vmatprep.subr.mxu0 0.0
        %3993 = vmatpush2.msra.mxu0 0.0
        %3994 = vmatprep.subr.mxu0 0.0
        %3995 = vmatpush2.msra.mxu0 0.0
        %3996 = vmatprep.subr.mxu0 0.0
        %3997 = vmatpush2.msra.mxu0 0.0
        %3998 = vmatprep.subr.mxu0 0.0
        %3999 = vmatpush2.msra.mxu0 0.0
        %4000 = vmatprep.subr.mxu0 0.0
        %4001 = vmatpush2.msra.mxu0 0.0
        %4002 = vmatprep.subr.mxu0 0.0
        %4003 = vmatpush2.msra.mxu0 0.0
        %4004 = vmatprep.subr.mxu0 0.0
        %4005 = vmatpush2.msra.mxu0 0.0
        %4006 = vmatprep.subr.mxu0 0.0
        %4007 = vmatpush2.msra.mxu0 0.0
        %4008 = vmatprep.subr.mxu0 0.0
        %4009 = vmatpush2.msra.mxu0 0.0
        %4010 = vmatprep.subr.mxu0 0.0
        %4011 = vmatpush2.msra.mxu0 0.0
        %4012 = vmatprep.subr.mxu0 0.0
        %4013 = vmatpush2.msra.mxu0 0.0
        %4014 = vmatprep.subr.mxu0 0.0
        %4015 = vmatpush2.msra.mxu0 0.0
        %4016 = vmatprep.subr.mxu0 0.0
        %4017 = vmatpush2.msra.mxu0 0.0
        %4018 = vmatprep.subr.mxu0 0.0
        %4019 = vmatpush2.msra.mxu0 0.0
        %4020 = vmatprep.subr.mxu0 0.0
        %4021 = vmatpush2.msra.mxu0 0.0
        %4022 = vmatprep.mubr.f32.mxu0 0.0
        %v4023 = vand.u32 %v3426, 4294901760
        %4024 = vmatmul.mubr.f32.gmra.mxu0 %v4023
        %v4025 = vpop.f32.mrf.mxu0
        %v4026 = vadd.f32 %v3899, %v4025
        %v4027 = vpop.f32.mrf.mxu0
        %4028 = vmatprep.mubr.f32.mxu0 0.0
        %v4029 = vand.u32 %v3427, 4294901760
        %4030 = vmatmul.mubr.f32.gmra.mxu0 %v4029
        %v4031 = vpop.f32.mrf.mxu0
        %v4032 = vadd.f32 %v3907, %v4031
        %v4033 = vpop.f32.mrf.mxu0
        %4034 = vdwg.mxu0
        %4035 = vmatprep.subr.mxu0 0.0
        %v4036 = vand.u32 %v3443, 4294901760
        %4037 = vmatpush1.msra.mxu0 %v4036
        %4038 = vmatprep.subr.mxu0 0.0
        %v4039 = vand.u32 %v3442, 4294901760
        %4040 = vmatpush1.msra.mxu0 %v4039
        %4041 = vmatprep.subr.mxu0 0.0
        %v4042 = vand.u32 %v3441, 4294901760
        %4043 = vmatpush1.msra.mxu0 %v4042
        %4044 = vmatprep.subr.mxu0 0.0
        %v4045 = vand.u32 %v3440, 4294901760
        %4046 = vmatpush1.msra.mxu0 %v4045
        %4047 = vmatprep.subr.mxu0 0.0
        %v4048 = vand.u32 %v3439, 4294901760
        %4049 = vmatpush1.msra.mxu0 %v4048
        %4050 = vmatprep.subr.mxu0 0.0
        %v4051 = vand.u32 %v3438, 4294901760
        %4052 = vmatpush1.msra.mxu0 %v4051
        %4053 = vmatprep.subr.mxu0 0.0
        %v4054 = vand.u32 %v3437, 4294901760
        %4055 = vmatpush1.msra.mxu0 %v4054
        %4056 = vmatprep.subr.mxu0 0.0
        %v4057 = vand.u32 %v3436, 4294901760
        %4058 = vmatpush1.msra.mxu0 %v4057
        %4059 = vmatprep.subr.mxu0 0.0
        %v4060 = vand.u32 %v3435, 4294901760
        %4061 = vmatpush1.msra.mxu0 %v4060
        %4062 = vmatprep.subr.mxu0 0.0
        %v4063 = vand.u32 %v3434, 4294901760
        %4064 = vmatpush1.msra.mxu0 %v4063
        %4065 = vmatprep.subr.mxu0 0.0
        %v4066 = vand.u32 %v3433, 4294901760
        %4067 = vmatpush1.msra.mxu0 %v4066
        %4068 = vmatprep.subr.mxu0 0.0
        %v4069 = vand.u32 %v3432, 4294901760
        %4070 = vmatpush1.msra.mxu0 %v4069
        %4071 = vmatprep.subr.mxu0 0.0
        %v4072 = vand.u32 %v3431, 4294901760
        %4073 = vmatpush1.msra.mxu0 %v4072
        %4074 = vmatprep.subr.mxu0 0.0
        %v4075 = vand.u32 %v3430, 4294901760
        %4076 = vmatpush1.msra.mxu0 %v4075
        %4077 = vmatprep.subr.mxu0 0.0
        %v4078 = vand.u32 %v3429, 4294901760
        %4079 = vmatpush1.msra.mxu0 %v4078
        %4080 = vmatprep.subr.mxu0 0.0
        %v4081 = vand.u32 %v3428, 4294901760
        %4082 = vmatpush1.msra.mxu0 %v4081
        %4083 = vmatprep.subr.mxu0 0.0
        %4084 = vmatpush2.msra.mxu0 0.0
        %4085 = vmatprep.subr.mxu0 0.0
        %4086 = vmatpush2.msra.mxu0 0.0
        %4087 = vmatprep.subr.mxu0 0.0
        %4088 = vmatpush2.msra.mxu0 0.0
        %4089 = vmatprep.subr.mxu0 0.0
        %4090 = vmatpush2.msra.mxu0 0.0
        %4091 = vmatprep.subr.mxu0 0.0
        %4092 = vmatpush2.msra.mxu0 0.0
        %4093 = vmatprep.subr.mxu0 0.0
        %4094 = vmatpush2.msra.mxu0 0.0
        %4095 = vmatprep.subr.mxu0 0.0
        %4096 = vmatpush2.msra.mxu0 0.0
        %4097 = vmatprep.subr.mxu0 0.0
        %4098 = vmatpush2.msra.mxu0 0.0
        %4099 = vmatprep.subr.mxu0 0.0
        %4100 = vmatpush2.msra.mxu0 0.0
        %4101 = vmatprep.subr.mxu0 0.0
        %4102 = vmatpush2.msra.mxu0 0.0
        %4103 = vmatprep.subr.mxu0 0.0
        %4104 = vmatpush2.msra.mxu0 0.0
        %4105 = vmatprep.subr.mxu0 0.0
        %4106 = vmatpush2.msra.mxu0 0.0
        %4107 = vmatprep.subr.mxu0 0.0
        %4108 = vmatpush2.msra.mxu0 0.0
        %4109 = vmatprep.subr.mxu0 0.0
        %4110 = vmatpush2.msra.mxu0 0.0
        %4111 = vmatprep.subr.mxu0 0.0
        %4112 = vmatpush2.msra.mxu0 0.0
        %4113 = vmatprep.subr.mxu0 0.0
        %4114 = vmatpush2.msra.mxu0 0.0
        %4115 = vmatprep.mubr.f32.mxu0 0.0
        %v4116 = vand.u32 %v3426, 4294901760
        %4117 = vmatmul.mubr.f32.gmra.mxu0 %v4116
        %v4118 = vpop.f32.mrf.mxu0
        %v4119 = vadd.f32 %v4026, %v4118
        %v4120 = vpop.f32.mrf.mxu0
        %4121 = vmatprep.mubr.f32.mxu0 0.0
        %v4122 = vand.u32 %v3427, 4294901760
        %4123 = vmatmul.mubr.f32.gmra.mxu0 %v4122
        %v4124 = vpop.f32.mrf.mxu0
        %v4125 = vadd.f32 %v4032, %v4124
        %v4126 = vpop.f32.mrf.mxu0
        %4127 = vdwg.mxu0
        %v4128 = vadd.f32 %v3424, %v4119
        %v4129 = vadd.f32 %v3425, %v4125
        %v4130 = vld [vmem:[#allocation2 + $0x2] sm:$0xff]
        %v4131 = vld [vmem:[#allocation2 + $0xa] sm:$0xff]
        %s4132 = scalar_lea.vmem [#allocation6], 256
        %v4133 = vld [vmem:[%s4132] sm:$0xff]
        %v4134 = vld [vmem:[%s4132 + $0x8] sm:$0xff]
        %v4135 = vld [vmem:[%s4132 + $0x10] sm:$0xff]
        %v4136 = vld [vmem:[%s4132 + $0x18] sm:$0xff]
        %v4137 = vld [vmem:[%s4132 + $0x20] sm:$0xff]
        %v4138 = vld [vmem:[%s4132 + $0x28] sm:$0xff]
        %v4139 = vld [vmem:[%s4132 + $0x30] sm:$0xff]
        %v4140 = vld [vmem:[%s4132 + $0x38] sm:$0xff]
        %v4141 = vld [vmem:[%s4132 + $0x40] sm:$0xff]
        %v4142 = vld [vmem:[%s4132 + $0x48] sm:$0xff]
        %v4143 = vld [vmem:[%s4132 + $0x50] sm:$0xff]
        %v4144 = vld [vmem:[%s4132 + $0x58] sm:$0xff]
        %v4145 = vld [vmem:[%s4132 + $0x60] sm:$0xff]
        %v4146 = vld [vmem:[%s4132 + $0x68] sm:$0xff]
        %v4147 = vld [vmem:[%s4132 + $0x70] sm:$0xff]
        %v4148 = vld [vmem:[%s4132 + $0x78] sm:$0xff]
        %4149 = vmatprep.subr.mxu0 0.0
        %v4150 = vand.u32 %v4148, 4294901760
        %4151 = vmatpush1.msra.mxu0 %v4150
        %4152 = vmatprep.subr.mxu0 0.0
        %v4153 = vand.u32 %v4147, 4294901760
        %4154 = vmatpush1.msra.mxu0 %v4153
        %4155 = vmatprep.subr.mxu0 0.0
        %v4156 = vand.u32 %v4146, 4294901760
        %4157 = vmatpush1.msra.mxu0 %v4156
        %4158 = vmatprep.subr.mxu0 0.0
        %v4159 = vand.u32 %v4145, 4294901760
        %4160 = vmatpush1.msra.mxu0 %v4159
        %4161 = vmatprep.subr.mxu0 0.0
        %v4162 = vand.u32 %v4144, 4294901760
        %4163 = vmatpush1.msra.mxu0 %v4162
        %4164 = vmatprep.subr.mxu0 0.0
        %v4165 = vand.u32 %v4143, 4294901760
        %4166 = vmatpush1.msra.mxu0 %v4165
        %4167 = vmatprep.subr.mxu0 0.0
        %v4168 = vand.u32 %v4142, 4294901760
        %4169 = vmatpush1.msra.mxu0 %v4168
        %4170 = vmatprep.subr.mxu0 0.0
        %v4171 = vand.u32 %v4141, 4294901760
        %4172 = vmatpush1.msra.mxu0 %v4171
        %4173 = vmatprep.subr.mxu0 0.0
        %v4174 = vand.u32 %v4140, 4294901760
        %4175 = vmatpush1.msra.mxu0 %v4174
        %4176 = vmatprep.subr.mxu0 0.0
        %v4177 = vand.u32 %v4139, 4294901760
        %4178 = vmatpush1.msra.mxu0 %v4177
        %4179 = vmatprep.subr.mxu0 0.0
        %v4180 = vand.u32 %v4138, 4294901760
        %4181 = vmatpush1.msra.mxu0 %v4180
        %4182 = vmatprep.subr.mxu0 0.0
        %v4183 = vand.u32 %v4137, 4294901760
        %4184 = vmatpush1.msra.mxu0 %v4183
        %4185 = vmatprep.subr.mxu0 0.0
        %v4186 = vand.u32 %v4136, 4294901760
        %4187 = vmatpush1.msra.mxu0 %v4186
        %4188 = vmatprep.subr.mxu0 0.0
        %v4189 = vand.u32 %v4135, 4294901760
        %4190 = vmatpush1.msra.mxu0 %v4189
        %4191 = vmatprep.subr.mxu0 0.0
        %v4192 = vand.u32 %v4134, 4294901760
        %4193 = vmatpush1.msra.mxu0 %v4192
        %4194 = vmatprep.subr.mxu0 0.0
        %v4195 = vand.u32 %v4133, 4294901760
        %4196 = vmatpush1.msra.mxu0 %v4195
        %4197 = vmatprep.subr.mxu0 0.0
        %4198 = vmatpush2.msra.mxu0 0.0
        %4199 = vmatprep.subr.mxu0 0.0
        %4200 = vmatpush2.msra.mxu0 0.0
        %4201 = vmatprep.subr.mxu0 0.0
        %4202 = vmatpush2.msra.mxu0 0.0
        %4203 = vmatprep.subr.mxu0 0.0
        %4204 = vmatpush2.msra.mxu0 0.0
        %4205 = vmatprep.subr.mxu0 0.0
        %4206 = vmatpush2.msra.mxu0 0.0
        %4207 = vmatprep.subr.mxu0 0.0
        %4208 = vmatpush2.msra.mxu0 0.0
        %4209 = vmatprep.subr.mxu0 0.0
        %4210 = vmatpush2.msra.mxu0 0.0
        %4211 = vmatprep.subr.mxu0 0.0
        %4212 = vmatpush2.msra.mxu0 0.0
        %4213 = vmatprep.subr.mxu0 0.0
        %4214 = vmatpush2.msra.mxu0 0.0
        %4215 = vmatprep.subr.mxu0 0.0
        %4216 = vmatpush2.msra.mxu0 0.0
        %4217 = vmatprep.subr.mxu0 0.0
        %4218 = vmatpush2.msra.mxu0 0.0
        %4219 = vmatprep.subr.mxu0 0.0
        %4220 = vmatpush2.msra.mxu0 0.0
        %4221 = vmatprep.subr.mxu0 0.0
        %4222 = vmatpush2.msra.mxu0 0.0
        %4223 = vmatprep.subr.mxu0 0.0
        %4224 = vmatpush2.msra.mxu0 0.0
        %4225 = vmatprep.subr.mxu0 0.0
        %4226 = vmatpush2.msra.mxu0 0.0
        %4227 = vmatprep.subr.mxu0 0.0
        %4228 = vmatpush2.msra.mxu0 0.0
        %4229 = vmatprep.mubr.f32.mxu0 0.0
        %v4230 = vand.u32 %v4130, 4294901760
        %v4231 = vsub.f32 %v4130, %v4230
        %v4232 = vand.u32 %v4231, 4294901760
        %v4233 = vsub.f32 %v4231, %v4232
        %v4234 = vand.u32 %v4233, 4294901760
        %4235 = vmatmul.mubr.f32.gmra.mxu0 %v4234
        %v4236 = vpop.f32.mrf.mxu0
        %v4237 = vadd.f32 0.0, %v4236
        %v4238 = vpop.f32.mrf.mxu0
        %4239 = vmatprep.mubr.f32.mxu0 0.0
        %v4240 = vand.u32 %v4131, 4294901760
        %v4241 = vsub.f32 %v4131, %v4240
        %v4242 = vand.u32 %v4241, 4294901760
        %v4243 = vsub.f32 %v4241, %v4242
        %v4244 = vand.u32 %v4243, 4294901760
        %4245 = vmatmul.mubr.f32.gmra.mxu0 %v4244
        %v4246 = vpop.f32.mrf.mxu0
        %v4247 = vadd.f32 0.0, %v4246
        %v4248 = vpop.f32.mrf.mxu0
        %4249 = vdwg.mxu0
        %4250 = vmatprep.subr.mxu0 0.0
        %v4251 = vand.u32 %v4148, 4294901760
        %v4252 = vsub.f32 %v4148, %v4251
        %v4253 = vand.u32 %v4252, 4294901760
        %v4254 = vsub.f32 %v4252, %v4253
        %v4255 = vand.u32 %v4254, 4294901760
        %4256 = vmatpush1.msra.mxu0 %v4255
        %4257 = vmatprep.subr.mxu0 0.0
        %v4258 = vand.u32 %v4147, 4294901760
        %v4259 = vsub.f32 %v4147, %v4258
        %v4260 = vand.u32 %v4259, 4294901760
        %v4261 = vsub.f32 %v4259, %v4260
        %v4262 = vand.u32 %v4261, 4294901760
        %4263 = vmatpush1.msra.mxu0 %v4262
        %4264 = vmatprep.subr.mxu0 0.0
        %v4265 = vand.u32 %v4146, 4294901760
        %v4266 = vsub.f32 %v4146, %v4265
        %v4267 = vand.u32 %v4266, 4294901760
        %v4268 = vsub.f32 %v4266, %v4267
        %v4269 = vand.u32 %v4268, 4294901760
        %4270 = vmatpush1.msra.mxu0 %v4269
        %4271 = vmatprep.subr.mxu0 0.0
        %v4272 = vand.u32 %v4145, 4294901760
        %v4273 = vsub.f32 %v4145, %v4272
        %v4274 = vand.u32 %v4273, 4294901760
        %v4275 = vsub.f32 %v4273, %v4274
        %v4276 = vand.u32 %v4275, 4294901760
        %4277 = vmatpush1.msra.mxu0 %v4276
        %4278 = vmatprep.subr.mxu0 0.0
        %v4279 = vand.u32 %v4144, 4294901760
        %v4280 = vsub.f32 %v4144, %v4279
        %v4281 = vand.u32 %v4280, 4294901760
        %v4282 = vsub.f32 %v4280, %v4281
        %v4283 = vand.u32 %v4282, 4294901760
        %4284 = vmatpush1.msra.mxu0 %v4283
        %4285 = vmatprep.subr.mxu0 0.0
        %v4286 = vand.u32 %v4143, 4294901760
        %v4287 = vsub.f32 %v4143, %v4286
        %v4288 = vand.u32 %v4287, 4294901760
        %v4289 = vsub.f32 %v4287, %v4288
        %v4290 = vand.u32 %v4289, 4294901760
        %4291 = vmatpush1.msra.mxu0 %v4290
        %4292 = vmatprep.subr.mxu0 0.0
        %v4293 = vand.u32 %v4142, 4294901760
        %v4294 = vsub.f32 %v4142, %v4293
        %v4295 = vand.u32 %v4294, 4294901760
        %v4296 = vsub.f32 %v4294, %v4295
        %v4297 = vand.u32 %v4296, 4294901760
        %4298 = vmatpush1.msra.mxu0 %v4297
        %4299 = vmatprep.subr.mxu0 0.0
        %v4300 = vand.u32 %v4141, 4294901760
        %v4301 = vsub.f32 %v4141, %v4300
        %v4302 = vand.u32 %v4301, 4294901760
        %v4303 = vsub.f32 %v4301, %v4302
        %v4304 = vand.u32 %v4303, 4294901760
        %4305 = vmatpush1.msra.mxu0 %v4304
        %4306 = vmatprep.subr.mxu0 0.0
        %v4307 = vand.u32 %v4140, 4294901760
        %v4308 = vsub.f32 %v4140, %v4307
        %v4309 = vand.u32 %v4308, 4294901760
        %v4310 = vsub.f32 %v4308, %v4309
        %v4311 = vand.u32 %v4310, 4294901760
        %4312 = vmatpush1.msra.mxu0 %v4311
        %4313 = vmatprep.subr.mxu0 0.0
        %v4314 = vand.u32 %v4139, 4294901760
        %v4315 = vsub.f32 %v4139, %v4314
        %v4316 = vand.u32 %v4315, 4294901760
        %v4317 = vsub.f32 %v4315, %v4316
        %v4318 = vand.u32 %v4317, 4294901760
        %4319 = vmatpush1.msra.mxu0 %v4318
        %4320 = vmatprep.subr.mxu0 0.0
        %v4321 = vand.u32 %v4138, 4294901760
        %v4322 = vsub.f32 %v4138, %v4321
        %v4323 = vand.u32 %v4322, 4294901760
        %v4324 = vsub.f32 %v4322, %v4323
        %v4325 = vand.u32 %v4324, 4294901760
        %4326 = vmatpush1.msra.mxu0 %v4325
        %4327 = vmatprep.subr.mxu0 0.0
        %v4328 = vand.u32 %v4137, 4294901760
        %v4329 = vsub.f32 %v4137, %v4328
        %v4330 = vand.u32 %v4329, 4294901760
        %v4331 = vsub.f32 %v4329, %v4330
        %v4332 = vand.u32 %v4331, 4294901760
        %4333 = vmatpush1.msra.mxu0 %v4332
        %4334 = vmatprep.subr.mxu0 0.0
        %v4335 = vand.u32 %v4136, 4294901760
        %v4336 = vsub.f32 %v4136, %v4335
        %v4337 = vand.u32 %v4336, 4294901760
        %v4338 = vsub.f32 %v4336, %v4337
        %v4339 = vand.u32 %v4338, 4294901760
        %4340 = vmatpush1.msra.mxu0 %v4339
        %4341 = vmatprep.subr.mxu0 0.0
        %v4342 = vand.u32 %v4135, 4294901760
        %v4343 = vsub.f32 %v4135, %v4342
        %v4344 = vand.u32 %v4343, 4294901760
        %v4345 = vsub.f32 %v4343, %v4344
        %v4346 = vand.u32 %v4345, 4294901760
        %4347 = vmatpush1.msra.mxu0 %v4346
        %4348 = vmatprep.subr.mxu0 0.0
        %v4349 = vand.u32 %v4134, 4294901760
        %v4350 = vsub.f32 %v4134, %v4349
        %v4351 = vand.u32 %v4350, 4294901760
        %v4352 = vsub.f32 %v4350, %v4351
        %v4353 = vand.u32 %v4352, 4294901760
        %4354 = vmatpush1.msra.mxu0 %v4353
        %4355 = vmatprep.subr.mxu0 0.0
        %v4356 = vand.u32 %v4133, 4294901760
        %v4357 = vsub.f32 %v4133, %v4356
        %v4358 = vand.u32 %v4357, 4294901760
        %v4359 = vsub.f32 %v4357, %v4358
        %v4360 = vand.u32 %v4359, 4294901760
        %4361 = vmatpush1.msra.mxu0 %v4360
        %4362 = vmatprep.subr.mxu0 0.0
        %4363 = vmatpush2.msra.mxu0 0.0
        %4364 = vmatprep.subr.mxu0 0.0
        %4365 = vmatpush2.msra.mxu0 0.0
        %4366 = vmatprep.subr.mxu0 0.0
        %4367 = vmatpush2.msra.mxu0 0.0
        %4368 = vmatprep.subr.mxu0 0.0
        %4369 = vmatpush2.msra.mxu0 0.0
        %4370 = vmatprep.subr.mxu0 0.0
        %4371 = vmatpush2.msra.mxu0 0.0
        %4372 = vmatprep.subr.mxu0 0.0
        %4373 = vmatpush2.msra.mxu0 0.0
        %4374 = vmatprep.subr.mxu0 0.0
        %4375 = vmatpush2.msra.mxu0 0.0
        %4376 = vmatprep.subr.mxu0 0.0
        %4377 = vmatpush2.msra.mxu0 0.0
        %4378 = vmatprep.subr.mxu0 0.0
        %4379 = vmatpush2.msra.mxu0 0.0
        %4380 = vmatprep.subr.mxu0 0.0
        %4381 = vmatpush2.msra.mxu0 0.0
        %4382 = vmatprep.subr.mxu0 0.0
        %4383 = vmatpush2.msra.mxu0 0.0
        %4384 = vmatprep.subr.mxu0 0.0
        %4385 = vmatpush2.msra.mxu0 0.0
        %4386 = vmatprep.subr.mxu0 0.0
        %4387 = vmatpush2.msra.mxu0 0.0
        %4388 = vmatprep.subr.mxu0 0.0
        %4389 = vmatpush2.msra.mxu0 0.0
        %4390 = vmatprep.subr.mxu0 0.0
        %4391 = vmatpush2.msra.mxu0 0.0
        %4392 = vmatprep.subr.mxu0 0.0
        %4393 = vmatpush2.msra.mxu0 0.0
        %4394 = vmatprep.mubr.f32.mxu0 0.0
        %v4395 = vand.u32 %v4130, 4294901760
        %4396 = vmatmul.mubr.f32.gmra.mxu0 %v4395
        %v4397 = vpop.f32.mrf.mxu0
        %v4398 = vadd.f32 %v4237, %v4397
        %v4399 = vpop.f32.mrf.mxu0
        %4400 = vmatprep.mubr.f32.mxu0 0.0
        %v4401 = vand.u32 %v4131, 4294901760
        %4402 = vmatmul.mubr.f32.gmra.mxu0 %v4401
        %v4403 = vpop.f32.mrf.mxu0
        %v4404 = vadd.f32 %v4247, %v4403
        %v4405 = vpop.f32.mrf.mxu0
        %4406 = vdwg.mxu0
        %4407 = vmatprep.subr.mxu0 0.0
        %v4408 = vand.u32 %v4148, 4294901760
        %v4409 = vsub.f32 %v4148, %v4408
        %4410 = vmatpush1.msra.mxu0 %v4409
        %4411 = vmatprep.subr.mxu0 0.0
        %v4412 = vand.u32 %v4147, 4294901760
        %v4413 = vsub.f32 %v4147, %v4412
        %4414 = vmatpush1.msra.mxu0 %v4413
        %4415 = vmatprep.subr.mxu0 0.0
        %v4416 = vand.u32 %v4146, 4294901760
        %v4417 = vsub.f32 %v4146, %v4416
        %4418 = vmatpush1.msra.mxu0 %v4417
        %4419 = vmatprep.subr.mxu0 0.0
        %v4420 = vand.u32 %v4145, 4294901760
        %v4421 = vsub.f32 %v4145, %v4420
        %4422 = vmatpush1.msra.mxu0 %v4421
        %4423 = vmatprep.subr.mxu0 0.0
        %v4424 = vand.u32 %v4144, 4294901760
        %v4425 = vsub.f32 %v4144, %v4424
        %4426 = vmatpush1.msra.mxu0 %v4425
        %4427 = vmatprep.subr.mxu0 0.0
        %v4428 = vand.u32 %v4143, 4294901760
        %v4429 = vsub.f32 %v4143, %v4428
        %4430 = vmatpush1.msra.mxu0 %v4429
        %4431 = vmatprep.subr.mxu0 0.0
        %v4432 = vand.u32 %v4142, 4294901760
        %v4433 = vsub.f32 %v4142, %v4432
        %4434 = vmatpush1.msra.mxu0 %v4433
        %4435 = vmatprep.subr.mxu0 0.0
        %v4436 = vand.u32 %v4141, 4294901760
        %v4437 = vsub.f32 %v4141, %v4436
        %4438 = vmatpush1.msra.mxu0 %v4437
        %4439 = vmatprep.subr.mxu0 0.0
        %v4440 = vand.u32 %v4140, 4294901760
        %v4441 = vsub.f32 %v4140, %v4440
        %4442 = vmatpush1.msra.mxu0 %v4441
        %4443 = vmatprep.subr.mxu0 0.0
        %v4444 = vand.u32 %v4139, 4294901760
        %v4445 = vsub.f32 %v4139, %v4444
        %4446 = vmatpush1.msra.mxu0 %v4445
        %4447 = vmatprep.subr.mxu0 0.0
        %v4448 = vand.u32 %v4138, 4294901760
        %v4449 = vsub.f32 %v4138, %v4448
        %4450 = vmatpush1.msra.mxu0 %v4449
        %4451 = vmatprep.subr.mxu0 0.0
        %v4452 = vand.u32 %v4137, 4294901760
        %v4453 = vsub.f32 %v4137, %v4452
        %4454 = vmatpush1.msra.mxu0 %v4453
        %4455 = vmatprep.subr.mxu0 0.0
        %v4456 = vand.u32 %v4136, 4294901760
        %v4457 = vsub.f32 %v4136, %v4456
        %4458 = vmatpush1.msra.mxu0 %v4457
        %4459 = vmatprep.subr.mxu0 0.0
        %v4460 = vand.u32 %v4135, 4294901760
        %v4461 = vsub.f32 %v4135, %v4460
        %4462 = vmatpush1.msra.mxu0 %v4461
        %4463 = vmatprep.subr.mxu0 0.0
        %v4464 = vand.u32 %v4134, 4294901760
        %v4465 = vsub.f32 %v4134, %v4464
        %4466 = vmatpush1.msra.mxu0 %v4465
        %4467 = vmatprep.subr.mxu0 0.0
        %v4468 = vand.u32 %v4133, 4294901760
        %v4469 = vsub.f32 %v4133, %v4468
        %4470 = vmatpush1.msra.mxu0 %v4469
        %4471 = vmatprep.subr.mxu0 0.0
        %4472 = vmatpush2.msra.mxu0 0.0
        %4473 = vmatprep.subr.mxu0 0.0
        %4474 = vmatpush2.msra.mxu0 0.0
        %4475 = vmatprep.subr.mxu0 0.0
        %4476 = vmatpush2.msra.mxu0 0.0
        %4477 = vmatprep.subr.mxu0 0.0
        %4478 = vmatpush2.msra.mxu0 0.0
        %4479 = vmatprep.subr.mxu0 0.0
        %4480 = vmatpush2.msra.mxu0 0.0
        %4481 = vmatprep.subr.mxu0 0.0
        %4482 = vmatpush2.msra.mxu0 0.0
        %4483 = vmatprep.subr.mxu0 0.0
        %4484 = vmatpush2.msra.mxu0 0.0
        %4485 = vmatprep.subr.mxu0 0.0
        %4486 = vmatpush2.msra.mxu0 0.0
        %4487 = vmatprep.subr.mxu0 0.0
        %4488 = vmatpush2.msra.mxu0 0.0
        %4489 = vmatprep.subr.mxu0 0.0
        %4490 = vmatpush2.msra.mxu0 0.0
        %4491 = vmatprep.subr.mxu0 0.0
        %4492 = vmatpush2.msra.mxu0 0.0
        %4493 = vmatprep.subr.mxu0 0.0
        %4494 = vmatpush2.msra.mxu0 0.0
        %4495 = vmatprep.subr.mxu0 0.0
        %4496 = vmatpush2.msra.mxu0 0.0
        %4497 = vmatprep.subr.mxu0 0.0
        %4498 = vmatpush2.msra.mxu0 0.0
        %4499 = vmatprep.subr.mxu0 0.0
        %4500 = vmatpush2.msra.mxu0 0.0
        %4501 = vmatprep.subr.mxu0 0.0
        %4502 = vmatpush2.msra.mxu0 0.0
        %4503 = vmatprep.mubr.f32.mxu0 0.0
        %v4504 = vand.u32 %v4130, 4294901760
        %v4505 = vsub.f32 %v4130, %v4504
        %4506 = vmatmul.mubr.f32.gmra.mxu0 %v4505
        %v4507 = vpop.f32.mrf.mxu0
        %v4508 = vadd.f32 %v4398, %v4507
        %v4509 = vpop.f32.mrf.mxu0
        %4510 = vmatprep.mubr.f32.mxu0 0.0
        %v4511 = vand.u32 %v4131, 4294901760
        %v4512 = vsub.f32 %v4131, %v4511
        %4513 = vmatmul.mubr.f32.gmra.mxu0 %v4512
        %v4514 = vpop.f32.mrf.mxu0
        %v4515 = vadd.f32 %v4404, %v4514
        %v4516 = vpop.f32.mrf.mxu0
        %4517 = vdwg.mxu0
        %4518 = vmatprep.subr.mxu0 0.0
        %v4519 = vand.u32 %v4148, 4294901760
        %4520 = vmatpush1.msra.mxu0 %v4519
        %4521 = vmatprep.subr.mxu0 0.0
        %v4522 = vand.u32 %v4147, 4294901760
        %4523 = vmatpush1.msra.mxu0 %v4522
        %4524 = vmatprep.subr.mxu0 0.0
        %v4525 = vand.u32 %v4146, 4294901760
        %4526 = vmatpush1.msra.mxu0 %v4525
        %4527 = vmatprep.subr.mxu0 0.0
        %v4528 = vand.u32 %v4145, 4294901760
        %4529 = vmatpush1.msra.mxu0 %v4528
        %4530 = vmatprep.subr.mxu0 0.0
        %v4531 = vand.u32 %v4144, 4294901760
        %4532 = vmatpush1.msra.mxu0 %v4531
        %4533 = vmatprep.subr.mxu0 0.0
        %v4534 = vand.u32 %v4143, 4294901760
        %4535 = vmatpush1.msra.mxu0 %v4534
        %4536 = vmatprep.subr.mxu0 0.0
        %v4537 = vand.u32 %v4142, 4294901760
        %4538 = vmatpush1.msra.mxu0 %v4537
        %4539 = vmatprep.subr.mxu0 0.0
        %v4540 = vand.u32 %v4141, 4294901760
        %4541 = vmatpush1.msra.mxu0 %v4540
        %4542 = vmatprep.subr.mxu0 0.0
        %v4543 = vand.u32 %v4140, 4294901760
        %4544 = vmatpush1.msra.mxu0 %v4543
        %4545 = vmatprep.subr.mxu0 0.0
        %v4546 = vand.u32 %v4139, 4294901760
        %4547 = vmatpush1.msra.mxu0 %v4546
        %4548 = vmatprep.subr.mxu0 0.0
        %v4549 = vand.u32 %v4138, 4294901760
        %4550 = vmatpush1.msra.mxu0 %v4549
        %4551 = vmatprep.subr.mxu0 0.0
        %v4552 = vand.u32 %v4137, 4294901760
        %4553 = vmatpush1.msra.mxu0 %v4552
        %4554 = vmatprep.subr.mxu0 0.0
        %v4555 = vand.u32 %v4136, 4294901760
        %4556 = vmatpush1.msra.mxu0 %v4555
        %4557 = vmatprep.subr.mxu0 0.0
        %v4558 = vand.u32 %v4135, 4294901760
        %4559 = vmatpush1.msra.mxu0 %v4558
        %4560 = vmatprep.subr.mxu0 0.0
        %v4561 = vand.u32 %v4134, 4294901760
        %4562 = vmatpush1.msra.mxu0 %v4561
        %4563 = vmatprep.subr.mxu0 0.0
        %v4564 = vand.u32 %v4133, 4294901760
        %4565 = vmatpush1.msra.mxu0 %v4564
        %4566 = vmatprep.subr.mxu0 0.0
        %4567 = vmatpush2.msra.mxu0 0.0
        %4568 = vmatprep.subr.mxu0 0.0
        %4569 = vmatpush2.msra.mxu0 0.0
        %4570 = vmatprep.subr.mxu0 0.0
        %4571 = vmatpush2.msra.mxu0 0.0
        %4572 = vmatprep.subr.mxu0 0.0
        %4573 = vmatpush2.msra.mxu0 0.0
        %4574 = vmatprep.subr.mxu0 0.0
        %4575 = vmatpush2.msra.mxu0 0.0
        %4576 = vmatprep.subr.mxu0 0.0
        %4577 = vmatpush2.msra.mxu0 0.0
        %4578 = vmatprep.subr.mxu0 0.0
        %4579 = vmatpush2.msra.mxu0 0.0
        %4580 = vmatprep.subr.mxu0 0.0
        %4581 = vmatpush2.msra.mxu0 0.0
        %4582 = vmatprep.subr.mxu0 0.0
        %4583 = vmatpush2.msra.mxu0 0.0
        %4584 = vmatprep.subr.mxu0 0.0
        %4585 = vmatpush2.msra.mxu0 0.0
        %4586 = vmatprep.subr.mxu0 0.0
        %4587 = vmatpush2.msra.mxu0 0.0
        %4588 = vmatprep.subr.mxu0 0.0
        %4589 = vmatpush2.msra.mxu0 0.0
        %4590 = vmatprep.subr.mxu0 0.0
        %4591 = vmatpush2.msra.mxu0 0.0
        %4592 = vmatprep.subr.mxu0 0.0
        %4593 = vmatpush2.msra.mxu0 0.0
        %4594 = vmatprep.subr.mxu0 0.0
        %4595 = vmatpush2.msra.mxu0 0.0
        %4596 = vmatprep.subr.mxu0 0.0
        %4597 = vmatpush2.msra.mxu0 0.0
        %4598 = vmatprep.mubr.f32.mxu0 0.0
        %v4599 = vand.u32 %v4130, 4294901760
        %v4600 = vsub.f32 %v4130, %v4599
        %v4601 = vand.u32 %v4600, 4294901760
        %4602 = vmatmul.mubr.f32.gmra.mxu0 %v4601
        %v4603 = vpop.f32.mrf.mxu0
        %v4604 = vadd.f32 %v4508, %v4603
        %v4605 = vpop.f32.mrf.mxu0
        %4606 = vmatprep.mubr.f32.mxu0 0.0
        %v4607 = vand.u32 %v4131, 4294901760
        %v4608 = vsub.f32 %v4131, %v4607
        %v4609 = vand.u32 %v4608, 4294901760
        %4610 = vmatmul.mubr.f32.gmra.mxu0 %v4609
        %v4611 = vpop.f32.mrf.mxu0
        %v4612 = vadd.f32 %v4515, %v4611
        %v4613 = vpop.f32.mrf.mxu0
        %4614 = vdwg.mxu0
        %4615 = vmatprep.subr.mxu0 0.0
        %v4616 = vand.u32 %v4148, 4294901760
        %v4617 = vsub.f32 %v4148, %v4616
        %v4618 = vand.u32 %v4617, 4294901760
        %4619 = vmatpush1.msra.mxu0 %v4618
        %4620 = vmatprep.subr.mxu0 0.0
        %v4621 = vand.u32 %v4147, 4294901760
        %v4622 = vsub.f32 %v4147, %v4621
        %v4623 = vand.u32 %v4622, 4294901760
        %4624 = vmatpush1.msra.mxu0 %v4623
        %4625 = vmatprep.subr.mxu0 0.0
        %v4626 = vand.u32 %v4146, 4294901760
        %v4627 = vsub.f32 %v4146, %v4626
        %v4628 = vand.u32 %v4627, 4294901760
        %4629 = vmatpush1.msra.mxu0 %v4628
        %4630 = vmatprep.subr.mxu0 0.0
        %v4631 = vand.u32 %v4145, 4294901760
        %v4632 = vsub.f32 %v4145, %v4631
        %v4633 = vand.u32 %v4632, 4294901760
        %4634 = vmatpush1.msra.mxu0 %v4633
        %4635 = vmatprep.subr.mxu0 0.0
        %v4636 = vand.u32 %v4144, 4294901760
        %v4637 = vsub.f32 %v4144, %v4636
        %v4638 = vand.u32 %v4637, 4294901760
        %4639 = vmatpush1.msra.mxu0 %v4638
        %4640 = vmatprep.subr.mxu0 0.0
        %v4641 = vand.u32 %v4143, 4294901760
        %v4642 = vsub.f32 %v4143, %v4641
        %v4643 = vand.u32 %v4642, 4294901760
        %4644 = vmatpush1.msra.mxu0 %v4643
        %4645 = vmatprep.subr.mxu0 0.0
        %v4646 = vand.u32 %v4142, 4294901760
        %v4647 = vsub.f32 %v4142, %v4646
        %v4648 = vand.u32 %v4647, 4294901760
        %4649 = vmatpush1.msra.mxu0 %v4648
        %4650 = vmatprep.subr.mxu0 0.0
        %v4651 = vand.u32 %v4141, 4294901760
        %v4652 = vsub.f32 %v4141, %v4651
        %v4653 = vand.u32 %v4652, 4294901760
        %4654 = vmatpush1.msra.mxu0 %v4653
        %4655 = vmatprep.subr.mxu0 0.0
        %v4656 = vand.u32 %v4140, 4294901760
        %v4657 = vsub.f32 %v4140, %v4656
        %v4658 = vand.u32 %v4657, 4294901760
        %4659 = vmatpush1.msra.mxu0 %v4658
        %4660 = vmatprep.subr.mxu0 0.0
        %v4661 = vand.u32 %v4139, 4294901760
        %v4662 = vsub.f32 %v4139, %v4661
        %v4663 = vand.u32 %v4662, 4294901760
        %4664 = vmatpush1.msra.mxu0 %v4663
        %4665 = vmatprep.subr.mxu0 0.0
        %v4666 = vand.u32 %v4138, 4294901760
        %v4667 = vsub.f32 %v4138, %v4666
        %v4668 = vand.u32 %v4667, 4294901760
        %4669 = vmatpush1.msra.mxu0 %v4668
        %4670 = vmatprep.subr.mxu0 0.0
        %v4671 = vand.u32 %v4137, 4294901760
        %v4672 = vsub.f32 %v4137, %v4671
        %v4673 = vand.u32 %v4672, 4294901760
        %4674 = vmatpush1.msra.mxu0 %v4673
        %4675 = vmatprep.subr.mxu0 0.0
        %v4676 = vand.u32 %v4136, 4294901760
        %v4677 = vsub.f32 %v4136, %v4676
        %v4678 = vand.u32 %v4677, 4294901760
        %4679 = vmatpush1.msra.mxu0 %v4678
        %4680 = vmatprep.subr.mxu0 0.0
        %v4681 = vand.u32 %v4135, 4294901760
        %v4682 = vsub.f32 %v4135, %v4681
        %v4683 = vand.u32 %v4682, 4294901760
        %4684 = vmatpush1.msra.mxu0 %v4683
        %4685 = vmatprep.subr.mxu0 0.0
        %v4686 = vand.u32 %v4134, 4294901760
        %v4687 = vsub.f32 %v4134, %v4686
        %v4688 = vand.u32 %v4687, 4294901760
        %4689 = vmatpush1.msra.mxu0 %v4688
        %4690 = vmatprep.subr.mxu0 0.0
        %v4691 = vand.u32 %v4133, 4294901760
        %v4692 = vsub.f32 %v4133, %v4691
        %v4693 = vand.u32 %v4692, 4294901760
        %4694 = vmatpush1.msra.mxu0 %v4693
        %4695 = vmatprep.subr.mxu0 0.0
        %4696 = vmatpush2.msra.mxu0 0.0
        %4697 = vmatprep.subr.mxu0 0.0
        %4698 = vmatpush2.msra.mxu0 0.0
        %4699 = vmatprep.subr.mxu0 0.0
        %4700 = vmatpush2.msra.mxu0 0.0
        %4701 = vmatprep.subr.mxu0 0.0
        %4702 = vmatpush2.msra.mxu0 0.0
        %4703 = vmatprep.subr.mxu0 0.0
        %4704 = vmatpush2.msra.mxu0 0.0
        %4705 = vmatprep.subr.mxu0 0.0
        %4706 = vmatpush2.msra.mxu0 0.0
        %4707 = vmatprep.subr.mxu0 0.0
        %4708 = vmatpush2.msra.mxu0 0.0
        %4709 = vmatprep.subr.mxu0 0.0
        %4710 = vmatpush2.msra.mxu0 0.0
        %4711 = vmatprep.subr.mxu0 0.0
        %4712 = vmatpush2.msra.mxu0 0.0
        %4713 = vmatprep.subr.mxu0 0.0
        %4714 = vmatpush2.msra.mxu0 0.0
        %4715 = vmatprep.subr.mxu0 0.0
        %4716 = vmatpush2.msra.mxu0 0.0
        %4717 = vmatprep.subr.mxu0 0.0
        %4718 = vmatpush2.msra.mxu0 0.0
        %4719 = vmatprep.subr.mxu0 0.0
        %4720 = vmatpush2.msra.mxu0 0.0
        %4721 = vmatprep.subr.mxu0 0.0
        %4722 = vmatpush2.msra.mxu0 0.0
        %4723 = vmatprep.subr.mxu0 0.0
        %4724 = vmatpush2.msra.mxu0 0.0
        %4725 = vmatprep.subr.mxu0 0.0
        %4726 = vmatpush2.msra.mxu0 0.0
        %4727 = vmatprep.mubr.f32.mxu0 0.0
        %v4728 = vand.u32 %v4130, 4294901760
        %4729 = vmatmul.mubr.f32.gmra.mxu0 %v4728
        %v4730 = vpop.f32.mrf.mxu0
        %v4731 = vadd.f32 %v4604, %v4730
        %v4732 = vpop.f32.mrf.mxu0
        %4733 = vmatprep.mubr.f32.mxu0 0.0
        %v4734 = vand.u32 %v4131, 4294901760
        %4735 = vmatmul.mubr.f32.gmra.mxu0 %v4734
        %v4736 = vpop.f32.mrf.mxu0
        %v4737 = vadd.f32 %v4612, %v4736
        %v4738 = vpop.f32.mrf.mxu0
        %4739 = vdwg.mxu0
        %4740 = vmatprep.subr.mxu0 0.0
        %v4741 = vand.u32 %v4148, 4294901760
        %4742 = vmatpush1.msra.mxu0 %v4741
        %4743 = vmatprep.subr.mxu0 0.0
        %v4744 = vand.u32 %v4147, 4294901760
        %4745 = vmatpush1.msra.mxu0 %v4744
        %4746 = vmatprep.subr.mxu0 0.0
        %v4747 = vand.u32 %v4146, 4294901760
        %4748 = vmatpush1.msra.mxu0 %v4747
        %4749 = vmatprep.subr.mxu0 0.0
        %v4750 = vand.u32 %v4145, 4294901760
        %4751 = vmatpush1.msra.mxu0 %v4750
        %4752 = vmatprep.subr.mxu0 0.0
        %v4753 = vand.u32 %v4144, 4294901760
        %4754 = vmatpush1.msra.mxu0 %v4753
        %4755 = vmatprep.subr.mxu0 0.0
        %v4756 = vand.u32 %v4143, 4294901760
        %4757 = vmatpush1.msra.mxu0 %v4756
        %4758 = vmatprep.subr.mxu0 0.0
        %v4759 = vand.u32 %v4142, 4294901760
        %4760 = vmatpush1.msra.mxu0 %v4759
        %4761 = vmatprep.subr.mxu0 0.0
        %v4762 = vand.u32 %v4141, 4294901760
        %4763 = vmatpush1.msra.mxu0 %v4762
        %4764 = vmatprep.subr.mxu0 0.0
        %v4765 = vand.u32 %v4140, 4294901760
        %4766 = vmatpush1.msra.mxu0 %v4765
        %4767 = vmatprep.subr.mxu0 0.0
        %v4768 = vand.u32 %v4139, 4294901760
        %4769 = vmatpush1.msra.mxu0 %v4768
        %4770 = vmatprep.subr.mxu0 0.0
        %v4771 = vand.u32 %v4138, 4294901760
        %4772 = vmatpush1.msra.mxu0 %v4771
        %4773 = vmatprep.subr.mxu0 0.0
        %v4774 = vand.u32 %v4137, 4294901760
        %4775 = vmatpush1.msra.mxu0 %v4774
        %4776 = vmatprep.subr.mxu0 0.0
        %v4777 = vand.u32 %v4136, 4294901760
        %4778 = vmatpush1.msra.mxu0 %v4777
        %4779 = vmatprep.subr.mxu0 0.0
        %v4780 = vand.u32 %v4135, 4294901760
        %4781 = vmatpush1.msra.mxu0 %v4780
        %4782 = vmatprep.subr.mxu0 0.0
        %v4783 = vand.u32 %v4134, 4294901760
        %4784 = vmatpush1.msra.mxu0 %v4783
        %4785 = vmatprep.subr.mxu0 0.0
        %v4786 = vand.u32 %v4133, 4294901760
        %4787 = vmatpush1.msra.mxu0 %v4786
        %4788 = vmatprep.subr.mxu0 0.0
        %4789 = vmatpush2.msra.mxu0 0.0
        %4790 = vmatprep.subr.mxu0 0.0
        %4791 = vmatpush2.msra.mxu0 0.0
        %4792 = vmatprep.subr.mxu0 0.0
        %4793 = vmatpush2.msra.mxu0 0.0
        %4794 = vmatprep.subr.mxu0 0.0
        %4795 = vmatpush2.msra.mxu0 0.0
        %4796 = vmatprep.subr.mxu0 0.0
        %4797 = vmatpush2.msra.mxu0 0.0
        %4798 = vmatprep.subr.mxu0 0.0
        %4799 = vmatpush2.msra.mxu0 0.0
        %4800 = vmatprep.subr.mxu0 0.0
        %4801 = vmatpush2.msra.mxu0 0.0
        %4802 = vmatprep.subr.mxu0 0.0
        %4803 = vmatpush2.msra.mxu0 0.0
        %4804 = vmatprep.subr.mxu0 0.0
        %4805 = vmatpush2.msra.mxu0 0.0
        %4806 = vmatprep.subr.mxu0 0.0
        %4807 = vmatpush2.msra.mxu0 0.0
        %4808 = vmatprep.subr.mxu0 0.0
        %4809 = vmatpush2.msra.mxu0 0.0
        %4810 = vmatprep.subr.mxu0 0.0
        %4811 = vmatpush2.msra.mxu0 0.0
        %4812 = vmatprep.subr.mxu0 0.0
        %4813 = vmatpush2.msra.mxu0 0.0
        %4814 = vmatprep.subr.mxu0 0.0
        %4815 = vmatpush2.msra.mxu0 0.0
        %4816 = vmatprep.subr.mxu0 0.0
        %4817 = vmatpush2.msra.mxu0 0.0
        %4818 = vmatprep.subr.mxu0 0.0
        %4819 = vmatpush2.msra.mxu0 0.0
        %4820 = vmatprep.mubr.f32.mxu0 0.0
        %v4821 = vand.u32 %v4130, 4294901760
        %4822 = vmatmul.mubr.f32.gmra.mxu0 %v4821
        %v4823 = vpop.f32.mrf.mxu0
        %v4824 = vadd.f32 %v4731, %v4823
        %v4825 = vpop.f32.mrf.mxu0
        %4826 = vmatprep.mubr.f32.mxu0 0.0
        %v4827 = vand.u32 %v4131, 4294901760
        %4828 = vmatmul.mubr.f32.gmra.mxu0 %v4827
        %v4829 = vpop.f32.mrf.mxu0
        %v4830 = vadd.f32 %v4737, %v4829
        %v4831 = vpop.f32.mrf.mxu0
        %4832 = vdwg.mxu0
        %v4833 = vadd.f32 %v4128, %v4824
        %v4834 = vadd.f32 %v4129, %v4830
        %v4835 = vadd.f32 %v4833, %v2710
        %v4836 = vadd.f32 %v4834, %v2711
        %v4837 = vmul.f32 %v4835, 0.01
        %v4838 = vmul.f32 %v4836, 0.01
        %v4839 = vmax.f32 %v4835, %v4837
        %v4840 = vmax.f32 %v4836, %v4838
        %4841 = vst [vmem:[%s301] sm:$0xff] %v4839
        %4842 = vst [vmem:[%s301 + $0x8] sm:$0xff] %v4840
        %s4843 = sand.u32 %s183, 1
        %s4844 = scalar_lea.sflag [#allocation5], %s4843
        %s4845 = sand.u32 %s183, 1
        %s4846 = smul.addr %s4845, 16
        %s4847 = scalar_lea.vmem [#allocation8], %s4846
        // Predicated region
        $region57: #{tpu_custom_call.1} parent=47 // pred_check
          %p4848 = pneg %p193
        $region58: #{tpu_custom_call.1} parent=47 // pred_check_branch
          %4850 = sbr.rel (%p4848) target = $region60
        $region59: #{tpu_custom_call.1} parent=47 // pred_region
          %s4852 = ssub.s32 256, 256
          %4853 = vsyncadd %s4844, %s4852
          %s4854 = smul.addr %s23, 2
          %s4855 = smul.addr %s4854, 128
          %s4856 = scalar_lea.hbm %s7, %s4855
          %s4857 = sshll.u32 %s4847, 4
          %s4858 = int_to_ptr.vmem [resolvable:$true] %s4857
          %4863 = dma.vmem_to_hbm [thread:$0]  %s4858, 256, %s4856, %s4844, 128, 128, 8
        $region60: #{tpu_custom_call.1} parent=47 // pred_fallthru
          _
      $region48: #{tpu_custom_call.1} parent=5 // pred_fallthru
        _
      %p4864 = scmp.le.s32.totalorder 2, %s18
      // Predicated region
      $region61: #{tpu_custom_call.1} parent=5 // pred_check
        %p4865 = pneg %p4864
      $region62: #{tpu_custom_call.1} parent=5 // pred_check_branch
        %4867 = sbr.rel (%p4865) target = $region64
      $region63: #{tpu_custom_call.1} parent=5 // pred_region
        %s4868 = ssub.s32 %s18, 2
        // Predicated region
        $region65: #{tpu_custom_call.1} parent=63 // pred_check
          %p4869 = pneg %p199
        $region66: #{tpu_custom_call.1} parent=63 // pred_check_branch
          %4871 = sbr.rel (%p4869) target = $region68
        $region67: #{tpu_custom_call.1} parent=63 // pred_region
          %s4872 = sand.u32 %s184, 1
          %s4873 = scalar_lea.sflag [#allocation5], %s4872
          %s4874 = sand.u32 %s184, 1
          %s4875 = smul.addr %s4874, 16
          %s4876 = scalar_lea.vmem [#allocation8], %s4875
          %4877 = dma.done %s4873, 256
        $region68: #{tpu_custom_call.1} parent=63 // pred_fallthru
          _
      $region64: #{tpu_custom_call.1} parent=5 // pred_fallthru
        _
    $region6: #{tpu_custom_call.1} parent=1 // loop_footer
      %s22 = sadd.s32 1, %s18
    $region7: #{tpu_custom_call.1} parent=1 // loop_footer_branch
      %17 = sbr.rel target = $region3
    $region8: #{tpu_custom_call.1} parent=1 // loop_exit
      _
    %4878 = vsyncpa [#allocation4], 1
    %s4879 = scalar_lea.sflag [#allocation4], 1
    %4880 = vsyncpa %s4879, 1
    %4881 = vsyncpa [#allocation7], 1
    %4882 = vsyncpa [#allocation5], 1
    %s4883 = scalar_lea.sflag [#allocation5], 1
    %4884 = vsyncpa %s4883, 1

</llo_original>
